<compile_context>
chip_gen: v7x
topology: tpu7x:2x2x1
jax: 0.10.0
libtpu: 0.0.40
codegen_flags: <defaults>
</compile_context>

<pallas_src>
import jax
import jax.numpy as jnp
from jax import lax
from jax.experimental import pallas as pl
from jax.experimental.pallas import tpu as pltpu
import numpy as np

INPUT_SIZE = 1
HIDDEN_SIZE = 64
NUM_LAYERS = 2
OUTPUT_SIZE = 1
LANE = 128            # TPU lane width
SUBLANE = 8           # TPU sublane quantum
MAX_BATCH_BLOCK = 128  # MXU LHS row height (portable across v5e/v6e/v7x)
UNROLL_LIMIT = 64      # static Python unroll below this T, fori_loop above


# ---------------------------------------------------------------------------
# Pallas kernel: one grid step == full sequence (both LSTM layers) + final FC
# for one batch block.
# ---------------------------------------------------------------------------
def _lstm_kernel(x_ref,        # (T, B_blk, 1) time-major input
                 w_ih0_ref,    # (1, 4H)  layer-0 input weights  (i/f/o cols pre-scaled x0.5)
                 b0_ref,       # (1, 4H)  layer-0 bias b_ih+b_hh (i/f/o cols pre-scaled x0.5)
                 w_hh0_ref,    # (H, 4H)  layer-0 recurrent weights (pre-scaled)
                 w_ih1_ref,    # (H, 4H)  layer-1 input weights      (pre-scaled)
                 w_hh1_ref,    # (H, 4H)  layer-1 recurrent weights  (pre-scaled)
                 b1_ref,       # (1, 4H)  layer-1 bias               (pre-scaled)
                 fc_w_ref,     # (H, LANE) FC weight, zero-padded to lane width
                 fc_b_ref,     # (1, LANE) FC bias, zero-padded
                 out_ref,      # (B_blk, LANE) lane-dense output slab
                 xproj_ref):   # (T, B_blk, 4H) VMEM scratch
    T, B, _ = x_ref.shape
    H = HIDDEN_SIZE

    b1 = b1_ref[...]

    # ---- layer-0 input projection for ALL timesteps, vectorized ----------
    # (T,B,1) * (1,1,4H) broadcast-multiply: one VPU slab op, written to VMEM
    # scratch so vreg pressure does not grow with T; per-step consumption is
    # a plain vld that sits off the serial h->h chain.
    xproj_ref[...] = (x_ref[...] * w_ih0_ref[...][None, :, :]
                      + b0_ref[...][None, :, :])

    def gate_combine(gates, c_prev):
        # PyTorch gate order [i, f, g, o].  The i/f/o weight columns were
        # pre-scaled by 0.5 at pack time, so sigmoid(x) = 0.5*(tanh(x/2)+1)
        # costs a single whole-(B,4H)-slab tanh (one EUP op).
        t = jnp.tanh(gates)
        i = t[:, 0 * H:1 * H]
        f = t[:, 1 * H:2 * H]
        g = t[:, 2 * H:3 * H]
        o = t[:, 3 * H:4 * H]
        c_new = 0.5 * (f + 1.0) * c_prev + 0.5 * (i + 1.0) * g
        h_new = 0.5 * (o + 1.0) * jnp.tanh(c_new)
        return h_new, c_new

    z = jnp.zeros((B, H), jnp.float32)

    # ---- prologue: layer-0 step 0 (h0(-1)==0 -> no recurrent matmul) -----
    h0, c0 = gate_combine(xproj_ref[0], z)
    h1, c1 = z, z

    # ---- software-pipelined time loop -------------------------------------
    # carry: h0 = h0(t-1), c0 = c0(t-1), h1 = h1(t-2), c1 = c1(t-2).
    # The three dots below depend only on the carried state, so they are
    # mutually independent and overlap in the MXU.
    def step(t, carry):
        h0, c0, h1, c1 = carry
        rec0 = jnp.dot(h0, w_hh0_ref[...], preferred_element_type=jnp.float32)
        p1a = jnp.dot(h0, w_ih1_ref[...], preferred_element_type=jnp.float32)
        p1b = jnp.dot(h1, w_hh1_ref[...], preferred_element_type=jnp.float32)
        g0 = xproj_ref[t] + rec0            # layer-0 gates, step t
        g1 = p1a + p1b + b1                 # layer-1 gates, step t-1
        h0n, c0n = gate_combine(g0, c0)     # layer-0 advances to step t
        h1n, c1n = gate_combine(g1, c1)     # layer-1 advances to step t-1
        return h0n, c0n, h1n, c1n

    carry = (h0, c0, h1, c1)
    if T <= UNROLL_LIMIT:
        for t in range(1, T):               # static unroll: full LLO visibility
            carry = step(t, carry)
    else:
        carry = lax.fori_loop(1, T, step, carry, unroll=2)
    h0, c0, h1, c1 = carry

    # ---- epilogue: layer-1 step T-1 ---------------------------------------
    g1 = (jnp.dot(h0, w_ih1_ref[...], preferred_element_type=jnp.float32)
          + jnp.dot(h1, w_hh1_ref[...], preferred_element_type=jnp.float32)
          + b1)
    h1, c1 = gate_combine(g1, c1)

    # Fused final Linear on the last hidden state; lane-dense (B, 128) store.
    out_ref[...] = (jnp.dot(h1, fc_w_ref[...],
                            preferred_element_type=jnp.float32)
                    + fc_b_ref[...])


# ---------------------------------------------------------------------------
# Wrapper
# ---------------------------------------------------------------------------
@jax.jit
def lstm_forward(x, kparams):
    """x: (B, T, I) float32  ->  (B, OUTPUT_SIZE) float32."""
    B, T, I = x.shape
    assert I == INPUT_SIZE
    H = HIDDEN_SIZE

    # Fill MXU rows with batch instead of launching more kernels; block the
    # batch only past the MXU row height.  Batch grid axis is 'parallel' so
    # v7x's second TensorCore picks up blocks automatically.
    if B <= MAX_BATCH_BLOCK:
        b_blk = max(SUBLANE, ((B + SUBLANE - 1) // SUBLANE) * SUBLANE)
    else:
        b_blk = MAX_BATCH_BLOCK
    B_pad = ((B + b_blk - 1) // b_blk) * b_blk
    n_blk = B_pad // b_blk

    x_tb = jnp.transpose(x, (1, 0, 2))                        # (T, B, I)
    x_tb = jnp.pad(x_tb, ((0, 0), (0, B_pad - B), (0, 0)))    # (T, B_pad, I)

    grid_spec = pltpu.PrefetchScalarGridSpec(
        num_scalar_prefetch=0,
        grid=(n_blk,),
        in_specs=[
            pl.BlockSpec((T, b_blk, 1), lambda b: (0, b, 0)),   # x
            pl.BlockSpec((1, 4 * H), lambda b: (0, 0)),          # w_ih0
            pl.BlockSpec((1, 4 * H), lambda b: (0, 0)),          # b0
            pl.BlockSpec((H, 4 * H), lambda b: (0, 0)),          # w_hh0
            pl.BlockSpec((H, 4 * H), lambda b: (0, 0)),          # w_ih1
            pl.BlockSpec((H, 4 * H), lambda b: (0, 0)),          # w_hh1
            pl.BlockSpec((1, 4 * H), lambda b: (0, 0)),          # b1
            pl.BlockSpec((H, LANE), lambda b: (0, 0)),           # fc_w
            pl.BlockSpec((1, LANE), lambda b: (0, 0)),           # fc_b
        ],
        out_specs=pl.BlockSpec((b_blk, LANE), lambda b: (b, 0)),
        scratch_shapes=[pltpu.VMEM((T, b_blk, 4 * H), jnp.float32)],
    )

    out_padded = pl.pallas_call(
        _lstm_kernel,
        out_shape=jax.ShapeDtypeStruct((B_pad, LANE), jnp.float32),
        grid_spec=grid_spec,
        compiler_params=pltpu.CompilerParams(
            dimension_semantics=("parallel",)),
    )(x_tb,
      kparams["w_ih0"], kparams["b0"], kparams["w_hh0"],
      kparams["w_ih1"], kparams["w_hh1"], kparams["b1"],
      kparams["fc_w"], kparams["fc_b"])

    return out_padded[:B, :OUTPUT_SIZE]


# ---------------------------------------------------------------------------
# Parameter init (PyTorch layout) + packing into the kernel layout
# ---------------------------------------------------------------------------
def init_params(key):
    """PyTorch-layout parameters (gate order i, f, g, o)."""
    H, I, O = HIDDEN_SIZE, INPUT_SIZE, OUTPUT_SIZE
    bound = 1.0 / np.sqrt(H)
    ks = jax.random.split(key, 12)

    def u(k, shape):
        return jax.random.uniform(k, shape, jnp.float32, -bound, bound)

    return dict(
        w_ih0=u(ks[0], (4 * H, I)),  w_hh0=u(ks[1], (4 * H, H)),
        b_ih0=u(ks[2], (4 * H,)),    b_hh0=u(ks[3], (4 * H,)),
        w_ih1=u(ks[4], (4 * H, H)),  w_hh1=u(ks[5], (4 * H, H)),
        b_ih1=u(ks[6], (4 * H,)),    b_hh1=u(ks[7], (4 * H,)),
        fc_w=u(ks[8], (O, H)),       fc_b=u(ks[9], (O,)),
    )


# Gate columns in PyTorch order [i, f, g, o]; i/f/o (sigmoid gates) get a 0.5
# pre-scale so the kernel can use sigmoid(x) = 0.5*(tanh(x/2)+1) with a single
# whole-slab tanh.  Scaling by 0.5 is exact in binary FP.
_GATE_PRESCALE = np.concatenate([
    np.full(HIDDEN_SIZE, 0.5, np.float32),   # i
    np.full(HIDDEN_SIZE, 0.5, np.float32),   # f
    np.ones(HIDDEN_SIZE, dtype=np.float32),  # g (tanh gate: no prescale)
    np.full(HIDDEN_SIZE, 0.5, np.float32),   # o
])


def _prescale(a):
    return a * jnp.asarray(_GATE_PRESCALE)


def pack_params(p):
    """Pack PyTorch-layout params into the kernel layout."""
    H, O = HIDDEN_SIZE, OUTPUT_SIZE
    w_ih0 = _prescale(p["w_ih0"].T)                                   # (1, 4H)
    b0 = _prescale((p["b_ih0"] + p["b_hh0"]).reshape(1, 4 * H))        # (1, 4H)
    w_hh0 = _prescale(p["w_hh0"].T)                                   # (H, 4H)
    w_ih1 = _prescale(p["w_ih1"].T)                                   # (H, 4H)
    w_hh1 = _prescale(p["w_hh1"].T)                                   # (H, 4H)
    b1 = _prescale((p["b_ih1"] + p["b_hh1"]).reshape(1, 4 * H))        # (1, 4H)
    fc_w = jnp.zeros((H, LANE), jnp.float32).at[:, :O].set(p["fc_w"].T)
    fc_b = jnp.zeros((1, LANE), jnp.float32).at[:, :O].set(
        p["fc_b"].reshape(1, O))
    return dict(w_ih0=w_ih0, b0=b0, w_hh0=w_hh0,
                w_ih1=w_ih1, w_hh1=w_hh1, b1=b1, fc_w=fc_w, fc_b=fc_b)


# ---------------------------------------------------------------------------
# Pure-JAX reference (lax.scan, PyTorch semantics) for correctness check
# ---------------------------------------------------------------------------
def lstm_ref(x, p):
    B, T, I = x.shape
    H = HIDDEN_SIZE

    def cell(x_in, h, c, w_ih, w_hh, b_ih, b_hh):
        gates = x_in @ w_ih.T + h @ w_hh.T + b_ih + b_hh
        i = jax.nn.sigmoid(gates[:, 0 * H:1 * H])
        f = jax.nn.sigmoid(gates[:, 1 * H:2 * H])
        g = jnp.tanh(gates[:, 2 * H:3 * H])
        o = jax.nn.sigmoid(gates[:, 3 * H:4 * H])
        c_new = f * c + i * g
        return o * jnp.tanh(c_new), c_new

    def step(carry, x_t):
        h0, c0, h1, c1 = carry
        h0, c0 = cell(x_t, h0, c0, p["w_ih0"], p["w_hh0"], p["b_ih0"], p["b_hh0"])
        h1, c1 = cell(h0, h1, c1, p["w_ih1"], p["w_hh1"], p["b_ih1"], p["b_hh1"])
        return (h0, c0, h1, c1), None

    z = jnp.zeros((B, H), jnp.float32)
    (h0, c0, h1, c1), _ = lax.scan(step, (z, z, z, z),
                                   jnp.transpose(x, (1, 0, 2)))
    return h1 @ p["fc_w"].T + p["fc_b"]


if __name__ == "__main__":
    key = jax.random.PRNGKey(0)
    k_param, k_x = jax.random.split(key)

    B, T = 2, 8
    x = jax.random.normal(k_x, (B, T, INPUT_SIZE), jnp.float32)
    params = init_params(k_param)
    kparams = pack_params(params)

    out = lstm_forward(x, kparams)
    out = jax.block_until_ready(out)

    ref = lstm_ref(x, params)
    np.testing.assert_allclose(np.asarray(out), np.asarray(ref),
                               rtol=1e-5, atol=1e-5)
    assert out.shape == (B, OUTPUT_SIZE)
    print("KERNEL_OK")
</pallas_src>

<mosaic_0001>
module attributes {stable_mosaic.version = 11 : i64} {
  func.func @_lstm_kernel(%arg0: i32, %arg1: memref<8x8x1xf32, #tpu.memory_space<vmem>>, %arg2: memref<1x256xf32, #tpu.memory_space<vmem>>, %arg3: memref<1x256xf32, #tpu.memory_space<vmem>>, %arg4: memref<64x256xf32, #tpu.memory_space<vmem>>, %arg5: memref<64x256xf32, #tpu.memory_space<vmem>>, %arg6: memref<64x256xf32, #tpu.memory_space<vmem>>, %arg7: memref<1x256xf32, #tpu.memory_space<vmem>>, %arg8: memref<64x128xf32, #tpu.memory_space<vmem>>, %arg9: memref<1x128xf32, #tpu.memory_space<vmem>>, %arg10: memref<8x128xf32, #tpu.memory_space<vmem>>, %arg11: memref<8x8x256xf32, #tpu.memory_space<vmem>>) attributes {dimension_semantics = [#tpu.dimension_semantics<parallel>], iteration_bounds = array<i64: 1>, scalar_prefetch = 0 : i64, scratch_operands = 1 : i64, tpu.core_type = #tpu.core_type<tc>, window_params = [{transform_indices = @transform_0, window_bounds = array<i64: 8, 8, 1>}, {pipeline_mode = #tpu.pipeline_mode<synchronous>, transform_indices = @transform_1, window_bounds = array<i64: 1, 256>}, {pipeline_mode = #tpu.pipeline_mode<synchronous>, transform_indices = @transform_2, window_bounds = array<i64: 1, 256>}, {pipeline_mode = #tpu.pipeline_mode<synchronous>, transform_indices = @transform_3, window_bounds = array<i64: 64, 256>}, {pipeline_mode = #tpu.pipeline_mode<synchronous>, transform_indices = @transform_4, window_bounds = array<i64: 64, 256>}, {pipeline_mode = #tpu.pipeline_mode<synchronous>, transform_indices = @transform_5, window_bounds = array<i64: 64, 256>}, {pipeline_mode = #tpu.pipeline_mode<synchronous>, transform_indices = @transform_6, window_bounds = array<i64: 1, 256>}, {pipeline_mode = #tpu.pipeline_mode<synchronous>, transform_indices = @transform_7, window_bounds = array<i64: 64, 128>}, {pipeline_mode = #tpu.pipeline_mode<synchronous>, transform_indices = @transform_8, window_bounds = array<i64: 1, 128>}, {transform_indices = @transform_9, window_bounds = array<i64: 8, 128>}]} {
    %c0 = arith.constant 0 : index
    %c0_0 = arith.constant 0 : index
    %0 = vector.load %arg7[%c0, %c0_0] : memref<1x256xf32, #tpu.memory_space<vmem>>, vector<1x256xf32>
    %c0_1 = arith.constant 0 : index
    %c0_2 = arith.constant 0 : index
    %c0_3 = arith.constant 0 : index
    %1 = vector.load %arg1[%c0_1, %c0_2, %c0_3] : memref<8x8x1xf32, #tpu.memory_space<vmem>>, vector<8x8x1xf32>
    %c0_4 = arith.constant 0 : index
    %c0_5 = arith.constant 0 : index
    %2 = vector.load %arg2[%c0_4, %c0_5] : memref<1x256xf32, #tpu.memory_space<vmem>>, vector<1x256xf32>
    %3 = vector.shape_cast %2 : vector<1x256xf32> to vector<1x1x256xf32>
    %4 = vector.broadcast %1 : vector<8x8x1xf32> to vector<8x8x256xf32>
    %5 = vector.broadcast %3 : vector<1x1x256xf32> to vector<8x8x256xf32>
    %6 = arith.mulf %4, %5 : vector<8x8x256xf32>
    %c0_6 = arith.constant 0 : index
    %c0_7 = arith.constant 0 : index
    %7 = vector.load %arg3[%c0_6, %c0_7] : memref<1x256xf32, #tpu.memory_space<vmem>>, vector<1x256xf32>
    %8 = vector.shape_cast %7 : vector<1x256xf32> to vector<1x1x256xf32>
    %9 = vector.broadcast %8 : vector<1x1x256xf32> to vector<8x8x256xf32>
    %10 = arith.addf %6, %9 : vector<8x8x256xf32>
    %c0_8 = arith.constant 0 : index
    %c0_9 = arith.constant 0 : index
    %c0_10 = arith.constant 0 : index
    %11 = vector.load %arg11[%c0_8, %c0_9, %c0_10] : memref<8x8x256xf32, #tpu.memory_space<vmem>>, vector<8x8x256xf32>
    tpu.vector_store %arg11[%c0_8, %c0_9, %c0_10], %10 {strides = array<i32>} : memref<8x8x256xf32, #tpu.memory_space<vmem>>, vector<8x8x256xf32>,
    %cst = arith.constant 0.000000e+00 : f32
    %12 = vector.broadcast %cst : f32 to vector<8x64xf32>
    %c0_11 = arith.constant 0 : index
    %c0_12 = arith.constant 0 : index
    %c0_13 = arith.constant 0 : index
    %13 = vector.load %arg11[%c0_11, %c0_12, %c0_13] : memref<8x8x256xf32, #tpu.memory_space<vmem>>, vector<1x8x256xf32>
    %14 = vector.shape_cast %13 : vector<1x8x256xf32> to vector<8x256xf32>
    %15 = math.tanh %14 : vector<8x256xf32>
    %16 = vector.extract_strided_slice %15 {offsets = [0, 0], sizes = [8, 64], strides = [1, 1]} : vector<8x256xf32> to vector<8x64xf32>
    %17 = vector.extract_strided_slice %15 {offsets = [0, 64], sizes = [8, 64], strides = [1, 1]} : vector<8x256xf32> to vector<8x64xf32>
    %18 = vector.extract_strided_slice %15 {offsets = [0, 128], sizes = [8, 64], strides = [1, 1]} : vector<8x256xf32> to vector<8x64xf32>
    %19 = vector.extract_strided_slice %15 {offsets = [0, 192], sizes = [8, 64], strides = [1, 1]} : vector<8x256xf32> to vector<8x64xf32>
    %cst_14 = arith.constant 1.000000e+00 : f32
    %20 = vector.broadcast %cst_14 : f32 to vector<8x64xf32>
    %21 = arith.addf %17, %20 : vector<8x64xf32>
    %cst_15 = arith.constant 5.000000e-01 : f32
    %22 = vector.broadcast %cst_15 : f32 to vector<8x64xf32>
    %23 = arith.mulf %22, %21 : vector<8x64xf32>
    %24 = arith.mulf %23, %12 : vector<8x64xf32>
    %cst_16 = arith.constant 1.000000e+00 : f32
    %25 = vector.broadcast %cst_16 : f32 to vector<8x64xf32>
    %26 = arith.addf %16, %25 : vector<8x64xf32>
    %cst_17 = arith.constant 5.000000e-01 : f32
    %27 = vector.broadcast %cst_17 : f32 to vector<8x64xf32>
    %28 = arith.mulf %27, %26 : vector<8x64xf32>
    %29 = arith.mulf %28, %18 : vector<8x64xf32>
    %30 = arith.addf %24, %29 : vector<8x64xf32>
    %cst_18 = arith.constant 1.000000e+00 : f32
    %31 = vector.broadcast %cst_18 : f32 to vector<8x64xf32>
    %32 = arith.addf %19, %31 : vector<8x64xf32>
    %cst_19 = arith.constant 5.000000e-01 : f32
    %33 = vector.broadcast %cst_19 : f32 to vector<8x64xf32>
    %34 = arith.mulf %33, %32 : vector<8x64xf32>
    %35 = math.tanh %30 : vector<8x64xf32>
    %36 = arith.mulf %34, %35 : vector<8x64xf32>
    %c0_20 = arith.constant 0 : index
    %c0_21 = arith.constant 0 : index
    %37 = vector.load %arg4[%c0_20, %c0_21] : memref<64x256xf32, #tpu.memory_space<vmem>>, vector<64x256xf32>
    %cst_22 = arith.constant dense<0.000000e+00> : vector<8x256xf32>
    %38 = tpu.matmul %36, %37, %cst_22 {dimension_numbers = #tpu.dot_dimension_numbers<[1], [0], [0], [1], [0, 0, 1, 1], [], []>} : vector<8x64xf32>, vector<64x256xf32>, vector<8x256xf32> -> vector<8x256xf32>
    %c0_23 = arith.constant 0 : index
    %c0_24 = arith.constant 0 : index
    %39 = vector.load %arg5[%c0_23, %c0_24] : memref<64x256xf32, #tpu.memory_space<vmem>>, vector<64x256xf32>
    %cst_25 = arith.constant dense<0.000000e+00> : vector<8x256xf32>
    %40 = tpu.matmul %36, %39, %cst_25 {dimension_numbers = #tpu.dot_dimension_numbers<[1], [0], [0], [1], [0, 0, 1, 1], [], []>} : vector<8x64xf32>, vector<64x256xf32>, vector<8x256xf32> -> vector<8x256xf32>
    %c0_26 = arith.constant 0 : index
    %c0_27 = arith.constant 0 : index
    %41 = vector.load %arg6[%c0_26, %c0_27] : memref<64x256xf32, #tpu.memory_space<vmem>>, vector<64x256xf32>
    %cst_28 = arith.constant dense<0.000000e+00> : vector<8x256xf32>
    %42 = tpu.matmul %12, %41, %cst_28 {dimension_numbers = #tpu.dot_dimension_numbers<[1], [0], [0], [1], [0, 0, 1, 1], [], []>} : vector<8x64xf32>, vector<64x256xf32>, vector<8x256xf32> -> vector<8x256xf32>
    %c1 = arith.constant 1 : index
    %c0_29 = arith.constant 0 : index
    %c0_30 = arith.constant 0 : index
    %43 = vector.load %arg11[%c1, %c0_29, %c0_30] : memref<8x8x256xf32, #tpu.memory_space<vmem>>, vector<1x8x256xf32>
    %44 = vector.shape_cast %43 : vector<1x8x256xf32> to vector<8x256xf32>
    %45 = arith.addf %44, %38 : vector<8x256xf32>
    %46 = arith.addf %40, %42 : vector<8x256xf32>
    %47 = vector.broadcast %0 : vector<1x256xf32> to vector<8x256xf32>
    %48 = arith.addf %46, %47 : vector<8x256xf32>
    %49 = math.tanh %45 : vector<8x256xf32>
    %50 = vector.extract_strided_slice %49 {offsets = [0, 0], sizes = [8, 64], strides = [1, 1]} : vector<8x256xf32> to vector<8x64xf32>
    %51 = vector.extract_strided_slice %49 {offsets = [0, 64], sizes = [8, 64], strides = [1, 1]} : vector<8x256xf32> to vector<8x64xf32>
    %52 = vector.extract_strided_slice %49 {offsets = [0, 128], sizes = [8, 64], strides = [1, 1]} : vector<8x256xf32> to vector<8x64xf32>
    %53 = vector.extract_strided_slice %49 {offsets = [0, 192], sizes = [8, 64], strides = [1, 1]} : vector<8x256xf32> to vector<8x64xf32>
    %cst_31 = arith.constant 1.000000e+00 : f32
    %54 = vector.broadcast %cst_31 : f32 to vector<8x64xf32>
    %55 = arith.addf %51, %54 : vector<8x64xf32>
    %cst_32 = arith.constant 5.000000e-01 : f32
    %56 = vector.broadcast %cst_32 : f32 to vector<8x64xf32>
    %57 = arith.mulf %56, %55 : vector<8x64xf32>
    %58 = arith.mulf %57, %30 : vector<8x64xf32>
    %cst_33 = arith.constant 1.000000e+00 : f32
    %59 = vector.broadcast %cst_33 : f32 to vector<8x64xf32>
    %60 = arith.addf %50, %59 : vector<8x64xf32>
    %cst_34 = arith.constant 5.000000e-01 : f32
    %61 = vector.broadcast %cst_34 : f32 to vector<8x64xf32>
    %62 = arith.mulf %61, %60 : vector<8x64xf32>
    %63 = arith.mulf %62, %52 : vector<8x64xf32>
    %64 = arith.addf %58, %63 : vector<8x64xf32>
    %cst_35 = arith.constant 1.000000e+00 : f32
    %65 = vector.broadcast %cst_35 : f32 to vector<8x64xf32>
    %66 = arith.addf %53, %65 : vector<8x64xf32>
    %cst_36 = arith.constant 5.000000e-01 : f32
    %67 = vector.broadcast %cst_36 : f32 to vector<8x64xf32>
    %68 = arith.mulf %67, %66 : vector<8x64xf32>
    %69 = math.tanh %64 : vector<8x64xf32>
    %70 = arith.mulf %68, %69 : vector<8x64xf32>
    %71 = math.tanh %48 : vector<8x256xf32>
    %72 = vector.extract_strided_slice %71 {offsets = [0, 0], sizes = [8, 64], strides = [1, 1]} : vector<8x256xf32> to vector<8x64xf32>
    %73 = vector.extract_strided_slice %71 {offsets = [0, 64], sizes = [8, 64], strides = [1, 1]} : vector<8x256xf32> to vector<8x64xf32>
    %74 = vector.extract_strided_slice %71 {offsets = [0, 128], sizes = [8, 64], strides = [1, 1]} : vector<8x256xf32> to vector<8x64xf32>
    %75 = vector.extract_strided_slice %71 {offsets = [0, 192], sizes = [8, 64], strides = [1, 1]} : vector<8x256xf32> to vector<8x64xf32>
    %cst_37 = arith.constant 1.000000e+00 : f32
    %76 = vector.broadcast %cst_37 : f32 to vector<8x64xf32>
    %77 = arith.addf %73, %76 : vector<8x64xf32>
    %cst_38 = arith.constant 5.000000e-01 : f32
    %78 = vector.broadcast %cst_38 : f32 to vector<8x64xf32>
    %79 = arith.mulf %78, %77 : vector<8x64xf32>
    %80 = arith.mulf %79, %12 : vector<8x64xf32>
    %cst_39 = arith.constant 1.000000e+00 : f32
    %81 = vector.broadcast %cst_39 : f32 to vector<8x64xf32>
    %82 = arith.addf %72, %81 : vector<8x64xf32>
    %cst_40 = arith.constant 5.000000e-01 : f32
    %83 = vector.broadcast %cst_40 : f32 to vector<8x64xf32>
    %84 = arith.mulf %83, %82 : vector<8x64xf32>
    %85 = arith.mulf %84, %74 : vector<8x64xf32>
    %86 = arith.addf %80, %85 : vector<8x64xf32>
    %cst_41 = arith.constant 1.000000e+00 : f32
    %87 = vector.broadcast %cst_41 : f32 to vector<8x64xf32>
    %88 = arith.addf %75, %87 : vector<8x64xf32>
    %cst_42 = arith.constant 5.000000e-01 : f32
    %89 = vector.broadcast %cst_42 : f32 to vector<8x64xf32>
    %90 = arith.mulf %89, %88 : vector<8x64xf32>
    %91 = math.tanh %86 : vector<8x64xf32>
    %92 = arith.mulf %90, %91 : vector<8x64xf32>
    %c0_43 = arith.constant 0 : index
    %c0_44 = arith.constant 0 : index
    %93 = vector.load %arg4[%c0_43, %c0_44] : memref<64x256xf32, #tpu.memory_space<vmem>>, vector<64x256xf32>
    %cst_45 = arith.constant dense<0.000000e+00> : vector<8x256xf32>
    %94 = tpu.matmul %70, %93, %cst_45 {dimension_numbers = #tpu.dot_dimension_numbers<[1], [0], [0], [1], [0, 0, 1, 1], [], []>} : vector<8x64xf32>, vector<64x256xf32>, vector<8x256xf32> -> vector<8x256xf32>
    %c0_46 = arith.constant 0 : index
    %c0_47 = arith.constant 0 : index
    %95 = vector.load %arg5[%c0_46, %c0_47] : memref<64x256xf32, #tpu.memory_space<vmem>>, vector<64x256xf32>
    %cst_48 = arith.constant dense<0.000000e+00> : vector<8x256xf32>
    %96 = tpu.matmul %70, %95, %cst_48 {dimension_numbers = #tpu.dot_dimension_numbers<[1], [0], [0], [1], [0, 0, 1, 1], [], []>} : vector<8x64xf32>, vector<64x256xf32>, vector<8x256xf32> -> vector<8x256xf32>
    %c0_49 = arith.constant 0 : index
    %c0_50 = arith.constant 0 : index
    %97 = vector.load %arg6[%c0_49, %c0_50] : memref<64x256xf32, #tpu.memory_space<vmem>>, vector<64x256xf32>
    %cst_51 = arith.constant dense<0.000000e+00> : vector<8x256xf32>
    %98 = tpu.matmul %92, %97, %cst_51 {dimension_numbers = #tpu.dot_dimension_numbers<[1], [0], [0], [1], [0, 0, 1, 1], [], []>} : vector<8x64xf32>, vector<64x256xf32>, vector<8x256xf32> -> vector<8x256xf32>
    %c2 = arith.constant 2 : index
    %c0_52 = arith.constant 0 : index
    %c0_53 = arith.constant 0 : index
    %99 = vector.load %arg11[%c2, %c0_52, %c0_53] : memref<8x8x256xf32, #tpu.memory_space<vmem>>, vector<1x8x256xf32>
    %100 = vector.shape_cast %99 : vector<1x8x256xf32> to vector<8x256xf32>
    %101 = arith.addf %100, %94 : vector<8x256xf32>
    %102 = arith.addf %96, %98 : vector<8x256xf32>
    %103 = vector.broadcast %0 : vector<1x256xf32> to vector<8x256xf32>
    %104 = arith.addf %102, %103 : vector<8x256xf32>
    %105 = math.tanh %101 : vector<8x256xf32>
    %106 = vector.extract_strided_slice %105 {offsets = [0, 0], sizes = [8, 64], strides = [1, 1]} : vector<8x256xf32> to vector<8x64xf32>
    %107 = vector.extract_strided_slice %105 {offsets = [0, 64], sizes = [8, 64], strides = [1, 1]} : vector<8x256xf32> to vector<8x64xf32>
    %108 = vector.extract_strided_slice %105 {offsets = [0, 128], sizes = [8, 64], strides = [1, 1]} : vector<8x256xf32> to vector<8x64xf32>
    %109 = vector.extract_strided_slice %105 {offsets = [0, 192], sizes = [8, 64], strides = [1, 1]} : vector<8x256xf32> to vector<8x64xf32>
    %cst_54 = arith.constant 1.000000e+00 : f32
    %110 = vector.broadcast %cst_54 : f32 to vector<8x64xf32>
    %111 = arith.addf %107, %110 : vector<8x64xf32>
    %cst_55 = arith.constant 5.000000e-01 : f32
    %112 = vector.broadcast %cst_55 : f32 to vector<8x64xf32>
    %113 = arith.mulf %112, %111 : vector<8x64xf32>
    %114 = arith.mulf %113, %64 : vector<8x64xf32>
    %cst_56 = arith.constant 1.000000e+00 : f32
    %115 = vector.broadcast %cst_56 : f32 to vector<8x64xf32>
    %116 = arith.addf %106, %115 : vector<8x64xf32>
    %cst_57 = arith.constant 5.000000e-01 : f32
    %117 = vector.broadcast %cst_57 : f32 to vector<8x64xf32>
    %118 = arith.mulf %117, %116 : vector<8x64xf32>
    %119 = arith.mulf %118, %108 : vector<8x64xf32>
    %120 = arith.addf %114, %119 : vector<8x64xf32>
    %cst_58 = arith.constant 1.000000e+00 : f32
    %121 = vector.broadcast %cst_58 : f32 to vector<8x64xf32>
    %122 = arith.addf %109, %121 : vector<8x64xf32>
    %cst_59 = arith.constant 5.000000e-01 : f32
    %123 = vector.broadcast %cst_59 : f32 to vector<8x64xf32>
    %124 = arith.mulf %123, %122 : vector<8x64xf32>
    %125 = math.tanh %120 : vector<8x64xf32>
    %126 = arith.mulf %124, %125 : vector<8x64xf32>
    %127 = math.tanh %104 : vector<8x256xf32>
    %128 = vector.extract_strided_slice %127 {offsets = [0, 0], sizes = [8, 64], strides = [1, 1]} : vector<8x256xf32> to vector<8x64xf32>
    %129 = vector.extract_strided_slice %127 {offsets = [0, 64], sizes = [8, 64], strides = [1, 1]} : vector<8x256xf32> to vector<8x64xf32>
    %130 = vector.extract_strided_slice %127 {offsets = [0, 128], sizes = [8, 64], strides = [1, 1]} : vector<8x256xf32> to vector<8x64xf32>
    %131 = vector.extract_strided_slice %127 {offsets = [0, 192], sizes = [8, 64], strides = [1, 1]} : vector<8x256xf32> to vector<8x64xf32>
    %cst_60 = arith.constant 1.000000e+00 : f32
    %132 = vector.broadcast %cst_60 : f32 to vector<8x64xf32>
    %133 = arith.addf %129, %132 : vector<8x64xf32>
    %cst_61 = arith.constant 5.000000e-01 : f32
    %134 = vector.broadcast %cst_61 : f32 to vector<8x64xf32>
    %135 = arith.mulf %134, %133 : vector<8x64xf32>
    %136 = arith.mulf %135, %86 : vector<8x64xf32>
    %cst_62 = arith.constant 1.000000e+00 : f32
    %137 = vector.broadcast %cst_62 : f32 to vector<8x64xf32>
    %138 = arith.addf %128, %137 : vector<8x64xf32>
    %cst_63 = arith.constant 5.000000e-01 : f32
    %139 = vector.broadcast %cst_63 : f32 to vector<8x64xf32>
    %140 = arith.mulf %139, %138 : vector<8x64xf32>
    %141 = arith.mulf %140, %130 : vector<8x64xf32>
    %142 = arith.addf %136, %141 : vector<8x64xf32>
    %cst_64 = arith.constant 1.000000e+00 : f32
    %143 = vector.broadcast %cst_64 : f32 to vector<8x64xf32>
    %144 = arith.addf %131, %143 : vector<8x64xf32>
    %cst_65 = arith.constant 5.000000e-01 : f32
    %145 = vector.broadcast %cst_65 : f32 to vector<8x64xf32>
    %146 = arith.mulf %145, %144 : vector<8x64xf32>
    %147 = math.tanh %142 : vector<8x64xf32>
    %148 = arith.mulf %146, %147 : vector<8x64xf32>
    %c0_66 = arith.constant 0 : index
    %c0_67 = arith.constant 0 : index
    %149 = vector.load %arg4[%c0_66, %c0_67] : memref<64x256xf32, #tpu.memory_space<vmem>>, vector<64x256xf32>
    %cst_68 = arith.constant dense<0.000000e+00> : vector<8x256xf32>
    %150 = tpu.matmul %126, %149, %cst_68 {dimension_numbers = #tpu.dot_dimension_numbers<[1], [0], [0], [1], [0, 0, 1, 1], [], []>} : vector<8x64xf32>, vector<64x256xf32>, vector<8x256xf32> -> vector<8x256xf32>
    %c0_69 = arith.constant 0 : index
    %c0_70 = arith.constant 0 : index
    %151 = vector.load %arg5[%c0_69, %c0_70] : memref<64x256xf32, #tpu.memory_space<vmem>>, vector<64x256xf32>
    %cst_71 = arith.constant dense<0.000000e+00> : vector<8x256xf32>
    %152 = tpu.matmul %126, %151, %cst_71 {dimension_numbers = #tpu.dot_dimension_numbers<[1], [0], [0], [1], [0, 0, 1, 1], [], []>} : vector<8x64xf32>, vector<64x256xf32>, vector<8x256xf32> -> vector<8x256xf32>
    %c0_72 = arith.constant 0 : index
    %c0_73 = arith.constant 0 : index
    %153 = vector.load %arg6[%c0_72, %c0_73] : memref<64x256xf32, #tpu.memory_space<vmem>>, vector<64x256xf32>
    %cst_74 = arith.constant dense<0.000000e+00> : vector<8x256xf32>
    %154 = tpu.matmul %148, %153, %cst_74 {dimension_numbers = #tpu.dot_dimension_numbers<[1], [0], [0], [1], [0, 0, 1, 1], [], []>} : vector<8x64xf32>, vector<64x256xf32>, vector<8x256xf32> -> vector<8x256xf32>
    %c3 = arith.constant 3 : index
    %c0_75 = arith.constant 0 : index
    %c0_76 = arith.constant 0 : index
    %155 = vector.load %arg11[%c3, %c0_75, %c0_76] : memref<8x8x256xf32, #tpu.memory_space<vmem>>, vector<1x8x256xf32>
    %156 = vector.shape_cast %155 : vector<1x8x256xf32> to vector<8x256xf32>
    %157 = arith.addf %156, %150 : vector<8x256xf32>
    %158 = arith.addf %152, %154 : vector<8x256xf32>
    %159 = vector.broadcast %0 : vector<1x256xf32> to vector<8x256xf32>
    %160 = arith.addf %158, %159 : vector<8x256xf32>
    %161 = math.tanh %157 : vector<8x256xf32>
    %162 = vector.extract_strided_slice %161 {offsets = [0, 0], sizes = [8, 64], strides = [1, 1]} : vector<8x256xf32> to vector<8x64xf32>
    %163 = vector.extract_strided_slice %161 {offsets = [0, 64], sizes = [8, 64], strides = [1, 1]} : vector<8x256xf32> to vector<8x64xf32>
    %164 = vector.extract_strided_slice %161 {offsets = [0, 128], sizes = [8, 64], strides = [1, 1]} : vector<8x256xf32> to vector<8x64xf32>
    %165 = vector.extract_strided_slice %161 {offsets = [0, 192], sizes = [8, 64], strides = [1, 1]} : vector<8x256xf32> to vector<8x64xf32>
    %cst_77 = arith.constant 1.000000e+00 : f32
    %166 = vector.broadcast %cst_77 : f32 to vector<8x64xf32>
    %167 = arith.addf %163, %166 : vector<8x64xf32>
    %cst_78 = arith.constant 5.000000e-01 : f32
    %168 = vector.broadcast %cst_78 : f32 to vector<8x64xf32>
    %169 = arith.mulf %168, %167 : vector<8x64xf32>
    %170 = arith.mulf %169, %120 : vector<8x64xf32>
    %cst_79 = arith.constant 1.000000e+00 : f32
    %171 = vector.broadcast %cst_79 : f32 to vector<8x64xf32>
    %172 = arith.addf %162, %171 : vector<8x64xf32>
    %cst_80 = arith.constant 5.000000e-01 : f32
    %173 = vector.broadcast %cst_80 : f32 to vector<8x64xf32>
    %174 = arith.mulf %173, %172 : vector<8x64xf32>
    %175 = arith.mulf %174, %164 : vector<8x64xf32>
    %176 = arith.addf %170, %175 : vector<8x64xf32>
    %cst_81 = arith.constant 1.000000e+00 : f32
    %177 = vector.broadcast %cst_81 : f32 to vector<8x64xf32>
    %178 = arith.addf %165, %177 : vector<8x64xf32>
    %cst_82 = arith.constant 5.000000e-01 : f32
    %179 = vector.broadcast %cst_82 : f32 to vector<8x64xf32>
    %180 = arith.mulf %179, %178 : vector<8x64xf32>
    %181 = math.tanh %176 : vector<8x64xf32>
    %182 = arith.mulf %180, %181 : vector<8x64xf32>
    %183 = math.tanh %160 : vector<8x256xf32>
    %184 = vector.extract_strided_slice %183 {offsets = [0, 0], sizes = [8, 64], strides = [1, 1]} : vector<8x256xf32> to vector<8x64xf32>
    %185 = vector.extract_strided_slice %183 {offsets = [0, 64], sizes = [8, 64], strides = [1, 1]} : vector<8x256xf32> to vector<8x64xf32>
    %186 = vector.extract_strided_slice %183 {offsets = [0, 128], sizes = [8, 64], strides = [1, 1]} : vector<8x256xf32> to vector<8x64xf32>
    %187 = vector.extract_strided_slice %183 {offsets = [0, 192], sizes = [8, 64], strides = [1, 1]} : vector<8x256xf32> to vector<8x64xf32>
    %cst_83 = arith.constant 1.000000e+00 : f32
    %188 = vector.broadcast %cst_83 : f32 to vector<8x64xf32>
    %189 = arith.addf %185, %188 : vector<8x64xf32>
    %cst_84 = arith.constant 5.000000e-01 : f32
    %190 = vector.broadcast %cst_84 : f32 to vector<8x64xf32>
    %191 = arith.mulf %190, %189 : vector<8x64xf32>
    %192 = arith.mulf %191, %142 : vector<8x64xf32>
    %cst_85 = arith.constant 1.000000e+00 : f32
    %193 = vector.broadcast %cst_85 : f32 to vector<8x64xf32>
    %194 = arith.addf %184, %193 : vector<8x64xf32>
    %cst_86 = arith.constant 5.000000e-01 : f32
    %195 = vector.broadcast %cst_86 : f32 to vector<8x64xf32>
    %196 = arith.mulf %195, %194 : vector<8x64xf32>
    %197 = arith.mulf %196, %186 : vector<8x64xf32>
    %198 = arith.addf %192, %197 : vector<8x64xf32>
    %cst_87 = arith.constant 1.000000e+00 : f32
    %199 = vector.broadcast %cst_87 : f32 to vector<8x64xf32>
    %200 = arith.addf %187, %199 : vector<8x64xf32>
    %cst_88 = arith.constant 5.000000e-01 : f32
    %201 = vector.broadcast %cst_88 : f32 to vector<8x64xf32>
    %202 = arith.mulf %201, %200 : vector<8x64xf32>
    %203 = math.tanh %198 : vector<8x64xf32>
    %204 = arith.mulf %202, %203 : vector<8x64xf32>
    %c0_89 = arith.constant 0 : index
    %c0_90 = arith.constant 0 : index
    %205 = vector.load %arg4[%c0_89, %c0_90] : memref<64x256xf32, #tpu.memory_space<vmem>>, vector<64x256xf32>
    %cst_91 = arith.constant dense<0.000000e+00> : vector<8x256xf32>
    %206 = tpu.matmul %182, %205, %cst_91 {dimension_numbers = #tpu.dot_dimension_numbers<[1], [0], [0], [1], [0, 0, 1, 1], [], []>} : vector<8x64xf32>, vector<64x256xf32>, vector<8x256xf32> -> vector<8x256xf32>
    %c0_92 = arith.constant 0 : index
    %c0_93 = arith.constant 0 : index
    %207 = vector.load %arg5[%c0_92, %c0_93] : memref<64x256xf32, #tpu.memory_space<vmem>>, vector<64x256xf32>
    %cst_94 = arith.constant dense<0.000000e+00> : vector<8x256xf32>
    %208 = tpu.matmul %182, %207, %cst_94 {dimension_numbers = #tpu.dot_dimension_numbers<[1], [0], [0], [1], [0, 0, 1, 1], [], []>} : vector<8x64xf32>, vector<64x256xf32>, vector<8x256xf32> -> vector<8x256xf32>
    %c0_95 = arith.constant 0 : index
    %c0_96 = arith.constant 0 : index
    %209 = vector.load %arg6[%c0_95, %c0_96] : memref<64x256xf32, #tpu.memory_space<vmem>>, vector<64x256xf32>
    %cst_97 = arith.constant dense<0.000000e+00> : vector<8x256xf32>
    %210 = tpu.matmul %204, %209, %cst_97 {dimension_numbers = #tpu.dot_dimension_numbers<[1], [0], [0], [1], [0, 0, 1, 1], [], []>} : vector<8x64xf32>, vector<64x256xf32>, vector<8x256xf32> -> vector<8x256xf32>
    %c4 = arith.constant 4 : index
    %c0_98 = arith.constant 0 : index
    %c0_99 = arith.constant 0 : index
    %211 = vector.load %arg11[%c4, %c0_98, %c0_99] : memref<8x8x256xf32, #tpu.memory_space<vmem>>, vector<1x8x256xf32>
    %212 = vector.shape_cast %211 : vector<1x8x256xf32> to vector<8x256xf32>
    %213 = arith.addf %212, %206 : vector<8x256xf32>
    %214 = arith.addf %208, %210 : vector<8x256xf32>
    %215 = vector.broadcast %0 : vector<1x256xf32> to vector<8x256xf32>
    %216 = arith.addf %214, %215 : vector<8x256xf32>
    %217 = math.tanh %213 : vector<8x256xf32>
    %218 = vector.extract_strided_slice %217 {offsets = [0, 0], sizes = [8, 64], strides = [1, 1]} : vector<8x256xf32> to vector<8x64xf32>
    %219 = vector.extract_strided_slice %217 {offsets = [0, 64], sizes = [8, 64], strides = [1, 1]} : vector<8x256xf32> to vector<8x64xf32>
    %220 = vector.extract_strided_slice %217 {offsets = [0, 128], sizes = [8, 64], strides = [1, 1]} : vector<8x256xf32> to vector<8x64xf32>
    %221 = vector.extract_strided_slice %217 {offsets = [0, 192], sizes = [8, 64], strides = [1, 1]} : vector<8x256xf32> to vector<8x64xf32>
    %cst_100 = arith.constant 1.000000e+00 : f32
    %222 = vector.broadcast %cst_100 : f32 to vector<8x64xf32>
    %223 = arith.addf %219, %222 : vector<8x64xf32>
    %cst_101 = arith.constant 5.000000e-01 : f32
    %224 = vector.broadcast %cst_101 : f32 to vector<8x64xf32>
    %225 = arith.mulf %224, %223 : vector<8x64xf32>
    %226 = arith.mulf %225, %176 : vector<8x64xf32>
    %cst_102 = arith.constant 1.000000e+00 : f32
    %227 = vector.broadcast %cst_102 : f32 to vector<8x64xf32>
    %228 = arith.addf %218, %227 : vector<8x64xf32>
    %cst_103 = arith.constant 5.000000e-01 : f32
    %229 = vector.broadcast %cst_103 : f32 to vector<8x64xf32>
    %230 = arith.mulf %229, %228 : vector<8x64xf32>
    %231 = arith.mulf %230, %220 : vector<8x64xf32>
    %232 = arith.addf %226, %231 : vector<8x64xf32>
    %cst_104 = arith.constant 1.000000e+00 : f32
    %233 = vector.broadcast %cst_104 : f32 to vector<8x64xf32>
    %234 = arith.addf %221, %233 : vector<8x64xf32>
    %cst_105 = arith.constant 5.000000e-01 : f32
    %235 = vector.broadcast %cst_105 : f32 to vector<8x64xf32>
    %236 = arith.mulf %235, %234 : vector<8x64xf32>
    %237 = math.tanh %232 : vector<8x64xf32>
    %238 = arith.mulf %236, %237 : vector<8x64xf32>
    %239 = math.tanh %216 : vector<8x256xf32>
    %240 = vector.extract_strided_slice %239 {offsets = [0, 0], sizes = [8, 64], strides = [1, 1]} : vector<8x256xf32> to vector<8x64xf32>
    %241 = vector.extract_strided_slice %239 {offsets = [0, 64], sizes = [8, 64], strides = [1, 1]} : vector<8x256xf32> to vector<8x64xf32>
    %242 = vector.extract_strided_slice %239 {offsets = [0, 128], sizes = [8, 64], strides = [1, 1]} : vector<8x256xf32> to vector<8x64xf32>
    %243 = vector.extract_strided_slice %239 {offsets = [0, 192], sizes = [8, 64], strides = [1, 1]} : vector<8x256xf32> to vector<8x64xf32>
    %cst_106 = arith.constant 1.000000e+00 : f32
    %244 = vector.broadcast %cst_106 : f32 to vector<8x64xf32>
    %245 = arith.addf %241, %244 : vector<8x64xf32>
    %cst_107 = arith.constant 5.000000e-01 : f32
    %246 = vector.broadcast %cst_107 : f32 to vector<8x64xf32>
    %247 = arith.mulf %246, %245 : vector<8x64xf32>
    %248 = arith.mulf %247, %198 : vector<8x64xf32>
    %cst_108 = arith.constant 1.000000e+00 : f32
    %249 = vector.broadcast %cst_108 : f32 to vector<8x64xf32>
    %250 = arith.addf %240, %249 : vector<8x64xf32>
    %cst_109 = arith.constant 5.000000e-01 : f32
    %251 = vector.broadcast %cst_109 : f32 to vector<8x64xf32>
    %252 = arith.mulf %251, %250 : vector<8x64xf32>
    %253 = arith.mulf %252, %242 : vector<8x64xf32>
    %254 = arith.addf %248, %253 : vector<8x64xf32>
    %cst_110 = arith.constant 1.000000e+00 : f32
    %255 = vector.broadcast %cst_110 : f32 to vector<8x64xf32>
    %256 = arith.addf %243, %255 : vector<8x64xf32>
    %cst_111 = arith.constant 5.000000e-01 : f32
    %257 = vector.broadcast %cst_111 : f32 to vector<8x64xf32>
    %258 = arith.mulf %257, %256 : vector<8x64xf32>
    %259 = math.tanh %254 : vector<8x64xf32>
    %260 = arith.mulf %258, %259 : vector<8x64xf32>
    %c0_112 = arith.constant 0 : index
    %c0_113 = arith.constant 0 : index
    %261 = vector.load %arg4[%c0_112, %c0_113] : memref<64x256xf32, #tpu.memory_space<vmem>>, vector<64x256xf32>
    %cst_114 = arith.constant dense<0.000000e+00> : vector<8x256xf32>
    %262 = tpu.matmul %238, %261, %cst_114 {dimension_numbers = #tpu.dot_dimension_numbers<[1], [0], [0], [1], [0, 0, 1, 1], [], []>} : vector<8x64xf32>, vector<64x256xf32>, vector<8x256xf32> -> vector<8x256xf32>
    %c0_115 = arith.constant 0 : index
    %c0_116 = arith.constant 0 : index
    %263 = vector.load %arg5[%c0_115, %c0_116] : memref<64x256xf32, #tpu.memory_space<vmem>>, vector<64x256xf32>
    %cst_117 = arith.constant dense<0.000000e+00> : vector<8x256xf32>
    %264 = tpu.matmul %238, %263, %cst_117 {dimension_numbers = #tpu.dot_dimension_numbers<[1], [0], [0], [1], [0, 0, 1, 1], [], []>} : vector<8x64xf32>, vector<64x256xf32>, vector<8x256xf32> -> vector<8x256xf32>
    %c0_118 = arith.constant 0 : index
    %c0_119 = arith.constant 0 : index
    %265 = vector.load %arg6[%c0_118, %c0_119] : memref<64x256xf32, #tpu.memory_space<vmem>>, vector<64x256xf32>
    %cst_120 = arith.constant dense<0.000000e+00> : vector<8x256xf32>
    %266 = tpu.matmul %260, %265, %cst_120 {dimension_numbers = #tpu.dot_dimension_numbers<[1], [0], [0], [1], [0, 0, 1, 1], [], []>} : vector<8x64xf32>, vector<64x256xf32>, vector<8x256xf32> -> vector<8x256xf32>
    %c5 = arith.constant 5 : index
    %c0_121 = arith.constant 0 : index
    %c0_122 = arith.constant 0 : index
    %267 = vector.load %arg11[%c5, %c0_121, %c0_122] : memref<8x8x256xf32, #tpu.memory_space<vmem>>, vector<1x8x256xf32>
    %268 = vector.shape_cast %267 : vector<1x8x256xf32> to vector<8x256xf32>
    %269 = arith.addf %268, %262 : vector<8x256xf32>
    %270 = arith.addf %264, %266 : vector<8x256xf32>
    %271 = vector.broadcast %0 : vector<1x256xf32> to vector<8x256xf32>
    %272 = arith.addf %270, %271 : vector<8x256xf32>
    %273 = math.tanh %269 : vector<8x256xf32>
    %274 = vector.extract_strided_slice %273 {offsets = [0, 0], sizes = [8, 64], strides = [1, 1]} : vector<8x256xf32> to vector<8x64xf32>
    %275 = vector.extract_strided_slice %273 {offsets = [0, 64], sizes = [8, 64], strides = [1, 1]} : vector<8x256xf32> to vector<8x64xf32>
    %276 = vector.extract_strided_slice %273 {offsets = [0, 128], sizes = [8, 64], strides = [1, 1]} : vector<8x256xf32> to vector<8x64xf32>
    %277 = vector.extract_strided_slice %273 {offsets = [0, 192], sizes = [8, 64], strides = [1, 1]} : vector<8x256xf32> to vector<8x64xf32>
    %cst_123 = arith.constant 1.000000e+00 : f32
    %278 = vector.broadcast %cst_123 : f32 to vector<8x64xf32>
    %279 = arith.addf %275, %278 : vector<8x64xf32>
    %cst_124 = arith.constant 5.000000e-01 : f32
    %280 = vector.broadcast %cst_124 : f32 to vector<8x64xf32>
    %281 = arith.mulf %280, %279 : vector<8x64xf32>
    %282 = arith.mulf %281, %232 : vector<8x64xf32>
    %cst_125 = arith.constant 1.000000e+00 : f32
    %283 = vector.broadcast %cst_125 : f32 to vector<8x64xf32>
    %284 = arith.addf %274, %283 : vector<8x64xf32>
    %cst_126 = arith.constant 5.000000e-01 : f32
    %285 = vector.broadcast %cst_126 : f32 to vector<8x64xf32>
    %286 = arith.mulf %285, %284 : vector<8x64xf32>
    %287 = arith.mulf %286, %276 : vector<8x64xf32>
    %288 = arith.addf %282, %287 : vector<8x64xf32>
    %cst_127 = arith.constant 1.000000e+00 : f32
    %289 = vector.broadcast %cst_127 : f32 to vector<8x64xf32>
    %290 = arith.addf %277, %289 : vector<8x64xf32>
    %cst_128 = arith.constant 5.000000e-01 : f32
    %291 = vector.broadcast %cst_128 : f32 to vector<8x64xf32>
    %292 = arith.mulf %291, %290 : vector<8x64xf32>
    %293 = math.tanh %288 : vector<8x64xf32>
    %294 = arith.mulf %292, %293 : vector<8x64xf32>
    %295 = math.tanh %272 : vector<8x256xf32>
    %296 = vector.extract_strided_slice %295 {offsets = [0, 0], sizes = [8, 64], strides = [1, 1]} : vector<8x256xf32> to vector<8x64xf32>
    %297 = vector.extract_strided_slice %295 {offsets = [0, 64], sizes = [8, 64], strides = [1, 1]} : vector<8x256xf32> to vector<8x64xf32>
    %298 = vector.extract_strided_slice %295 {offsets = [0, 128], sizes = [8, 64], strides = [1, 1]} : vector<8x256xf32> to vector<8x64xf32>
    %299 = vector.extract_strided_slice %295 {offsets = [0, 192], sizes = [8, 64], strides = [1, 1]} : vector<8x256xf32> to vector<8x64xf32>
    %cst_129 = arith.constant 1.000000e+00 : f32
    %300 = vector.broadcast %cst_129 : f32 to vector<8x64xf32>
    %301 = arith.addf %297, %300 : vector<8x64xf32>
    %cst_130 = arith.constant 5.000000e-01 : f32
    %302 = vector.broadcast %cst_130 : f32 to vector<8x64xf32>
    %303 = arith.mulf %302, %301 : vector<8x64xf32>
    %304 = arith.mulf %303, %254 : vector<8x64xf32>
    %cst_131 = arith.constant 1.000000e+00 : f32
    %305 = vector.broadcast %cst_131 : f32 to vector<8x64xf32>
    %306 = arith.addf %296, %305 : vector<8x64xf32>
    %cst_132 = arith.constant 5.000000e-01 : f32
    %307 = vector.broadcast %cst_132 : f32 to vector<8x64xf32>
    %308 = arith.mulf %307, %306 : vector<8x64xf32>
    %309 = arith.mulf %308, %298 : vector<8x64xf32>
    %310 = arith.addf %304, %309 : vector<8x64xf32>
    %cst_133 = arith.constant 1.000000e+00 : f32
    %311 = vector.broadcast %cst_133 : f32 to vector<8x64xf32>
    %312 = arith.addf %299, %311 : vector<8x64xf32>
    %cst_134 = arith.constant 5.000000e-01 : f32
    %313 = vector.broadcast %cst_134 : f32 to vector<8x64xf32>
    %314 = arith.mulf %313, %312 : vector<8x64xf32>
    %315 = math.tanh %310 : vector<8x64xf32>
    %316 = arith.mulf %314, %315 : vector<8x64xf32>
    %c0_135 = arith.constant 0 : index
    %c0_136 = arith.constant 0 : index
    %317 = vector.load %arg4[%c0_135, %c0_136] : memref<64x256xf32, #tpu.memory_space<vmem>>, vector<64x256xf32>
    %cst_137 = arith.constant dense<0.000000e+00> : vector<8x256xf32>
    %318 = tpu.matmul %294, %317, %cst_137 {dimension_numbers = #tpu.dot_dimension_numbers<[1], [0], [0], [1], [0, 0, 1, 1], [], []>} : vector<8x64xf32>, vector<64x256xf32>, vector<8x256xf32> -> vector<8x256xf32>
    %c0_138 = arith.constant 0 : index
    %c0_139 = arith.constant 0 : index
    %319 = vector.load %arg5[%c0_138, %c0_139] : memref<64x256xf32, #tpu.memory_space<vmem>>, vector<64x256xf32>
    %cst_140 = arith.constant dense<0.000000e+00> : vector<8x256xf32>
    %320 = tpu.matmul %294, %319, %cst_140 {dimension_numbers = #tpu.dot_dimension_numbers<[1], [0], [0], [1], [0, 0, 1, 1], [], []>} : vector<8x64xf32>, vector<64x256xf32>, vector<8x256xf32> -> vector<8x256xf32>
    %c0_141 = arith.constant 0 : index
    %c0_142 = arith.constant 0 : index
    %321 = vector.load %arg6[%c0_141, %c0_142] : memref<64x256xf32, #tpu.memory_space<vmem>>, vector<64x256xf32>
    %cst_143 = arith.constant dense<0.000000e+00> : vector<8x256xf32>
    %322 = tpu.matmul %316, %321, %cst_143 {dimension_numbers = #tpu.dot_dimension_numbers<[1], [0], [0], [1], [0, 0, 1, 1], [], []>} : vector<8x64xf32>, vector<64x256xf32>, vector<8x256xf32> -> vector<8x256xf32>
    %c6 = arith.constant 6 : index
    %c0_144 = arith.constant 0 : index
    %c0_145 = arith.constant 0 : index
    %323 = vector.load %arg11[%c6, %c0_144, %c0_145] : memref<8x8x256xf32, #tpu.memory_space<vmem>>, vector<1x8x256xf32>
    %324 = vector.shape_cast %323 : vector<1x8x256xf32> to vector<8x256xf32>
    %325 = arith.addf %324, %318 : vector<8x256xf32>
    %326 = arith.addf %320, %322 : vector<8x256xf32>
    %327 = vector.broadcast %0 : vector<1x256xf32> to vector<8x256xf32>
    %328 = arith.addf %326, %327 : vector<8x256xf32>
    %329 = math.tanh %325 : vector<8x256xf32>
    %330 = vector.extract_strided_slice %329 {offsets = [0, 0], sizes = [8, 64], strides = [1, 1]} : vector<8x256xf32> to vector<8x64xf32>
    %331 = vector.extract_strided_slice %329 {offsets = [0, 64], sizes = [8, 64], strides = [1, 1]} : vector<8x256xf32> to vector<8x64xf32>
    %332 = vector.extract_strided_slice %329 {offsets = [0, 128], sizes = [8, 64], strides = [1, 1]} : vector<8x256xf32> to vector<8x64xf32>
    %333 = vector.extract_strided_slice %329 {offsets = [0, 192], sizes = [8, 64], strides = [1, 1]} : vector<8x256xf32> to vector<8x64xf32>
    %cst_146 = arith.constant 1.000000e+00 : f32
    %334 = vector.broadcast %cst_146 : f32 to vector<8x64xf32>
    %335 = arith.addf %331, %334 : vector<8x64xf32>
    %cst_147 = arith.constant 5.000000e-01 : f32
    %336 = vector.broadcast %cst_147 : f32 to vector<8x64xf32>
    %337 = arith.mulf %336, %335 : vector<8x64xf32>
    %338 = arith.mulf %337, %288 : vector<8x64xf32>
    %cst_148 = arith.constant 1.000000e+00 : f32
    %339 = vector.broadcast %cst_148 : f32 to vector<8x64xf32>
    %340 = arith.addf %330, %339 : vector<8x64xf32>
    %cst_149 = arith.constant 5.000000e-01 : f32
    %341 = vector.broadcast %cst_149 : f32 to vector<8x64xf32>
    %342 = arith.mulf %341, %340 : vector<8x64xf32>
    %343 = arith.mulf %342, %332 : vector<8x64xf32>
    %344 = arith.addf %338, %343 : vector<8x64xf32>
    %cst_150 = arith.constant 1.000000e+00 : f32
    %345 = vector.broadcast %cst_150 : f32 to vector<8x64xf32>
    %346 = arith.addf %333, %345 : vector<8x64xf32>
    %cst_151 = arith.constant 5.000000e-01 : f32
    %347 = vector.broadcast %cst_151 : f32 to vector<8x64xf32>
    %348 = arith.mulf %347, %346 : vector<8x64xf32>
    %349 = math.tanh %344 : vector<8x64xf32>
    %350 = arith.mulf %348, %349 : vector<8x64xf32>
    %351 = math.tanh %328 : vector<8x256xf32>
    %352 = vector.extract_strided_slice %351 {offsets = [0, 0], sizes = [8, 64], strides = [1, 1]} : vector<8x256xf32> to vector<8x64xf32>
    %353 = vector.extract_strided_slice %351 {offsets = [0, 64], sizes = [8, 64], strides = [1, 1]} : vector<8x256xf32> to vector<8x64xf32>
    %354 = vector.extract_strided_slice %351 {offsets = [0, 128], sizes = [8, 64], strides = [1, 1]} : vector<8x256xf32> to vector<8x64xf32>
    %355 = vector.extract_strided_slice %351 {offsets = [0, 192], sizes = [8, 64], strides = [1, 1]} : vector<8x256xf32> to vector<8x64xf32>
    %cst_152 = arith.constant 1.000000e+00 : f32
    %356 = vector.broadcast %cst_152 : f32 to vector<8x64xf32>
    %357 = arith.addf %353, %356 : vector<8x64xf32>
    %cst_153 = arith.constant 5.000000e-01 : f32
    %358 = vector.broadcast %cst_153 : f32 to vector<8x64xf32>
    %359 = arith.mulf %358, %357 : vector<8x64xf32>
    %360 = arith.mulf %359, %310 : vector<8x64xf32>
    %cst_154 = arith.constant 1.000000e+00 : f32
    %361 = vector.broadcast %cst_154 : f32 to vector<8x64xf32>
    %362 = arith.addf %352, %361 : vector<8x64xf32>
    %cst_155 = arith.constant 5.000000e-01 : f32
    %363 = vector.broadcast %cst_155 : f32 to vector<8x64xf32>
    %364 = arith.mulf %363, %362 : vector<8x64xf32>
    %365 = arith.mulf %364, %354 : vector<8x64xf32>
    %366 = arith.addf %360, %365 : vector<8x64xf32>
    %cst_156 = arith.constant 1.000000e+00 : f32
    %367 = vector.broadcast %cst_156 : f32 to vector<8x64xf32>
    %368 = arith.addf %355, %367 : vector<8x64xf32>
    %cst_157 = arith.constant 5.000000e-01 : f32
    %369 = vector.broadcast %cst_157 : f32 to vector<8x64xf32>
    %370 = arith.mulf %369, %368 : vector<8x64xf32>
    %371 = math.tanh %366 : vector<8x64xf32>
    %372 = arith.mulf %370, %371 : vector<8x64xf32>
    %c0_158 = arith.constant 0 : index
    %c0_159 = arith.constant 0 : index
    %373 = vector.load %arg4[%c0_158, %c0_159] : memref<64x256xf32, #tpu.memory_space<vmem>>, vector<64x256xf32>
    %cst_160 = arith.constant dense<0.000000e+00> : vector<8x256xf32>
    %374 = tpu.matmul %350, %373, %cst_160 {dimension_numbers = #tpu.dot_dimension_numbers<[1], [0], [0], [1], [0, 0, 1, 1], [], []>} : vector<8x64xf32>, vector<64x256xf32>, vector<8x256xf32> -> vector<8x256xf32>
    %c0_161 = arith.constant 0 : index
    %c0_162 = arith.constant 0 : index
    %375 = vector.load %arg5[%c0_161, %c0_162] : memref<64x256xf32, #tpu.memory_space<vmem>>, vector<64x256xf32>
    %cst_163 = arith.constant dense<0.000000e+00> : vector<8x256xf32>
    %376 = tpu.matmul %350, %375, %cst_163 {dimension_numbers = #tpu.dot_dimension_numbers<[1], [0], [0], [1], [0, 0, 1, 1], [], []>} : vector<8x64xf32>, vector<64x256xf32>, vector<8x256xf32> -> vector<8x256xf32>
    %c0_164 = arith.constant 0 : index
    %c0_165 = arith.constant 0 : index
    %377 = vector.load %arg6[%c0_164, %c0_165] : memref<64x256xf32, #tpu.memory_space<vmem>>, vector<64x256xf32>
    %cst_166 = arith.constant dense<0.000000e+00> : vector<8x256xf32>
    %378 = tpu.matmul %372, %377, %cst_166 {dimension_numbers = #tpu.dot_dimension_numbers<[1], [0], [0], [1], [0, 0, 1, 1], [], []>} : vector<8x64xf32>, vector<64x256xf32>, vector<8x256xf32> -> vector<8x256xf32>
    %c7 = arith.constant 7 : index
    %c0_167 = arith.constant 0 : index
    %c0_168 = arith.constant 0 : index
    %379 = vector.load %arg11[%c7, %c0_167, %c0_168] : memref<8x8x256xf32, #tpu.memory_space<vmem>>, vector<1x8x256xf32>
    %380 = vector.shape_cast %379 : vector<1x8x256xf32> to vector<8x256xf32>
    %381 = arith.addf %380, %374 : vector<8x256xf32>
    %382 = arith.addf %376, %378 : vector<8x256xf32>
    %383 = vector.broadcast %0 : vector<1x256xf32> to vector<8x256xf32>
    %384 = arith.addf %382, %383 : vector<8x256xf32>
    %385 = math.tanh %381 : vector<8x256xf32>
    %386 = vector.extract_strided_slice %385 {offsets = [0, 0], sizes = [8, 64], strides = [1, 1]} : vector<8x256xf32> to vector<8x64xf32>
    %387 = vector.extract_strided_slice %385 {offsets = [0, 64], sizes = [8, 64], strides = [1, 1]} : vector<8x256xf32> to vector<8x64xf32>
    %388 = vector.extract_strided_slice %385 {offsets = [0, 128], sizes = [8, 64], strides = [1, 1]} : vector<8x256xf32> to vector<8x64xf32>
    %389 = vector.extract_strided_slice %385 {offsets = [0, 192], sizes = [8, 64], strides = [1, 1]} : vector<8x256xf32> to vector<8x64xf32>
    %cst_169 = arith.constant 1.000000e+00 : f32
    %390 = vector.broadcast %cst_169 : f32 to vector<8x64xf32>
    %391 = arith.addf %387, %390 : vector<8x64xf32>
    %cst_170 = arith.constant 5.000000e-01 : f32
    %392 = vector.broadcast %cst_170 : f32 to vector<8x64xf32>
    %393 = arith.mulf %392, %391 : vector<8x64xf32>
    %394 = arith.mulf %393, %344 : vector<8x64xf32>
    %cst_171 = arith.constant 1.000000e+00 : f32
    %395 = vector.broadcast %cst_171 : f32 to vector<8x64xf32>
    %396 = arith.addf %386, %395 : vector<8x64xf32>
    %cst_172 = arith.constant 5.000000e-01 : f32
    %397 = vector.broadcast %cst_172 : f32 to vector<8x64xf32>
    %398 = arith.mulf %397, %396 : vector<8x64xf32>
    %399 = arith.mulf %398, %388 : vector<8x64xf32>
    %400 = arith.addf %394, %399 : vector<8x64xf32>
    %cst_173 = arith.constant 1.000000e+00 : f32
    %401 = vector.broadcast %cst_173 : f32 to vector<8x64xf32>
    %402 = arith.addf %389, %401 : vector<8x64xf32>
    %cst_174 = arith.constant 5.000000e-01 : f32
    %403 = vector.broadcast %cst_174 : f32 to vector<8x64xf32>
    %404 = arith.mulf %403, %402 : vector<8x64xf32>
    %405 = math.tanh %400 : vector<8x64xf32>
    %406 = arith.mulf %404, %405 : vector<8x64xf32>
    %407 = math.tanh %384 : vector<8x256xf32>
    %408 = vector.extract_strided_slice %407 {offsets = [0, 0], sizes = [8, 64], strides = [1, 1]} : vector<8x256xf32> to vector<8x64xf32>
    %409 = vector.extract_strided_slice %407 {offsets = [0, 64], sizes = [8, 64], strides = [1, 1]} : vector<8x256xf32> to vector<8x64xf32>
    %410 = vector.extract_strided_slice %407 {offsets = [0, 128], sizes = [8, 64], strides = [1, 1]} : vector<8x256xf32> to vector<8x64xf32>
    %411 = vector.extract_strided_slice %407 {offsets = [0, 192], sizes = [8, 64], strides = [1, 1]} : vector<8x256xf32> to vector<8x64xf32>
    %cst_175 = arith.constant 1.000000e+00 : f32
    %412 = vector.broadcast %cst_175 : f32 to vector<8x64xf32>
    %413 = arith.addf %409, %412 : vector<8x64xf32>
    %cst_176 = arith.constant 5.000000e-01 : f32
    %414 = vector.broadcast %cst_176 : f32 to vector<8x64xf32>
    %415 = arith.mulf %414, %413 : vector<8x64xf32>
    %416 = arith.mulf %415, %366 : vector<8x64xf32>
    %cst_177 = arith.constant 1.000000e+00 : f32
    %417 = vector.broadcast %cst_177 : f32 to vector<8x64xf32>
    %418 = arith.addf %408, %417 : vector<8x64xf32>
    %cst_178 = arith.constant 5.000000e-01 : f32
    %419 = vector.broadcast %cst_178 : f32 to vector<8x64xf32>
    %420 = arith.mulf %419, %418 : vector<8x64xf32>
    %421 = arith.mulf %420, %410 : vector<8x64xf32>
    %422 = arith.addf %416, %421 : vector<8x64xf32>
    %cst_179 = arith.constant 1.000000e+00 : f32
    %423 = vector.broadcast %cst_179 : f32 to vector<8x64xf32>
    %424 = arith.addf %411, %423 : vector<8x64xf32>
    %cst_180 = arith.constant 5.000000e-01 : f32
    %425 = vector.broadcast %cst_180 : f32 to vector<8x64xf32>
    %426 = arith.mulf %425, %424 : vector<8x64xf32>
    %427 = math.tanh %422 : vector<8x64xf32>
    %428 = arith.mulf %426, %427 : vector<8x64xf32>
    %c0_181 = arith.constant 0 : index
    %c0_182 = arith.constant 0 : index
    %429 = vector.load %arg5[%c0_181, %c0_182] : memref<64x256xf32, #tpu.memory_space<vmem>>, vector<64x256xf32>
    %cst_183 = arith.constant dense<0.000000e+00> : vector<8x256xf32>
    %430 = tpu.matmul %406, %429, %cst_183 {dimension_numbers = #tpu.dot_dimension_numbers<[1], [0], [0], [1], [0, 0, 1, 1], [], []>} : vector<8x64xf32>, vector<64x256xf32>, vector<8x256xf32> -> vector<8x256xf32>
    %c0_184 = arith.constant 0 : index
    %c0_185 = arith.constant 0 : index
    %431 = vector.load %arg6[%c0_184, %c0_185] : memref<64x256xf32, #tpu.memory_space<vmem>>, vector<64x256xf32>
    %cst_186 = arith.constant dense<0.000000e+00> : vector<8x256xf32>
    %432 = tpu.matmul %428, %431, %cst_186 {dimension_numbers = #tpu.dot_dimension_numbers<[1], [0], [0], [1], [0, 0, 1, 1], [], []>} : vector<8x64xf32>, vector<64x256xf32>, vector<8x256xf32> -> vector<8x256xf32>
    %433 = arith.addf %430, %432 : vector<8x256xf32>
    %434 = vector.broadcast %0 : vector<1x256xf32> to vector<8x256xf32>
    %435 = arith.addf %433, %434 : vector<8x256xf32>
    %436 = math.tanh %435 : vector<8x256xf32>
    %437 = vector.extract_strided_slice %436 {offsets = [0, 0], sizes = [8, 64], strides = [1, 1]} : vector<8x256xf32> to vector<8x64xf32>
    %438 = vector.extract_strided_slice %436 {offsets = [0, 64], sizes = [8, 64], strides = [1, 1]} : vector<8x256xf32> to vector<8x64xf32>
    %439 = vector.extract_strided_slice %436 {offsets = [0, 128], sizes = [8, 64], strides = [1, 1]} : vector<8x256xf32> to vector<8x64xf32>
    %440 = vector.extract_strided_slice %436 {offsets = [0, 192], sizes = [8, 64], strides = [1, 1]} : vector<8x256xf32> to vector<8x64xf32>
    %cst_187 = arith.constant 1.000000e+00 : f32
    %441 = vector.broadcast %cst_187 : f32 to vector<8x64xf32>
    %442 = arith.addf %438, %441 : vector<8x64xf32>
    %cst_188 = arith.constant 5.000000e-01 : f32
    %443 = vector.broadcast %cst_188 : f32 to vector<8x64xf32>
    %444 = arith.mulf %443, %442 : vector<8x64xf32>
    %445 = arith.mulf %444, %422 : vector<8x64xf32>
    %cst_189 = arith.constant 1.000000e+00 : f32
    %446 = vector.broadcast %cst_189 : f32 to vector<8x64xf32>
    %447 = arith.addf %437, %446 : vector<8x64xf32>
    %cst_190 = arith.constant 5.000000e-01 : f32
    %448 = vector.broadcast %cst_190 : f32 to vector<8x64xf32>
    %449 = arith.mulf %448, %447 : vector<8x64xf32>
    %450 = arith.mulf %449, %439 : vector<8x64xf32>
    %451 = arith.addf %445, %450 : vector<8x64xf32>
    %cst_191 = arith.constant 1.000000e+00 : f32
    %452 = vector.broadcast %cst_191 : f32 to vector<8x64xf32>
    %453 = arith.addf %440, %452 : vector<8x64xf32>
    %cst_192 = arith.constant 5.000000e-01 : f32
    %454 = vector.broadcast %cst_192 : f32 to vector<8x64xf32>
    %455 = arith.mulf %454, %453 : vector<8x64xf32>
    %456 = math.tanh %451 : vector<8x64xf32>
    %457 = arith.mulf %455, %456 : vector<8x64xf32>
    %c0_193 = arith.constant 0 : index
    %c0_194 = arith.constant 0 : index
    %458 = vector.load %arg8[%c0_193, %c0_194] : memref<64x128xf32, #tpu.memory_space<vmem>>, vector<64x128xf32>
    %cst_195 = arith.constant dense<0.000000e+00> : vector<8x128xf32>
    %459 = tpu.matmul %457, %458, %cst_195 {dimension_numbers = #tpu.dot_dimension_numbers<[1], [0], [0], [1], [0, 0, 1, 1], [], []>} : vector<8x64xf32>, vector<64x128xf32>, vector<8x128xf32> -> vector<8x128xf32>
    %c0_196 = arith.constant 0 : index
    %c0_197 = arith.constant 0 : index
    %460 = vector.load %arg9[%c0_196, %c0_197] : memref<1x128xf32, #tpu.memory_space<vmem>>, vector<1x128xf32>
    %461 = vector.broadcast %460 : vector<1x128xf32> to vector<8x128xf32>
    %462 = arith.addf %459, %461 : vector<8x128xf32>
    %c0_198 = arith.constant 0 : index
    %c0_199 = arith.constant 0 : index
    %463 = vector.load %arg10[%c0_198, %c0_199] : memref<8x128xf32, #tpu.memory_space<vmem>>, vector<8x128xf32>
    tpu.vector_store %arg10[%c0_198, %c0_199], %462 {strides = array<i32>} : memref<8x128xf32, #tpu.memory_space<vmem>>, vector<8x128xf32>,
    return
  }
  func.func @transform_0(%arg0: i32) -> (i32, i32, i32) {
    %c0_i32 = arith.constant 0 : i32
    %c0_i32_0 = arith.constant 0 : i32
    %c0_i32_1 = arith.constant 0 : i32
    return %c0_i32, %arg0, %c0_i32_0 : i32, i32, i32
  }
  func.func @transform_1(%arg0: i32) -> (i32, i32) {
    %c0_i32 = arith.constant 0 : i32
    %c0_i32_0 = arith.constant 0 : i32
    %c0_i32_1 = arith.constant 0 : i32
    return %c0_i32, %c0_i32_0 : i32, i32
  }
  func.func @transform_2(%arg0: i32) -> (i32, i32) {
    %c0_i32 = arith.constant 0 : i32
    %c0_i32_0 = arith.constant 0 : i32
    %c0_i32_1 = arith.constant 0 : i32
    return %c0_i32, %c0_i32_0 : i32, i32
  }
  func.func @transform_3(%arg0: i32) -> (i32, i32) {
    %c0_i32 = arith.constant 0 : i32
    %c0_i32_0 = arith.constant 0 : i32
    %c0_i32_1 = arith.constant 0 : i32
    return %c0_i32, %c0_i32_0 : i32, i32
  }
  func.func @transform_4(%arg0: i32) -> (i32, i32) {
    %c0_i32 = arith.constant 0 : i32
    %c0_i32_0 = arith.constant 0 : i32
    %c0_i32_1 = arith.constant 0 : i32
    return %c0_i32, %c0_i32_0 : i32, i32
  }
  func.func @transform_5(%arg0: i32) -> (i32, i32) {
    %c0_i32 = arith.constant 0 : i32
    %c0_i32_0 = arith.constant 0 : i32
    %c0_i32_1 = arith.constant 0 : i32
    return %c0_i32, %c0_i32_0 : i32, i32
  }
  func.func @transform_6(%arg0: i32) -> (i32, i32) {
    %c0_i32 = arith.constant 0 : i32
    %c0_i32_0 = arith.constant 0 : i32
    %c0_i32_1 = arith.constant 0 : i32
    return %c0_i32, %c0_i32_0 : i32, i32
  }
  func.func @transform_7(%arg0: i32) -> (i32, i32) {
    %c0_i32 = arith.constant 0 : i32
    %c0_i32_0 = arith.constant 0 : i32
    %c0_i32_1 = arith.constant 0 : i32
    return %c0_i32, %c0_i32_0 : i32, i32
  }
  func.func @transform_8(%arg0: i32) -> (i32, i32) {
    %c0_i32 = arith.constant 0 : i32
    %c0_i32_0 = arith.constant 0 : i32
    %c0_i32_1 = arith.constant 0 : i32
    return %c0_i32, %c0_i32_0 : i32, i32
  }
  func.func @transform_9(%arg0: i32) -> (i32, i32) {
    %c0_i32 = arith.constant 0 : i32
    %c0_i32_0 = arith.constant 0 : i32
    return %arg0, %c0_i32 : i32, i32
  }
}

</mosaic_0001>

<llo_original>
// kernel: lstm_forward.1
$region0: #{lstm_forward.1}
  #allocation0 [shape = 'u32[]', space=smem, size = 0x4, offset = 0x4, fixed_abs, tag = 'smem constant byte address 0x4 - core index']
  #allocation1 [shape = 'u32[144,128]{1,0:T(1,128)}', space=vmem, size = 0x12000, scoped, tag = 'internal scratch']
  #allocation2 [shape = 'f32[8,8,256]{2,1,0:T(8,128)}', space=vmem, size = 0x10000, scoped, tag = 'scratch operand']
  %s0 = inlined_call_operand.vmem [shape: f32[8,8,1], index: 0, kind: input, shape index: {}]
  %s1 = inlined_call_operand.vmem [shape: f32[1,256], index: 1, kind: input, shape index: {}]
  %s2 = inlined_call_operand.vmem [shape: f32[1,256], index: 2, kind: input, shape index: {}]
  %s3 = inlined_call_operand.hbm [shape: f32[64,256], index: 3, kind: input, shape index: {}]
  %s4 = inlined_call_operand.vmem [shape: f32[64,256], index: 4, kind: input, shape index: {}]
  %s5 = inlined_call_operand.hbm [shape: f32[64,256], index: 5, kind: input, shape index: {}]
  %s6 = inlined_call_operand.hbm [shape: f32[1,256], index: 6, kind: input, shape index: {}]
  %s7 = inlined_call_operand.hbm [shape: f32[64,128], index: 7, kind: input, shape index: {}]
  %s8 = inlined_call_operand.vmem [shape: f32[1,128], index: 8, kind: input, shape index: {}]
  %s9 = inlined_call_operand.vmem [shape: f32[8,128], index: 9, kind: output, shape index: {}]
  %s10 = sld [smem:[#allocation0]]
  $region62: #{lstm_forward.1} parent=0
    _
  %s12 = ssub.s32 1, %s10
  %s13 = scalar_select 0, %s12, %s10
  $region1: #{lstm_forward.1} parent=0
    #allocation3 [shape = 'u8[65536]{0}', space=vmem, size = 0x10000, scoped, tag = 'input window, operand 3, single buffered']
    #allocation4 [shape = 's32[1]{0}', space=sflag, size = 0x4, scoped, tag = 'scoped memory for lstm_forward.1']
    #allocation5 [shape = 'u8[65536]{0}', space=vmem, size = 0x10000, scoped, tag = 'input window, operand 5, single buffered']
    #allocation6 [shape = 's32[1]{0}', space=sflag, size = 0x4, scoped, tag = 'scoped memory for lstm_forward.1']
    #allocation7 [shape = 'u8[1024]{0}', space=vmem, size = 0x400, scoped, tag = 'input window, operand 6, single buffered']
    #allocation8 [shape = 'u8[32768]{0}', space=vmem, size = 0x8000, scoped, tag = 'input window, operand 7, single buffered']
    #allocation9 [shape = 's32[1]{0}', space=sflag, size = 0x4, scoped, tag = 'scoped memory for lstm_forward.1']
    %14 = vsyncpa [#allocation4], 0
    %15 = vsyncpa [#allocation6], 0
    %16 = vsyncpa [#allocation9], 0
    // Predicated region
    $region2: #{lstm_forward.1} parent=1 // pred_check
      _
    $region3: #{lstm_forward.1} parent=1 // pred_check_branch
      %18 = sbr.rel (0) target = $region5
    $region4: #{lstm_forward.1} parent=1 // pred_region
      _
    $region5: #{lstm_forward.1} parent=1 // pred_fallthru
      _
    // Predicated region
    $region6: #{lstm_forward.1} parent=1 // pred_check
      _
    $region7: #{lstm_forward.1} parent=1 // pred_check_branch
      %20 = sbr.rel (0) target = $region9
    $region8: #{lstm_forward.1} parent=1 // pred_region
      _
    $region9: #{lstm_forward.1} parent=1 // pred_fallthru
      _
    // Predicated region
    $region10: #{lstm_forward.1} parent=1 // pred_check
      _
    $region11: #{lstm_forward.1} parent=1 // pred_check_branch
      %22 = sbr.rel (0) target = $region13
    $region12: #{lstm_forward.1} parent=1 // pred_region
      _
    $region13: #{lstm_forward.1} parent=1 // pred_fallthru
      _
    // Predicated region
    $region14: #{lstm_forward.1} parent=1 // pred_check
      _
    $region15: #{lstm_forward.1} parent=1 // pred_check_branch
      %24 = sbr.rel (0) target = $region17
    $region16: #{lstm_forward.1} parent=1 // pred_region
      %s26 = ssub.s32 2048, 2048
      %27 = vsyncadd [#allocation4], %s26
      %s28 = sshll.u32 [#allocation3], 4
      %s29 = int_to_ptr.vmem [resolvable:$true] %s28
      %34 = dma.hbm_to_vmem [thread:$0]  %s3, 2048, %s29, [#allocation4], 256, 256, 16
    $region17: #{lstm_forward.1} parent=1 // pred_fallthru
      _
    // Predicated region
    $region18: #{lstm_forward.1} parent=1 // pred_check
      _
    $region19: #{lstm_forward.1} parent=1 // pred_check_branch
      %36 = sbr.rel (0) target = $region21
    $region20: #{lstm_forward.1} parent=1 // pred_region
      _
    $region21: #{lstm_forward.1} parent=1 // pred_fallthru
      _
    // Predicated region
    $region22: #{lstm_forward.1} parent=1 // pred_check
      _
    $region23: #{lstm_forward.1} parent=1 // pred_check_branch
      %38 = sbr.rel (0) target = $region25
    $region24: #{lstm_forward.1} parent=1 // pred_region
      %s40 = ssub.s32 2048, 2048
      %41 = vsyncadd [#allocation6], %s40
      %s42 = sshll.u32 [#allocation5], 4
      %s43 = int_to_ptr.vmem [resolvable:$true] %s42
      %48 = dma.hbm_to_vmem [thread:$0]  %s5, 2048, %s43, [#allocation6], 256, 256, 16
    $region25: #{lstm_forward.1} parent=1 // pred_fallthru
      _
    // Predicated region
    $region26: #{lstm_forward.1} parent=1 // pred_check
      _
    $region27: #{lstm_forward.1} parent=1 // pred_check_branch
      %50 = sbr.rel (0) target = $region29
    $region28: #{lstm_forward.1} parent=1 // pred_region
      %s52 = ssub.s32 32, 32
      %53 = vsyncadd [#allocation6], %s52
      %s55 = sshll.u32 [#allocation7], 4
      %s56 = int_to_ptr.vmem [resolvable:$true] %s55
      %58 = dma.hbm_to_vmem [thread:$0]  %s6, 32, %s56, [#allocation6]
    $region29: #{lstm_forward.1} parent=1 // pred_fallthru
      _
    // Predicated region
    $region30: #{lstm_forward.1} parent=1 // pred_check
      _
    $region31: #{lstm_forward.1} parent=1 // pred_check_branch
      %60 = sbr.rel (0) target = $region33
    $region32: #{lstm_forward.1} parent=1 // pred_region
      %s62 = ssub.s32 1024, 1024
      %63 = vsyncadd [#allocation9], %s62
      %s64 = sshll.u32 [#allocation8], 4
      %s65 = int_to_ptr.vmem [resolvable:$true] %s64
      %70 = dma.hbm_to_vmem [thread:$0]  %s7, 1024, %s65, [#allocation9], 128, 128, 8
    $region33: #{lstm_forward.1} parent=1 // pred_fallthru
      _
    // Predicated region
    $region34: #{lstm_forward.1} parent=1 // pred_check
      _
    $region35: #{lstm_forward.1} parent=1 // pred_check_branch
      %72 = sbr.rel (0) target = $region37
    $region36: #{lstm_forward.1} parent=1 // pred_region
      _
    $region37: #{lstm_forward.1} parent=1 // pred_fallthru
      _
    // Predicated region
    $region38: #{lstm_forward.1} parent=1 // pred_check
      _
    $region39: #{lstm_forward.1} parent=1 // pred_check_branch
      %74 = sbr.rel (0) target = $region41
    $region40: #{lstm_forward.1} parent=1 // pred_region
      %75 = dma.done [#allocation4], 2048
    $region41: #{lstm_forward.1} parent=1 // pred_fallthru
      _
    // Predicated region
    $region42: #{lstm_forward.1} parent=1 // pred_check
      _
    $region43: #{lstm_forward.1} parent=1 // pred_check_branch
      %77 = sbr.rel (0) target = $region45
    $region44: #{lstm_forward.1} parent=1 // pred_region
      %78 = dma.done [#allocation6], 2048
    $region45: #{lstm_forward.1} parent=1 // pred_fallthru
      _
    // Predicated region
    $region46: #{lstm_forward.1} parent=1 // pred_check
      _
    $region47: #{lstm_forward.1} parent=1 // pred_check_branch
      %80 = sbr.rel (0) target = $region49
    $region48: #{lstm_forward.1} parent=1 // pred_region
      %81 = dma.done [#allocation6], 32
    $region49: #{lstm_forward.1} parent=1 // pred_fallthru
      _
    // Predicated region
    $region50: #{lstm_forward.1} parent=1 // pred_check
      _
    $region51: #{lstm_forward.1} parent=1 // pred_check_branch
      %83 = sbr.rel (0) target = $region53
    $region52: #{lstm_forward.1} parent=1 // pred_region
      %84 = dma.done [#allocation9], 1024
    $region53: #{lstm_forward.1} parent=1 // pred_fallthru
      _
    %v85 = vld [vmem:[#allocation7] sm:$0x3]
    %v86 = vld [vmem:[%s0] sm:$0xff]
    %v87 = vld [vmem:[%s0 + $0x8] sm:$0xff]
    %v88 = vld [vmem:[%s0 + $0x10] sm:$0xff]
    %v89 = vld [vmem:[%s0 + $0x18] sm:$0xff]
    %v90 = vld [vmem:[%s0 + $0x20] sm:$0xff]
    %v91 = vld [vmem:[%s0 + $0x28] sm:$0xff]
    %v92 = vld [vmem:[%s0 + $0x30] sm:$0xff]
    %v93 = vld [vmem:[%s0 + $0x38] sm:$0xff]
    %v94 = vld [vmem:[%s1] sm:$0x3]
    %96 = vset.pattern.permute.xlu0 0
    %97 = vperm.xlu0 %96, %v86
    %v98 = vpop.permute.xlu0 %97
    %101 = vset.pattern.permute.xlu0 0
    %102 = vperm.xlu0 %101, %v87
    %v103 = vpop.permute.xlu0 %102
    %106 = vset.pattern.permute.xlu0 0
    %107 = vperm.xlu0 %106, %v88
    %v108 = vpop.permute.xlu0 %107
    %111 = vset.pattern.permute.xlu0 0
    %112 = vperm.xlu0 %111, %v89
    %v113 = vpop.permute.xlu0 %112
    %116 = vset.pattern.permute.xlu0 0
    %117 = vperm.xlu0 %116, %v90
    %v118 = vpop.permute.xlu0 %117
    %121 = vset.pattern.permute.xlu0 0
    %122 = vperm.xlu0 %121, %v91
    %v123 = vpop.permute.xlu0 %122
    %126 = vset.pattern.permute.xlu0 0
    %127 = vperm.xlu0 %126, %v92
    %v128 = vpop.permute.xlu0 %127
    %131 = vset.pattern.permute.xlu0 0
    %132 = vperm.xlu0 %131, %v93
    %v133 = vpop.permute.xlu0 %132
    %v136 = vlaneseq
    %v137 = vshrl.u32 %v136, 7
    %v138 = vsub.s32 0, %v137
    %v139 = vrot.slane %v94, %v138
    %v140 = vlaneseq
    %v141 = vshrl.u32 %v140, 7
    %v142 = vsub.s32 1, %v141
    %v143 = vrot.slane %v94, %v142
    %v146 = vmul.f32 %v98, %v139
    %v147 = vmul.f32 %v98, %v143
    %v148 = vmul.f32 %v103, %v139
    %v149 = vmul.f32 %v103, %v143
    %v150 = vmul.f32 %v108, %v139
    %v151 = vmul.f32 %v108, %v143
    %v152 = vmul.f32 %v113, %v139
    %v153 = vmul.f32 %v113, %v143
    %v154 = vmul.f32 %v118, %v139
    %v155 = vmul.f32 %v118, %v143
    %v156 = vmul.f32 %v123, %v139
    %v157 = vmul.f32 %v123, %v143
    %v158 = vmul.f32 %v128, %v139
    %v159 = vmul.f32 %v128, %v143
    %v160 = vmul.f32 %v133, %v139
    %v161 = vmul.f32 %v133, %v143
    %v162 = vld [vmem:[%s2] sm:$0x3]
    %v164 = vlaneseq
    %v165 = vshrl.u32 %v164, 7
    %v166 = vsub.s32 0, %v165
    %v167 = vrot.slane %v162, %v166
    %v168 = vlaneseq
    %v169 = vshrl.u32 %v168, 7
    %v170 = vsub.s32 1, %v169
    %v171 = vrot.slane %v162, %v170
    %v174 = vadd.f32 %v146, %v167
    %v175 = vadd.f32 %v147, %v171
    %v176 = vadd.f32 %v148, %v167
    %v177 = vadd.f32 %v149, %v171
    %v178 = vadd.f32 %v150, %v167
    %v179 = vadd.f32 %v151, %v171
    %v180 = vadd.f32 %v152, %v167
    %v181 = vadd.f32 %v153, %v171
    %v182 = vadd.f32 %v154, %v167
    %v183 = vadd.f32 %v155, %v171
    %v184 = vadd.f32 %v156, %v167
    %v185 = vadd.f32 %v157, %v171
    %v186 = vadd.f32 %v158, %v167
    %v187 = vadd.f32 %v159, %v171
    %v188 = vadd.f32 %v160, %v167
    %v189 = vadd.f32 %v161, %v171
    %190 = vst [vmem:[#allocation2] sm:$0xff] %v174
    %191 = vst [vmem:[#allocation2 + $0x8] sm:$0xff] %v175
    %192 = vst [vmem:[#allocation2 + $0x10] sm:$0xff] %v176
    %193 = vst [vmem:[#allocation2 + $0x18] sm:$0xff] %v177
    %194 = vst [vmem:[#allocation2 + $0x20] sm:$0xff] %v178
    %195 = vst [vmem:[#allocation2 + $0x28] sm:$0xff] %v179
    %196 = vst [vmem:[#allocation2 + $0x30] sm:$0xff] %v180
    %197 = vst [vmem:[#allocation2 + $0x38] sm:$0xff] %v181
    %198 = vst [vmem:[#allocation2 + $0x40] sm:$0xff] %v182
    %199 = vst [vmem:[#allocation2 + $0x48] sm:$0xff] %v183
    %200 = vst [vmem:[#allocation2 + $0x50] sm:$0xff] %v184
    %201 = vst [vmem:[#allocation2 + $0x58] sm:$0xff] %v185
    %202 = vst [vmem:[#allocation2 + $0x60] sm:$0xff] %v186
    %203 = vst [vmem:[#allocation2 + $0x68] sm:$0xff] %v187
    %204 = vst [vmem:[#allocation2 + $0x70] sm:$0xff] %v188
    %205 = vst [vmem:[#allocation2 + $0x78] sm:$0xff] %v189
    %v206 = vld [vmem:[#allocation2] sm:$0xff]
    %v207 = vld [vmem:[#allocation2 + $0x8] sm:$0xff]
    %v208 = vtanh.pop %v206
    %v209 = vtanh.pop %v207
    %v210 = vadd.f32 %v208, 1.0
    %v211 = vmul.f32 %v210, 0.5
    %v212 = vmul.f32 %v211, 0.0
    %v213 = vmul.f32 %v211, %v209
    %215 = vrot.lane.b32.xlu0 %v213, 64
    %v216 = vpop.permute.xlu0 %215
    %v218 = vadd.f32 %v212, %v216
    %v219 = vadd.f32 %v209, 1.0
    %v220 = vmul.f32 %v219, 0.5
    %v221 = vtanh.pop %v218
    %v222 = vmul.f32 %v220, %v221
    %v223 = vld [vmem:[#allocation3] sm:$0xff]
    %v224 = vld [vmem:[#allocation3 + $0x8] sm:$0xff]
    %v225 = vld [vmem:[#allocation3 + $0x10] sm:$0xff]
    %v226 = vld [vmem:[#allocation3 + $0x18] sm:$0xff]
    %v227 = vld [vmem:[#allocation3 + $0x20] sm:$0xff]
    %v228 = vld [vmem:[#allocation3 + $0x28] sm:$0xff]
    %v229 = vld [vmem:[#allocation3 + $0x30] sm:$0xff]
    %v230 = vld [vmem:[#allocation3 + $0x38] sm:$0xff]
    %v231 = vld [vmem:[#allocation3 + $0x40] sm:$0xff]
    %v232 = vld [vmem:[#allocation3 + $0x48] sm:$0xff]
    %v233 = vld [vmem:[#allocation3 + $0x50] sm:$0xff]
    %v234 = vld [vmem:[#allocation3 + $0x58] sm:$0xff]
    %v235 = vld [vmem:[#allocation3 + $0x60] sm:$0xff]
    %v236 = vld [vmem:[#allocation3 + $0x68] sm:$0xff]
    %v237 = vld [vmem:[#allocation3 + $0x70] sm:$0xff]
    %v238 = vld [vmem:[#allocation3 + $0x78] sm:$0xff]
    %240 = vrot.lane.b32.xlu0 %v222, 64
    %v241 = vpop.permute.xlu0 %240
    %vm242 = vcmask 523264
    %v243 = vsel %vm242, %v241, 0
    %245 = vmatprep.subr.mxu0 %v224
    %246 = vmatpush1.msra.mxu0 %v223
    %247 = vmatprep.subr.mxu0 %v226
    %248 = vmatpush1.msra.mxu0 %v225
    %249 = vmatprep.subr.mxu0 %v228
    %250 = vmatpush1.msra.mxu0 %v227
    %251 = vmatprep.subr.mxu0 %v230
    %252 = vmatpush1.msra.mxu0 %v229
    %253 = vmatprep.subr.mxu0 %v232
    %254 = vmatpush1.msra.mxu0 %v231
    %255 = vmatprep.subr.mxu0 %v234
    %256 = vmatpush1.msra.mxu0 %v233
    %257 = vmatprep.subr.mxu0 %v236
    %258 = vmatpush1.msra.mxu0 %v235
    %259 = vmatprep.subr.mxu0 %v238
    %260 = vmatpush1.msra.mxu0 %v237
    %261 = vmatprep.subr.mxu0 0.0
    %262 = vmatpush1.msra.mxu0 0.0
    %263 = vmatprep.subr.mxu0 0.0
    %264 = vmatpush1.msra.mxu0 0.0
    %265 = vmatprep.subr.mxu0 0.0
    %266 = vmatpush1.msra.mxu0 0.0
    %267 = vmatprep.subr.mxu0 0.0
    %268 = vmatpush1.msra.mxu0 0.0
    %269 = vmatprep.subr.mxu0 0.0
    %270 = vmatpush1.msra.mxu0 0.0
    %271 = vmatprep.subr.mxu0 0.0
    %272 = vmatpush1.msra.mxu0 0.0
    %273 = vmatprep.subr.mxu0 0.0
    %274 = vmatpush1.msra.mxu0 0.0
    %275 = vmatprep.subr.mxu0 0.0
    %276 = vmatpush1.msra.mxu0 0.0
    %277 = vmatprep.subr.mxu0 0.0
    %278 = vmatpush1.msra.mxu0 0.0
    %279 = vmatprep.subr.mxu0 0.0
    %280 = vmatpush1.msra.mxu0 0.0
    %281 = vmatprep.subr.mxu0 0.0
    %282 = vmatpush1.msra.mxu0 0.0
    %283 = vmatprep.subr.mxu0 0.0
    %284 = vmatpush1.msra.mxu0 0.0
    %285 = vmatprep.subr.mxu0 0.0
    %286 = vmatpush1.msra.mxu0 0.0
    %287 = vmatprep.subr.mxu0 0.0
    %288 = vmatpush1.msra.mxu0 0.0
    %289 = vmatprep.subr.mxu0 0.0
    %290 = vmatpush1.msra.mxu0 0.0
    %291 = vmatprep.subr.mxu0 0.0
    %292 = vmatpush1.msra.mxu0 0.0
    %293 = vmatprep.subr.mxu0 0.0
    %294 = vmatpush1.msra.mxu0 0.0
    %295 = vmatprep.subr.mxu0 0.0
    %296 = vmatpush1.msra.mxu0 0.0
    %297 = vmatprep.subr.mxu0 0.0
    %298 = vmatpush1.msra.mxu0 0.0
    %299 = vmatprep.subr.mxu0 0.0
    %300 = vmatpush1.msra.mxu0 0.0
    %301 = vmatprep.subr.mxu0 0.0
    %302 = vmatpush1.msra.mxu0 0.0
    %303 = vmatprep.subr.mxu0 0.0
    %304 = vmatpush1.msra.mxu0 0.0
    %305 = vmatprep.subr.mxu0 0.0
    %306 = vmatpush1.msra.mxu0 0.0
    %307 = vmatprep.subr.mxu0 0.0
    %308 = vmatpush1.msra.mxu0 0.0
    %309 = vmatprep.mubr.f32.mxu0 0.0
    %310 = vmatmul.mubr.f32.gmra.mrb[0].mxu0 %v243
    %v311 = vpop.f32.mrb[0].mxu0
    %v312 = vadd.f32 0.0, %v311
    %v313 = vpop.f32.mrb[0].mxu0
    %v314 = vadd.f32 0.0, %v313
    %315 = vdwg.mxu0
    %v316 = vld [vmem:[%s4] sm:$0xff]
    %v317 = vld [vmem:[%s4 + $0x8] sm:$0xff]
    %v318 = vld [vmem:[%s4 + $0x10] sm:$0xff]
    %v319 = vld [vmem:[%s4 + $0x18] sm:$0xff]
    %v320 = vld [vmem:[%s4 + $0x20] sm:$0xff]
    %v321 = vld [vmem:[%s4 + $0x28] sm:$0xff]
    %v322 = vld [vmem:[%s4 + $0x30] sm:$0xff]
    %v323 = vld [vmem:[%s4 + $0x38] sm:$0xff]
    %v324 = vld [vmem:[%s4 + $0x40] sm:$0xff]
    %v325 = vld [vmem:[%s4 + $0x48] sm:$0xff]
    %v326 = vld [vmem:[%s4 + $0x50] sm:$0xff]
    %v327 = vld [vmem:[%s4 + $0x58] sm:$0xff]
    %v328 = vld [vmem:[%s4 + $0x60] sm:$0xff]
    %v329 = vld [vmem:[%s4 + $0x68] sm:$0xff]
    %v330 = vld [vmem:[%s4 + $0x70] sm:$0xff]
    %v331 = vld [vmem:[%s4 + $0x78] sm:$0xff]
    %v332 = vld [vmem:[#allocation5] sm:$0xff]
    %v333 = vld [vmem:[#allocation5 + $0x8] sm:$0xff]
    %v334 = vld [vmem:[#allocation5 + $0x10] sm:$0xff]
    %v335 = vld [vmem:[#allocation5 + $0x18] sm:$0xff]
    %v336 = vld [vmem:[#allocation5 + $0x20] sm:$0xff]
    %v337 = vld [vmem:[#allocation5 + $0x28] sm:$0xff]
    %v338 = vld [vmem:[#allocation5 + $0x30] sm:$0xff]
    %v339 = vld [vmem:[#allocation5 + $0x38] sm:$0xff]
    %v340 = vld [vmem:[#allocation5 + $0x40] sm:$0xff]
    %v341 = vld [vmem:[#allocation5 + $0x48] sm:$0xff]
    %v342 = vld [vmem:[#allocation5 + $0x50] sm:$0xff]
    %v343 = vld [vmem:[#allocation5 + $0x58] sm:$0xff]
    %v344 = vld [vmem:[#allocation5 + $0x60] sm:$0xff]
    %v345 = vld [vmem:[#allocation5 + $0x68] sm:$0xff]
    %v346 = vld [vmem:[#allocation5 + $0x70] sm:$0xff]
    %v347 = vld [vmem:[#allocation5 + $0x78] sm:$0xff]
    %v349 = vsel %vm242, 0.0, 0
    %351 = vmatprep.subr.mxu0 %v333
    %352 = vmatpush1.msra.mxu0 %v332
    %353 = vmatprep.subr.mxu0 %v335
    %354 = vmatpush1.msra.mxu0 %v334
    %355 = vmatprep.subr.mxu0 %v337
    %356 = vmatpush1.msra.mxu0 %v336
    %357 = vmatprep.subr.mxu0 %v339
    %358 = vmatpush1.msra.mxu0 %v338
    %359 = vmatprep.subr.mxu0 %v341
    %360 = vmatpush1.msra.mxu0 %v340
    %361 = vmatprep.subr.mxu0 %v343
    %362 = vmatpush1.msra.mxu0 %v342
    %363 = vmatprep.subr.mxu0 %v345
    %364 = vmatpush1.msra.mxu0 %v344
    %365 = vmatprep.subr.mxu0 %v347
    %366 = vmatpush1.msra.mxu0 %v346
    %367 = vmatprep.subr.mxu0 0.0
    %368 = vmatpush1.msra.mxu0 0.0
    %369 = vmatprep.subr.mxu0 0.0
    %370 = vmatpush1.msra.mxu0 0.0
    %371 = vmatprep.subr.mxu0 0.0
    %372 = vmatpush1.msra.mxu0 0.0
    %373 = vmatprep.subr.mxu0 0.0
    %374 = vmatpush1.msra.mxu0 0.0
    %375 = vmatprep.subr.mxu0 0.0
    %376 = vmatpush1.msra.mxu0 0.0
    %377 = vmatprep.subr.mxu0 0.0
    %378 = vmatpush1.msra.mxu0 0.0
    %379 = vmatprep.subr.mxu0 0.0
    %380 = vmatpush1.msra.mxu0 0.0
    %381 = vmatprep.subr.mxu0 0.0
    %382 = vmatpush1.msra.mxu0 0.0
    %383 = vmatprep.subr.mxu0 0.0
    %384 = vmatpush1.msra.mxu0 0.0
    %385 = vmatprep.subr.mxu0 0.0
    %386 = vmatpush1.msra.mxu0 0.0
    %387 = vmatprep.subr.mxu0 0.0
    %388 = vmatpush1.msra.mxu0 0.0
    %389 = vmatprep.subr.mxu0 0.0
    %390 = vmatpush1.msra.mxu0 0.0
    %391 = vmatprep.subr.mxu0 0.0
    %392 = vmatpush1.msra.mxu0 0.0
    %393 = vmatprep.subr.mxu0 0.0
    %394 = vmatpush1.msra.mxu0 0.0
    %395 = vmatprep.subr.mxu0 0.0
    %396 = vmatpush1.msra.mxu0 0.0
    %397 = vmatprep.subr.mxu0 0.0
    %398 = vmatpush1.msra.mxu0 0.0
    %399 = vmatprep.subr.mxu0 0.0
    %400 = vmatpush1.msra.mxu0 0.0
    %401 = vmatprep.subr.mxu0 0.0
    %402 = vmatpush1.msra.mxu0 0.0
    %403 = vmatprep.subr.mxu0 0.0
    %404 = vmatpush1.msra.mxu0 0.0
    %405 = vmatprep.subr.mxu0 0.0
    %406 = vmatpush1.msra.mxu0 0.0
    %407 = vmatprep.subr.mxu0 0.0
    %408 = vmatpush1.msra.mxu0 0.0
    %409 = vmatprep.subr.mxu0 0.0
    %410 = vmatpush1.msra.mxu0 0.0
    %411 = vmatprep.subr.mxu0 0.0
    %412 = vmatpush1.msra.mxu0 0.0
    %413 = vmatprep.subr.mxu0 0.0
    %414 = vmatpush1.msra.mxu0 0.0
    %415 = vmatprep.mubr.f32.mxu0 0.0
    %416 = vmatmul.mubr.f32.gmra.mrb[0].mxu0 %v349
    %v417 = vpop.f32.mrb[0].mxu0
    %v418 = vadd.f32 0.0, %v417
    %v419 = vpop.f32.mrb[0].mxu0
    %v420 = vadd.f32 0.0, %v419
    %421 = vdwg.mxu0
    %s422 = scalar_lea.vmem [#allocation2], 16
    %v423 = vld [vmem:[%s422] sm:$0xff]
    %v424 = vld [vmem:[%s422 + $0x8] sm:$0xff]
    %v425 = vadd.f32 %v423, %v312
    %v426 = vadd.f32 %v424, %v314
    %427 = vmatprep.subr.mxu0 %v317
    %428 = vmatpush1.msra.mxu0 %v316
    %429 = vmatprep.subr.mxu0 %v319
    %430 = vmatpush1.msra.mxu0 %v318
    %431 = vmatprep.subr.mxu0 %v321
    %432 = vmatpush1.msra.mxu0 %v320
    %433 = vmatprep.subr.mxu0 %v323
    %434 = vmatpush1.msra.mxu0 %v322
    %435 = vmatprep.subr.mxu0 %v325
    %436 = vmatpush1.msra.mxu0 %v324
    %437 = vmatprep.subr.mxu0 %v327
    %438 = vmatpush1.msra.mxu0 %v326
    %439 = vmatprep.subr.mxu0 %v329
    %440 = vmatpush1.msra.mxu0 %v328
    %441 = vmatprep.subr.mxu0 %v331
    %442 = vmatpush1.msra.mxu0 %v330
    %443 = vmatprep.subr.mxu0 0.0
    %444 = vmatpush1.msra.mxu0 0.0
    %445 = vmatprep.subr.mxu0 0.0
    %446 = vmatpush1.msra.mxu0 0.0
    %447 = vmatprep.subr.mxu0 0.0
    %448 = vmatpush1.msra.mxu0 0.0
    %449 = vmatprep.subr.mxu0 0.0
    %450 = vmatpush1.msra.mxu0 0.0
    %451 = vmatprep.subr.mxu0 0.0
    %452 = vmatpush1.msra.mxu0 0.0
    %453 = vmatprep.subr.mxu0 0.0
    %454 = vmatpush1.msra.mxu0 0.0
    %455 = vmatprep.subr.mxu0 0.0
    %456 = vmatpush1.msra.mxu0 0.0
    %457 = vmatprep.subr.mxu0 0.0
    %458 = vmatpush1.msra.mxu0 0.0
    %459 = vmatprep.subr.mxu0 0.0
    %460 = vmatpush1.msra.mxu0 0.0
    %461 = vmatprep.subr.mxu0 0.0
    %462 = vmatpush1.msra.mxu0 0.0
    %463 = vmatprep.subr.mxu0 0.0
    %464 = vmatpush1.msra.mxu0 0.0
    %465 = vmatprep.subr.mxu0 0.0
    %466 = vmatpush1.msra.mxu0 0.0
    %467 = vmatprep.subr.mxu0 0.0
    %468 = vmatpush1.msra.mxu0 0.0
    %469 = vmatprep.subr.mxu0 0.0
    %470 = vmatpush1.msra.mxu0 0.0
    %471 = vmatprep.subr.mxu0 0.0
    %472 = vmatpush1.msra.mxu0 0.0
    %473 = vmatprep.subr.mxu0 0.0
    %474 = vmatpush1.msra.mxu0 0.0
    %475 = vmatprep.subr.mxu0 0.0
    %476 = vmatpush1.msra.mxu0 0.0
    %477 = vmatprep.subr.mxu0 0.0
    %478 = vmatpush1.msra.mxu0 0.0
    %479 = vmatprep.subr.mxu0 0.0
    %480 = vmatpush1.msra.mxu0 0.0
    %481 = vmatprep.subr.mxu0 0.0
    %482 = vmatpush1.msra.mxu0 0.0
    %483 = vmatprep.subr.mxu0 0.0
    %484 = vmatpush1.msra.mxu0 0.0
    %485 = vmatprep.subr.mxu0 0.0
    %486 = vmatpush1.msra.mxu0 0.0
    %487 = vmatprep.subr.mxu0 0.0
    %488 = vmatpush1.msra.mxu0 0.0
    %489 = vmatprep.subr.mxu0 0.0
    %490 = vmatpush1.msra.mxu0 0.0
    %491 = vmatprep.mubr.f32.mxu0 0.0
    %492 = vmatmul.mubr.f32.gmra.mrb[0].mxu0 %v243
    %v493 = vpop.f32.mrb[0].mxu0
    %v494 = vadd.f32 %v418, %v493
    %v495 = vpop.f32.mrb[0].mxu0
    %v496 = vadd.f32 %v420, %v495
    %497 = vdwg.mxu0
    %v499 = vlaneseq
    %v500 = vshrl.u32 %v499, 7
    %v501 = vsub.s32 0, %v500
    %v502 = vrot.slane %v85, %v501
    %v503 = vlaneseq
    %v504 = vshrl.u32 %v503, 7
    %v505 = vsub.s32 1, %v504
    %v506 = vrot.slane %v85, %v505
    %v509 = vadd.f32 %v494, %v502
    %v510 = vadd.f32 %v496, %v506
    %v511 = vtanh.pop %v425
    %v512 = vtanh.pop %v426
    %v513 = vadd.f32 %v511, 1.0
    %v514 = vmul.f32 %v513, 0.5
    %v515 = vmul.f32 %v514, %v218
    %v516 = vmul.f32 %v514, %v512
    %518 = vrot.lane.b32.xlu0 %v516, 64
    %v519 = vpop.permute.xlu0 %518
    %v521 = vadd.f32 %v515, %v519
    %v522 = vadd.f32 %v512, 1.0
    %v523 = vmul.f32 %v522, 0.5
    %v524 = vtanh.pop %v521
    %v525 = vmul.f32 %v523, %v524
    %v526 = vtanh.pop %v509
    %v527 = vtanh.pop %v510
    %v528 = vadd.f32 %v526, 1.0
    %v529 = vmul.f32 %v528, 0.5
    %v530 = vmul.f32 %v529, 0.0
    %v531 = vmul.f32 %v529, %v527
    %533 = vrot.lane.b32.xlu0 %v531, 64
    %v534 = vpop.permute.xlu0 %533
    %v536 = vadd.f32 %v530, %v534
    %v537 = vadd.f32 %v527, 1.0
    %v538 = vmul.f32 %v537, 0.5
    %v539 = vtanh.pop %v536
    %v540 = vmul.f32 %v538, %v539
    %542 = vrot.lane.b32.xlu0 %v525, 64
    %v543 = vpop.permute.xlu0 %542
    %v544 = vsel %vm242, %v543, 0
    %546 = vmatprep.subr.mxu0 %v224
    %547 = vmatpush1.msra.mxu0 %v223
    %548 = vmatprep.subr.mxu0 %v226
    %549 = vmatpush1.msra.mxu0 %v225
    %550 = vmatprep.subr.mxu0 %v228
    %551 = vmatpush1.msra.mxu0 %v227
    %552 = vmatprep.subr.mxu0 %v230
    %553 = vmatpush1.msra.mxu0 %v229
    %554 = vmatprep.subr.mxu0 %v232
    %555 = vmatpush1.msra.mxu0 %v231
    %556 = vmatprep.subr.mxu0 %v234
    %557 = vmatpush1.msra.mxu0 %v233
    %558 = vmatprep.subr.mxu0 %v236
    %559 = vmatpush1.msra.mxu0 %v235
    %560 = vmatprep.subr.mxu0 %v238
    %561 = vmatpush1.msra.mxu0 %v237
    %562 = vmatprep.subr.mxu0 0.0
    %563 = vmatpush1.msra.mxu0 0.0
    %564 = vmatprep.subr.mxu0 0.0
    %565 = vmatpush1.msra.mxu0 0.0
    %566 = vmatprep.subr.mxu0 0.0
    %567 = vmatpush1.msra.mxu0 0.0
    %568 = vmatprep.subr.mxu0 0.0
    %569 = vmatpush1.msra.mxu0 0.0
    %570 = vmatprep.subr.mxu0 0.0
    %571 = vmatpush1.msra.mxu0 0.0
    %572 = vmatprep.subr.mxu0 0.0
    %573 = vmatpush1.msra.mxu0 0.0
    %574 = vmatprep.subr.mxu0 0.0
    %575 = vmatpush1.msra.mxu0 0.0
    %576 = vmatprep.subr.mxu0 0.0
    %577 = vmatpush1.msra.mxu0 0.0
    %578 = vmatprep.subr.mxu0 0.0
    %579 = vmatpush1.msra.mxu0 0.0
    %580 = vmatprep.subr.mxu0 0.0
    %581 = vmatpush1.msra.mxu0 0.0
    %582 = vmatprep.subr.mxu0 0.0
    %583 = vmatpush1.msra.mxu0 0.0
    %584 = vmatprep.subr.mxu0 0.0
    %585 = vmatpush1.msra.mxu0 0.0
    %586 = vmatprep.subr.mxu0 0.0
    %587 = vmatpush1.msra.mxu0 0.0
    %588 = vmatprep.subr.mxu0 0.0
    %589 = vmatpush1.msra.mxu0 0.0
    %590 = vmatprep.subr.mxu0 0.0
    %591 = vmatpush1.msra.mxu0 0.0
    %592 = vmatprep.subr.mxu0 0.0
    %593 = vmatpush1.msra.mxu0 0.0
    %594 = vmatprep.subr.mxu0 0.0
    %595 = vmatpush1.msra.mxu0 0.0
    %596 = vmatprep.subr.mxu0 0.0
    %597 = vmatpush1.msra.mxu0 0.0
    %598 = vmatprep.subr.mxu0 0.0
    %599 = vmatpush1.msra.mxu0 0.0
    %600 = vmatprep.subr.mxu0 0.0
    %601 = vmatpush1.msra.mxu0 0.0
    %602 = vmatprep.subr.mxu0 0.0
    %603 = vmatpush1.msra.mxu0 0.0
    %604 = vmatprep.subr.mxu0 0.0
    %605 = vmatpush1.msra.mxu0 0.0
    %606 = vmatprep.subr.mxu0 0.0
    %607 = vmatpush1.msra.mxu0 0.0
    %608 = vmatprep.subr.mxu0 0.0
    %609 = vmatpush1.msra.mxu0 0.0
    %610 = vmatprep.mubr.f32.mxu0 0.0
    %611 = vmatmul.mubr.f32.gmra.mrb[0].mxu0 %v544
    %v612 = vpop.f32.mrb[0].mxu0
    %v613 = vadd.f32 0.0, %v612
    %v614 = vpop.f32.mrb[0].mxu0
    %v615 = vadd.f32 0.0, %v614
    %616 = vdwg.mxu0
    %618 = vrot.lane.b32.xlu0 %v540, 64
    %v619 = vpop.permute.xlu0 %618
    %v620 = vsel %vm242, %v619, 0
    %622 = vmatprep.subr.mxu0 %v333
    %623 = vmatpush1.msra.mxu0 %v332
    %624 = vmatprep.subr.mxu0 %v335
    %625 = vmatpush1.msra.mxu0 %v334
    %626 = vmatprep.subr.mxu0 %v337
    %627 = vmatpush1.msra.mxu0 %v336
    %628 = vmatprep.subr.mxu0 %v339
    %629 = vmatpush1.msra.mxu0 %v338
    %630 = vmatprep.subr.mxu0 %v341
    %631 = vmatpush1.msra.mxu0 %v340
    %632 = vmatprep.subr.mxu0 %v343
    %633 = vmatpush1.msra.mxu0 %v342
    %634 = vmatprep.subr.mxu0 %v345
    %635 = vmatpush1.msra.mxu0 %v344
    %636 = vmatprep.subr.mxu0 %v347
    %637 = vmatpush1.msra.mxu0 %v346
    %638 = vmatprep.subr.mxu0 0.0
    %639 = vmatpush1.msra.mxu0 0.0
    %640 = vmatprep.subr.mxu0 0.0
    %641 = vmatpush1.msra.mxu0 0.0
    %642 = vmatprep.subr.mxu0 0.0
    %643 = vmatpush1.msra.mxu0 0.0
    %644 = vmatprep.subr.mxu0 0.0
    %645 = vmatpush1.msra.mxu0 0.0
    %646 = vmatprep.subr.mxu0 0.0
    %647 = vmatpush1.msra.mxu0 0.0
    %648 = vmatprep.subr.mxu0 0.0
    %649 = vmatpush1.msra.mxu0 0.0
    %650 = vmatprep.subr.mxu0 0.0
    %651 = vmatpush1.msra.mxu0 0.0
    %652 = vmatprep.subr.mxu0 0.0
    %653 = vmatpush1.msra.mxu0 0.0
    %654 = vmatprep.subr.mxu0 0.0
    %655 = vmatpush1.msra.mxu0 0.0
    %656 = vmatprep.subr.mxu0 0.0
    %657 = vmatpush1.msra.mxu0 0.0
    %658 = vmatprep.subr.mxu0 0.0
    %659 = vmatpush1.msra.mxu0 0.0
    %660 = vmatprep.subr.mxu0 0.0
    %661 = vmatpush1.msra.mxu0 0.0
    %662 = vmatprep.subr.mxu0 0.0
    %663 = vmatpush1.msra.mxu0 0.0
    %664 = vmatprep.subr.mxu0 0.0
    %665 = vmatpush1.msra.mxu0 0.0
    %666 = vmatprep.subr.mxu0 0.0
    %667 = vmatpush1.msra.mxu0 0.0
    %668 = vmatprep.subr.mxu0 0.0
    %669 = vmatpush1.msra.mxu0 0.0
    %670 = vmatprep.subr.mxu0 0.0
    %671 = vmatpush1.msra.mxu0 0.0
    %672 = vmatprep.subr.mxu0 0.0
    %673 = vmatpush1.msra.mxu0 0.0
    %674 = vmatprep.subr.mxu0 0.0
    %675 = vmatpush1.msra.mxu0 0.0
    %676 = vmatprep.subr.mxu0 0.0
    %677 = vmatpush1.msra.mxu0 0.0
    %678 = vmatprep.subr.mxu0 0.0
    %679 = vmatpush1.msra.mxu0 0.0
    %680 = vmatprep.subr.mxu0 0.0
    %681 = vmatpush1.msra.mxu0 0.0
    %682 = vmatprep.subr.mxu0 0.0
    %683 = vmatpush1.msra.mxu0 0.0
    %684 = vmatprep.subr.mxu0 0.0
    %685 = vmatpush1.msra.mxu0 0.0
    %686 = vmatprep.mubr.f32.mxu0 0.0
    %687 = vmatmul.mubr.f32.gmra.mrb[0].mxu0 %v620
    %v688 = vpop.f32.mrb[0].mxu0
    %v689 = vadd.f32 0.0, %v688
    %v690 = vpop.f32.mrb[0].mxu0
    %v691 = vadd.f32 0.0, %v690
    %692 = vdwg.mxu0
    %s693 = scalar_lea.vmem [#allocation2], 32
    %v694 = vld [vmem:[%s693] sm:$0xff]
    %v695 = vld [vmem:[%s693 + $0x8] sm:$0xff]
    %v696 = vadd.f32 %v694, %v613
    %v697 = vadd.f32 %v695, %v615
    %698 = vmatprep.subr.mxu0 %v317
    %699 = vmatpush1.msra.mxu0 %v316
    %700 = vmatprep.subr.mxu0 %v319
    %701 = vmatpush1.msra.mxu0 %v318
    %702 = vmatprep.subr.mxu0 %v321
    %703 = vmatpush1.msra.mxu0 %v320
    %704 = vmatprep.subr.mxu0 %v323
    %705 = vmatpush1.msra.mxu0 %v322
    %706 = vmatprep.subr.mxu0 %v325
    %707 = vmatpush1.msra.mxu0 %v324
    %708 = vmatprep.subr.mxu0 %v327
    %709 = vmatpush1.msra.mxu0 %v326
    %710 = vmatprep.subr.mxu0 %v329
    %711 = vmatpush1.msra.mxu0 %v328
    %712 = vmatprep.subr.mxu0 %v331
    %713 = vmatpush1.msra.mxu0 %v330
    %714 = vmatprep.subr.mxu0 0.0
    %715 = vmatpush1.msra.mxu0 0.0
    %716 = vmatprep.subr.mxu0 0.0
    %717 = vmatpush1.msra.mxu0 0.0
    %718 = vmatprep.subr.mxu0 0.0
    %719 = vmatpush1.msra.mxu0 0.0
    %720 = vmatprep.subr.mxu0 0.0
    %721 = vmatpush1.msra.mxu0 0.0
    %722 = vmatprep.subr.mxu0 0.0
    %723 = vmatpush1.msra.mxu0 0.0
    %724 = vmatprep.subr.mxu0 0.0
    %725 = vmatpush1.msra.mxu0 0.0
    %726 = vmatprep.subr.mxu0 0.0
    %727 = vmatpush1.msra.mxu0 0.0
    %728 = vmatprep.subr.mxu0 0.0
    %729 = vmatpush1.msra.mxu0 0.0
    %730 = vmatprep.subr.mxu0 0.0
    %731 = vmatpush1.msra.mxu0 0.0
    %732 = vmatprep.subr.mxu0 0.0
    %733 = vmatpush1.msra.mxu0 0.0
    %734 = vmatprep.subr.mxu0 0.0
    %735 = vmatpush1.msra.mxu0 0.0
    %736 = vmatprep.subr.mxu0 0.0
    %737 = vmatpush1.msra.mxu0 0.0
    %738 = vmatprep.subr.mxu0 0.0
    %739 = vmatpush1.msra.mxu0 0.0
    %740 = vmatprep.subr.mxu0 0.0
    %741 = vmatpush1.msra.mxu0 0.0
    %742 = vmatprep.subr.mxu0 0.0
    %743 = vmatpush1.msra.mxu0 0.0
    %744 = vmatprep.subr.mxu0 0.0
    %745 = vmatpush1.msra.mxu0 0.0
    %746 = vmatprep.subr.mxu0 0.0
    %747 = vmatpush1.msra.mxu0 0.0
    %748 = vmatprep.subr.mxu0 0.0
    %749 = vmatpush1.msra.mxu0 0.0
    %750 = vmatprep.subr.mxu0 0.0
    %751 = vmatpush1.msra.mxu0 0.0
    %752 = vmatprep.subr.mxu0 0.0
    %753 = vmatpush1.msra.mxu0 0.0
    %754 = vmatprep.subr.mxu0 0.0
    %755 = vmatpush1.msra.mxu0 0.0
    %756 = vmatprep.subr.mxu0 0.0
    %757 = vmatpush1.msra.mxu0 0.0
    %758 = vmatprep.subr.mxu0 0.0
    %759 = vmatpush1.msra.mxu0 0.0
    %760 = vmatprep.subr.mxu0 0.0
    %761 = vmatpush1.msra.mxu0 0.0
    %762 = vmatprep.mubr.f32.mxu0 0.0
    %763 = vmatmul.mubr.f32.gmra.mrb[0].mxu0 %v544
    %v764 = vpop.f32.mrb[0].mxu0
    %v765 = vadd.f32 %v689, %v764
    %v766 = vpop.f32.mrb[0].mxu0
    %v767 = vadd.f32 %v691, %v766
    %768 = vdwg.mxu0
    %v769 = vadd.f32 %v765, %v502
    %v770 = vadd.f32 %v767, %v506
    %v771 = vtanh.pop %v696
    %v772 = vtanh.pop %v697
    %v773 = vadd.f32 %v771, 1.0
    %v774 = vmul.f32 %v773, 0.5
    %v775 = vmul.f32 %v774, %v521
    %v776 = vmul.f32 %v774, %v772
    %778 = vrot.lane.b32.xlu0 %v776, 64
    %v779 = vpop.permute.xlu0 %778
    %v781 = vadd.f32 %v775, %v779
    %v782 = vadd.f32 %v772, 1.0
    %v783 = vmul.f32 %v782, 0.5
    %v784 = vtanh.pop %v781
    %v785 = vmul.f32 %v783, %v784
    %v786 = vtanh.pop %v769
    %v787 = vtanh.pop %v770
    %v788 = vadd.f32 %v786, 1.0
    %v789 = vmul.f32 %v788, 0.5
    %v790 = vmul.f32 %v789, %v536
    %v791 = vmul.f32 %v789, %v787
    %793 = vrot.lane.b32.xlu0 %v791, 64
    %v794 = vpop.permute.xlu0 %793
    %v796 = vadd.f32 %v790, %v794
    %v797 = vadd.f32 %v787, 1.0
    %v798 = vmul.f32 %v797, 0.5
    %v799 = vtanh.pop %v796
    %v800 = vmul.f32 %v798, %v799
    %802 = vrot.lane.b32.xlu0 %v785, 64
    %v803 = vpop.permute.xlu0 %802
    %v804 = vsel %vm242, %v803, 0
    %806 = vmatprep.subr.mxu0 %v224
    %807 = vmatpush1.msra.mxu0 %v223
    %808 = vmatprep.subr.mxu0 %v226
    %809 = vmatpush1.msra.mxu0 %v225
    %810 = vmatprep.subr.mxu0 %v228
    %811 = vmatpush1.msra.mxu0 %v227
    %812 = vmatprep.subr.mxu0 %v230
    %813 = vmatpush1.msra.mxu0 %v229
    %814 = vmatprep.subr.mxu0 %v232
    %815 = vmatpush1.msra.mxu0 %v231
    %816 = vmatprep.subr.mxu0 %v234
    %817 = vmatpush1.msra.mxu0 %v233
    %818 = vmatprep.subr.mxu0 %v236
    %819 = vmatpush1.msra.mxu0 %v235
    %820 = vmatprep.subr.mxu0 %v238
    %821 = vmatpush1.msra.mxu0 %v237
    %822 = vmatprep.subr.mxu0 0.0
    %823 = vmatpush1.msra.mxu0 0.0
    %824 = vmatprep.subr.mxu0 0.0
    %825 = vmatpush1.msra.mxu0 0.0
    %826 = vmatprep.subr.mxu0 0.0
    %827 = vmatpush1.msra.mxu0 0.0
    %828 = vmatprep.subr.mxu0 0.0
    %829 = vmatpush1.msra.mxu0 0.0
    %830 = vmatprep.subr.mxu0 0.0
    %831 = vmatpush1.msra.mxu0 0.0
    %832 = vmatprep.subr.mxu0 0.0
    %833 = vmatpush1.msra.mxu0 0.0
    %834 = vmatprep.subr.mxu0 0.0
    %835 = vmatpush1.msra.mxu0 0.0
    %836 = vmatprep.subr.mxu0 0.0
    %837 = vmatpush1.msra.mxu0 0.0
    %838 = vmatprep.subr.mxu0 0.0
    %839 = vmatpush1.msra.mxu0 0.0
    %840 = vmatprep.subr.mxu0 0.0
    %841 = vmatpush1.msra.mxu0 0.0
    %842 = vmatprep.subr.mxu0 0.0
    %843 = vmatpush1.msra.mxu0 0.0
    %844 = vmatprep.subr.mxu0 0.0
    %845 = vmatpush1.msra.mxu0 0.0
    %846 = vmatprep.subr.mxu0 0.0
    %847 = vmatpush1.msra.mxu0 0.0
    %848 = vmatprep.subr.mxu0 0.0
    %849 = vmatpush1.msra.mxu0 0.0
    %850 = vmatprep.subr.mxu0 0.0
    %851 = vmatpush1.msra.mxu0 0.0
    %852 = vmatprep.subr.mxu0 0.0
    %853 = vmatpush1.msra.mxu0 0.0
    %854 = vmatprep.subr.mxu0 0.0
    %855 = vmatpush1.msra.mxu0 0.0
    %856 = vmatprep.subr.mxu0 0.0
    %857 = vmatpush1.msra.mxu0 0.0
    %858 = vmatprep.subr.mxu0 0.0
    %859 = vmatpush1.msra.mxu0 0.0
    %860 = vmatprep.subr.mxu0 0.0
    %861 = vmatpush1.msra.mxu0 0.0
    %862 = vmatprep.subr.mxu0 0.0
    %863 = vmatpush1.msra.mxu0 0.0
    %864 = vmatprep.subr.mxu0 0.0
    %865 = vmatpush1.msra.mxu0 0.0
    %866 = vmatprep.subr.mxu0 0.0
    %867 = vmatpush1.msra.mxu0 0.0
    %868 = vmatprep.subr.mxu0 0.0
    %869 = vmatpush1.msra.mxu0 0.0
    %870 = vmatprep.mubr.f32.mxu0 0.0
    %871 = vmatmul.mubr.f32.gmra.mrb[0].mxu0 %v804
    %v872 = vpop.f32.mrb[0].mxu0
    %v873 = vadd.f32 0.0, %v872
    %v874 = vpop.f32.mrb[0].mxu0
    %v875 = vadd.f32 0.0, %v874
    %876 = vdwg.mxu0
    %878 = vrot.lane.b32.xlu0 %v800, 64
    %v879 = vpop.permute.xlu0 %878
    %v880 = vsel %vm242, %v879, 0
    %882 = vmatprep.subr.mxu0 %v333
    %883 = vmatpush1.msra.mxu0 %v332
    %884 = vmatprep.subr.mxu0 %v335
    %885 = vmatpush1.msra.mxu0 %v334
    %886 = vmatprep.subr.mxu0 %v337
    %887 = vmatpush1.msra.mxu0 %v336
    %888 = vmatprep.subr.mxu0 %v339
    %889 = vmatpush1.msra.mxu0 %v338
    %890 = vmatprep.subr.mxu0 %v341
    %891 = vmatpush1.msra.mxu0 %v340
    %892 = vmatprep.subr.mxu0 %v343
    %893 = vmatpush1.msra.mxu0 %v342
    %894 = vmatprep.subr.mxu0 %v345
    %895 = vmatpush1.msra.mxu0 %v344
    %896 = vmatprep.subr.mxu0 %v347
    %897 = vmatpush1.msra.mxu0 %v346
    %898 = vmatprep.subr.mxu0 0.0
    %899 = vmatpush1.msra.mxu0 0.0
    %900 = vmatprep.subr.mxu0 0.0
    %901 = vmatpush1.msra.mxu0 0.0
    %902 = vmatprep.subr.mxu0 0.0
    %903 = vmatpush1.msra.mxu0 0.0
    %904 = vmatprep.subr.mxu0 0.0
    %905 = vmatpush1.msra.mxu0 0.0
    %906 = vmatprep.subr.mxu0 0.0
    %907 = vmatpush1.msra.mxu0 0.0
    %908 = vmatprep.subr.mxu0 0.0
    %909 = vmatpush1.msra.mxu0 0.0
    %910 = vmatprep.subr.mxu0 0.0
    %911 = vmatpush1.msra.mxu0 0.0
    %912 = vmatprep.subr.mxu0 0.0
    %913 = vmatpush1.msra.mxu0 0.0
    %914 = vmatprep.subr.mxu0 0.0
    %915 = vmatpush1.msra.mxu0 0.0
    %916 = vmatprep.subr.mxu0 0.0
    %917 = vmatpush1.msra.mxu0 0.0
    %918 = vmatprep.subr.mxu0 0.0
    %919 = vmatpush1.msra.mxu0 0.0
    %920 = vmatprep.subr.mxu0 0.0
    %921 = vmatpush1.msra.mxu0 0.0
    %922 = vmatprep.subr.mxu0 0.0
    %923 = vmatpush1.msra.mxu0 0.0
    %924 = vmatprep.subr.mxu0 0.0
    %925 = vmatpush1.msra.mxu0 0.0
    %926 = vmatprep.subr.mxu0 0.0
    %927 = vmatpush1.msra.mxu0 0.0
    %928 = vmatprep.subr.mxu0 0.0
    %929 = vmatpush1.msra.mxu0 0.0
    %930 = vmatprep.subr.mxu0 0.0
    %931 = vmatpush1.msra.mxu0 0.0
    %932 = vmatprep.subr.mxu0 0.0
    %933 = vmatpush1.msra.mxu0 0.0
    %934 = vmatprep.subr.mxu0 0.0
    %935 = vmatpush1.msra.mxu0 0.0
    %936 = vmatprep.subr.mxu0 0.0
    %937 = vmatpush1.msra.mxu0 0.0
    %938 = vmatprep.subr.mxu0 0.0
    %939 = vmatpush1.msra.mxu0 0.0
    %940 = vmatprep.subr.mxu0 0.0
    %941 = vmatpush1.msra.mxu0 0.0
    %942 = vmatprep.subr.mxu0 0.0
    %943 = vmatpush1.msra.mxu0 0.0
    %944 = vmatprep.subr.mxu0 0.0
    %945 = vmatpush1.msra.mxu0 0.0
    %946 = vmatprep.mubr.f32.mxu0 0.0
    %947 = vmatmul.mubr.f32.gmra.mrb[0].mxu0 %v880
    %v948 = vpop.f32.mrb[0].mxu0
    %v949 = vadd.f32 0.0, %v948
    %v950 = vpop.f32.mrb[0].mxu0
    %v951 = vadd.f32 0.0, %v950
    %952 = vdwg.mxu0
    %s953 = scalar_lea.vmem [#allocation2], 48
    %v954 = vld [vmem:[%s953] sm:$0xff]
    %v955 = vld [vmem:[%s953 + $0x8] sm:$0xff]
    %v956 = vadd.f32 %v954, %v873
    %v957 = vadd.f32 %v955, %v875
    %958 = vmatprep.subr.mxu0 %v317
    %959 = vmatpush1.msra.mxu0 %v316
    %960 = vmatprep.subr.mxu0 %v319
    %961 = vmatpush1.msra.mxu0 %v318
    %962 = vmatprep.subr.mxu0 %v321
    %963 = vmatpush1.msra.mxu0 %v320
    %964 = vmatprep.subr.mxu0 %v323
    %965 = vmatpush1.msra.mxu0 %v322
    %966 = vmatprep.subr.mxu0 %v325
    %967 = vmatpush1.msra.mxu0 %v324
    %968 = vmatprep.subr.mxu0 %v327
    %969 = vmatpush1.msra.mxu0 %v326
    %970 = vmatprep.subr.mxu0 %v329
    %971 = vmatpush1.msra.mxu0 %v328
    %972 = vmatprep.subr.mxu0 %v331
    %973 = vmatpush1.msra.mxu0 %v330
    %974 = vmatprep.subr.mxu0 0.0
    %975 = vmatpush1.msra.mxu0 0.0
    %976 = vmatprep.subr.mxu0 0.0
    %977 = vmatpush1.msra.mxu0 0.0
    %978 = vmatprep.subr.mxu0 0.0
    %979 = vmatpush1.msra.mxu0 0.0
    %980 = vmatprep.subr.mxu0 0.0
    %981 = vmatpush1.msra.mxu0 0.0
    %982 = vmatprep.subr.mxu0 0.0
    %983 = vmatpush1.msra.mxu0 0.0
    %984 = vmatprep.subr.mxu0 0.0
    %985 = vmatpush1.msra.mxu0 0.0
    %986 = vmatprep.subr.mxu0 0.0
    %987 = vmatpush1.msra.mxu0 0.0
    %988 = vmatprep.subr.mxu0 0.0
    %989 = vmatpush1.msra.mxu0 0.0
    %990 = vmatprep.subr.mxu0 0.0
    %991 = vmatpush1.msra.mxu0 0.0
    %992 = vmatprep.subr.mxu0 0.0
    %993 = vmatpush1.msra.mxu0 0.0
    %994 = vmatprep.subr.mxu0 0.0
    %995 = vmatpush1.msra.mxu0 0.0
    %996 = vmatprep.subr.mxu0 0.0
    %997 = vmatpush1.msra.mxu0 0.0
    %998 = vmatprep.subr.mxu0 0.0
    %999 = vmatpush1.msra.mxu0 0.0
    %1000 = vmatprep.subr.mxu0 0.0
    %1001 = vmatpush1.msra.mxu0 0.0
    %1002 = vmatprep.subr.mxu0 0.0
    %1003 = vmatpush1.msra.mxu0 0.0
    %1004 = vmatprep.subr.mxu0 0.0
    %1005 = vmatpush1.msra.mxu0 0.0
    %1006 = vmatprep.subr.mxu0 0.0
    %1007 = vmatpush1.msra.mxu0 0.0
    %1008 = vmatprep.subr.mxu0 0.0
    %1009 = vmatpush1.msra.mxu0 0.0
    %1010 = vmatprep.subr.mxu0 0.0
    %1011 = vmatpush1.msra.mxu0 0.0
    %1012 = vmatprep.subr.mxu0 0.0
    %1013 = vmatpush1.msra.mxu0 0.0
    %1014 = vmatprep.subr.mxu0 0.0
    %1015 = vmatpush1.msra.mxu0 0.0
    %1016 = vmatprep.subr.mxu0 0.0
    %1017 = vmatpush1.msra.mxu0 0.0
    %1018 = vmatprep.subr.mxu0 0.0
    %1019 = vmatpush1.msra.mxu0 0.0
    %1020 = vmatprep.subr.mxu0 0.0
    %1021 = vmatpush1.msra.mxu0 0.0
    %1022 = vmatprep.mubr.f32.mxu0 0.0
    %1023 = vmatmul.mubr.f32.gmra.mrb[0].mxu0 %v804
    %v1024 = vpop.f32.mrb[0].mxu0
    %v1025 = vadd.f32 %v949, %v1024
    %v1026 = vpop.f32.mrb[0].mxu0
    %v1027 = vadd.f32 %v951, %v1026
    %1028 = vdwg.mxu0
    %v1029 = vadd.f32 %v1025, %v502
    %v1030 = vadd.f32 %v1027, %v506
    %v1031 = vtanh.pop %v956
    %v1032 = vtanh.pop %v957
    %v1033 = vadd.f32 %v1031, 1.0
    %v1034 = vmul.f32 %v1033, 0.5
    %v1035 = vmul.f32 %v1034, %v781
    %v1036 = vmul.f32 %v1034, %v1032
    %1038 = vrot.lane.b32.xlu0 %v1036, 64
    %v1039 = vpop.permute.xlu0 %1038
    %v1041 = vadd.f32 %v1035, %v1039
    %v1042 = vadd.f32 %v1032, 1.0
    %v1043 = vmul.f32 %v1042, 0.5
    %v1044 = vtanh.pop %v1041
    %v1045 = vmul.f32 %v1043, %v1044
    %v1046 = vtanh.pop %v1029
    %v1047 = vtanh.pop %v1030
    %v1048 = vadd.f32 %v1046, 1.0
    %v1049 = vmul.f32 %v1048, 0.5
    %v1050 = vmul.f32 %v1049, %v796
    %v1051 = vmul.f32 %v1049, %v1047
    %1053 = vrot.lane.b32.xlu0 %v1051, 64
    %v1054 = vpop.permute.xlu0 %1053
    %v1056 = vadd.f32 %v1050, %v1054
    %v1057 = vadd.f32 %v1047, 1.0
    %v1058 = vmul.f32 %v1057, 0.5
    %v1059 = vtanh.pop %v1056
    %v1060 = vmul.f32 %v1058, %v1059
    %1062 = vrot.lane.b32.xlu0 %v1045, 64
    %v1063 = vpop.permute.xlu0 %1062
    %v1064 = vsel %vm242, %v1063, 0
    %1066 = vmatprep.subr.mxu0 %v224
    %1067 = vmatpush1.msra.mxu0 %v223
    %1068 = vmatprep.subr.mxu0 %v226
    %1069 = vmatpush1.msra.mxu0 %v225
    %1070 = vmatprep.subr.mxu0 %v228
    %1071 = vmatpush1.msra.mxu0 %v227
    %1072 = vmatprep.subr.mxu0 %v230
    %1073 = vmatpush1.msra.mxu0 %v229
    %1074 = vmatprep.subr.mxu0 %v232
    %1075 = vmatpush1.msra.mxu0 %v231
    %1076 = vmatprep.subr.mxu0 %v234
    %1077 = vmatpush1.msra.mxu0 %v233
    %1078 = vmatprep.subr.mxu0 %v236
    %1079 = vmatpush1.msra.mxu0 %v235
    %1080 = vmatprep.subr.mxu0 %v238
    %1081 = vmatpush1.msra.mxu0 %v237
    %1082 = vmatprep.subr.mxu0 0.0
    %1083 = vmatpush1.msra.mxu0 0.0
    %1084 = vmatprep.subr.mxu0 0.0
    %1085 = vmatpush1.msra.mxu0 0.0
    %1086 = vmatprep.subr.mxu0 0.0
    %1087 = vmatpush1.msra.mxu0 0.0
    %1088 = vmatprep.subr.mxu0 0.0
    %1089 = vmatpush1.msra.mxu0 0.0
    %1090 = vmatprep.subr.mxu0 0.0
    %1091 = vmatpush1.msra.mxu0 0.0
    %1092 = vmatprep.subr.mxu0 0.0
    %1093 = vmatpush1.msra.mxu0 0.0
    %1094 = vmatprep.subr.mxu0 0.0
    %1095 = vmatpush1.msra.mxu0 0.0
    %1096 = vmatprep.subr.mxu0 0.0
    %1097 = vmatpush1.msra.mxu0 0.0
    %1098 = vmatprep.subr.mxu0 0.0
    %1099 = vmatpush1.msra.mxu0 0.0
    %1100 = vmatprep.subr.mxu0 0.0
    %1101 = vmatpush1.msra.mxu0 0.0
    %1102 = vmatprep.subr.mxu0 0.0
    %1103 = vmatpush1.msra.mxu0 0.0
    %1104 = vmatprep.subr.mxu0 0.0
    %1105 = vmatpush1.msra.mxu0 0.0
    %1106 = vmatprep.subr.mxu0 0.0
    %1107 = vmatpush1.msra.mxu0 0.0
    %1108 = vmatprep.subr.mxu0 0.0
    %1109 = vmatpush1.msra.mxu0 0.0
    %1110 = vmatprep.subr.mxu0 0.0
    %1111 = vmatpush1.msra.mxu0 0.0
    %1112 = vmatprep.subr.mxu0 0.0
    %1113 = vmatpush1.msra.mxu0 0.0
    %1114 = vmatprep.subr.mxu0 0.0
    %1115 = vmatpush1.msra.mxu0 0.0
    %1116 = vmatprep.subr.mxu0 0.0
    %1117 = vmatpush1.msra.mxu0 0.0
    %1118 = vmatprep.subr.mxu0 0.0
    %1119 = vmatpush1.msra.mxu0 0.0
    %1120 = vmatprep.subr.mxu0 0.0
    %1121 = vmatpush1.msra.mxu0 0.0
    %1122 = vmatprep.subr.mxu0 0.0
    %1123 = vmatpush1.msra.mxu0 0.0
    %1124 = vmatprep.subr.mxu0 0.0
    %1125 = vmatpush1.msra.mxu0 0.0
    %1126 = vmatprep.subr.mxu0 0.0
    %1127 = vmatpush1.msra.mxu0 0.0
    %1128 = vmatprep.subr.mxu0 0.0
    %1129 = vmatpush1.msra.mxu0 0.0
    %1130 = vmatprep.mubr.f32.mxu0 0.0
    %1131 = vmatmul.mubr.f32.gmra.mrb[0].mxu0 %v1064
    %v1132 = vpop.f32.mrb[0].mxu0
    %v1133 = vadd.f32 0.0, %v1132
    %v1134 = vpop.f32.mrb[0].mxu0
    %v1135 = vadd.f32 0.0, %v1134
    %1136 = vdwg.mxu0
    %1138 = vrot.lane.b32.xlu0 %v1060, 64
    %v1139 = vpop.permute.xlu0 %1138
    %v1140 = vsel %vm242, %v1139, 0
    %1142 = vmatprep.subr.mxu0 %v333
    %1143 = vmatpush1.msra.mxu0 %v332
    %1144 = vmatprep.subr.mxu0 %v335
    %1145 = vmatpush1.msra.mxu0 %v334
    %1146 = vmatprep.subr.mxu0 %v337
    %1147 = vmatpush1.msra.mxu0 %v336
    %1148 = vmatprep.subr.mxu0 %v339
    %1149 = vmatpush1.msra.mxu0 %v338
    %1150 = vmatprep.subr.mxu0 %v341
    %1151 = vmatpush1.msra.mxu0 %v340
    %1152 = vmatprep.subr.mxu0 %v343
    %1153 = vmatpush1.msra.mxu0 %v342
    %1154 = vmatprep.subr.mxu0 %v345
    %1155 = vmatpush1.msra.mxu0 %v344
    %1156 = vmatprep.subr.mxu0 %v347
    %1157 = vmatpush1.msra.mxu0 %v346
    %1158 = vmatprep.subr.mxu0 0.0
    %1159 = vmatpush1.msra.mxu0 0.0
    %1160 = vmatprep.subr.mxu0 0.0
    %1161 = vmatpush1.msra.mxu0 0.0
    %1162 = vmatprep.subr.mxu0 0.0
    %1163 = vmatpush1.msra.mxu0 0.0
    %1164 = vmatprep.subr.mxu0 0.0
    %1165 = vmatpush1.msra.mxu0 0.0
    %1166 = vmatprep.subr.mxu0 0.0
    %1167 = vmatpush1.msra.mxu0 0.0
    %1168 = vmatprep.subr.mxu0 0.0
    %1169 = vmatpush1.msra.mxu0 0.0
    %1170 = vmatprep.subr.mxu0 0.0
    %1171 = vmatpush1.msra.mxu0 0.0
    %1172 = vmatprep.subr.mxu0 0.0
    %1173 = vmatpush1.msra.mxu0 0.0
    %1174 = vmatprep.subr.mxu0 0.0
    %1175 = vmatpush1.msra.mxu0 0.0
    %1176 = vmatprep.subr.mxu0 0.0
    %1177 = vmatpush1.msra.mxu0 0.0
    %1178 = vmatprep.subr.mxu0 0.0
    %1179 = vmatpush1.msra.mxu0 0.0
    %1180 = vmatprep.subr.mxu0 0.0
    %1181 = vmatpush1.msra.mxu0 0.0
    %1182 = vmatprep.subr.mxu0 0.0
    %1183 = vmatpush1.msra.mxu0 0.0
    %1184 = vmatprep.subr.mxu0 0.0
    %1185 = vmatpush1.msra.mxu0 0.0
    %1186 = vmatprep.subr.mxu0 0.0
    %1187 = vmatpush1.msra.mxu0 0.0
    %1188 = vmatprep.subr.mxu0 0.0
    %1189 = vmatpush1.msra.mxu0 0.0
    %1190 = vmatprep.subr.mxu0 0.0
    %1191 = vmatpush1.msra.mxu0 0.0
    %1192 = vmatprep.subr.mxu0 0.0
    %1193 = vmatpush1.msra.mxu0 0.0
    %1194 = vmatprep.subr.mxu0 0.0
    %1195 = vmatpush1.msra.mxu0 0.0
    %1196 = vmatprep.subr.mxu0 0.0
    %1197 = vmatpush1.msra.mxu0 0.0
    %1198 = vmatprep.subr.mxu0 0.0
    %1199 = vmatpush1.msra.mxu0 0.0
    %1200 = vmatprep.subr.mxu0 0.0
    %1201 = vmatpush1.msra.mxu0 0.0
    %1202 = vmatprep.subr.mxu0 0.0
    %1203 = vmatpush1.msra.mxu0 0.0
    %1204 = vmatprep.subr.mxu0 0.0
    %1205 = vmatpush1.msra.mxu0 0.0
    %1206 = vmatprep.mubr.f32.mxu0 0.0
    %1207 = vmatmul.mubr.f32.gmra.mrb[0].mxu0 %v1140
    %v1208 = vpop.f32.mrb[0].mxu0
    %v1209 = vadd.f32 0.0, %v1208
    %v1210 = vpop.f32.mrb[0].mxu0
    %v1211 = vadd.f32 0.0, %v1210
    %1212 = vdwg.mxu0
    %s1213 = scalar_lea.vmem [#allocation2], 64
    %v1214 = vld [vmem:[%s1213] sm:$0xff]
    %v1215 = vld [vmem:[%s1213 + $0x8] sm:$0xff]
    %v1216 = vadd.f32 %v1214, %v1133
    %v1217 = vadd.f32 %v1215, %v1135
    %1218 = vmatprep.subr.mxu0 %v317
    %1219 = vmatpush1.msra.mxu0 %v316
    %1220 = vmatprep.subr.mxu0 %v319
    %1221 = vmatpush1.msra.mxu0 %v318
    %1222 = vmatprep.subr.mxu0 %v321
    %1223 = vmatpush1.msra.mxu0 %v320
    %1224 = vmatprep.subr.mxu0 %v323
    %1225 = vmatpush1.msra.mxu0 %v322
    %1226 = vmatprep.subr.mxu0 %v325
    %1227 = vmatpush1.msra.mxu0 %v324
    %1228 = vmatprep.subr.mxu0 %v327
    %1229 = vmatpush1.msra.mxu0 %v326
    %1230 = vmatprep.subr.mxu0 %v329
    %1231 = vmatpush1.msra.mxu0 %v328
    %1232 = vmatprep.subr.mxu0 %v331
    %1233 = vmatpush1.msra.mxu0 %v330
    %1234 = vmatprep.subr.mxu0 0.0
    %1235 = vmatpush1.msra.mxu0 0.0
    %1236 = vmatprep.subr.mxu0 0.0
    %1237 = vmatpush1.msra.mxu0 0.0
    %1238 = vmatprep.subr.mxu0 0.0
    %1239 = vmatpush1.msra.mxu0 0.0
    %1240 = vmatprep.subr.mxu0 0.0
    %1241 = vmatpush1.msra.mxu0 0.0
    %1242 = vmatprep.subr.mxu0 0.0
    %1243 = vmatpush1.msra.mxu0 0.0
    %1244 = vmatprep.subr.mxu0 0.0
    %1245 = vmatpush1.msra.mxu0 0.0
    %1246 = vmatprep.subr.mxu0 0.0
    %1247 = vmatpush1.msra.mxu0 0.0
    %1248 = vmatprep.subr.mxu0 0.0
    %1249 = vmatpush1.msra.mxu0 0.0
    %1250 = vmatprep.subr.mxu0 0.0
    %1251 = vmatpush1.msra.mxu0 0.0
    %1252 = vmatprep.subr.mxu0 0.0
    %1253 = vmatpush1.msra.mxu0 0.0
    %1254 = vmatprep.subr.mxu0 0.0
    %1255 = vmatpush1.msra.mxu0 0.0
    %1256 = vmatprep.subr.mxu0 0.0
    %1257 = vmatpush1.msra.mxu0 0.0
    %1258 = vmatprep.subr.mxu0 0.0
    %1259 = vmatpush1.msra.mxu0 0.0
    %1260 = vmatprep.subr.mxu0 0.0
    %1261 = vmatpush1.msra.mxu0 0.0
    %1262 = vmatprep.subr.mxu0 0.0
    %1263 = vmatpush1.msra.mxu0 0.0
    %1264 = vmatprep.subr.mxu0 0.0
    %1265 = vmatpush1.msra.mxu0 0.0
    %1266 = vmatprep.subr.mxu0 0.0
    %1267 = vmatpush1.msra.mxu0 0.0
    %1268 = vmatprep.subr.mxu0 0.0
    %1269 = vmatpush1.msra.mxu0 0.0
    %1270 = vmatprep.subr.mxu0 0.0
    %1271 = vmatpush1.msra.mxu0 0.0
    %1272 = vmatprep.subr.mxu0 0.0
    %1273 = vmatpush1.msra.mxu0 0.0
    %1274 = vmatprep.subr.mxu0 0.0
    %1275 = vmatpush1.msra.mxu0 0.0
    %1276 = vmatprep.subr.mxu0 0.0
    %1277 = vmatpush1.msra.mxu0 0.0
    %1278 = vmatprep.subr.mxu0 0.0
    %1279 = vmatpush1.msra.mxu0 0.0
    %1280 = vmatprep.subr.mxu0 0.0
    %1281 = vmatpush1.msra.mxu0 0.0
    %1282 = vmatprep.mubr.f32.mxu0 0.0
    %1283 = vmatmul.mubr.f32.gmra.mrb[0].mxu0 %v1064
    %v1284 = vpop.f32.mrb[0].mxu0
    %v1285 = vadd.f32 %v1209, %v1284
    %v1286 = vpop.f32.mrb[0].mxu0
    %v1287 = vadd.f32 %v1211, %v1286
    %1288 = vdwg.mxu0
    %v1289 = vadd.f32 %v1285, %v502
    %v1290 = vadd.f32 %v1287, %v506
    %v1291 = vtanh.pop %v1216
    %v1292 = vtanh.pop %v1217
    %v1293 = vadd.f32 %v1291, 1.0
    %v1294 = vmul.f32 %v1293, 0.5
    %v1295 = vmul.f32 %v1294, %v1041
    %v1296 = vmul.f32 %v1294, %v1292
    %1298 = vrot.lane.b32.xlu0 %v1296, 64
    %v1299 = vpop.permute.xlu0 %1298
    %v1301 = vadd.f32 %v1295, %v1299
    %v1302 = vadd.f32 %v1292, 1.0
    %v1303 = vmul.f32 %v1302, 0.5
    %v1304 = vtanh.pop %v1301
    %v1305 = vmul.f32 %v1303, %v1304
    %v1306 = vtanh.pop %v1289
    %v1307 = vtanh.pop %v1290
    %v1308 = vadd.f32 %v1306, 1.0
    %v1309 = vmul.f32 %v1308, 0.5
    %v1310 = vmul.f32 %v1309, %v1056
    %v1311 = vmul.f32 %v1309, %v1307
    %1313 = vrot.lane.b32.xlu0 %v1311, 64
    %v1314 = vpop.permute.xlu0 %1313
    %v1316 = vadd.f32 %v1310, %v1314
    %v1317 = vadd.f32 %v1307, 1.0
    %v1318 = vmul.f32 %v1317, 0.5
    %v1319 = vtanh.pop %v1316
    %v1320 = vmul.f32 %v1318, %v1319
    %1322 = vrot.lane.b32.xlu0 %v1305, 64
    %v1323 = vpop.permute.xlu0 %1322
    %v1324 = vsel %vm242, %v1323, 0
    %1326 = vmatprep.subr.mxu0 %v224
    %1327 = vmatpush1.msra.mxu0 %v223
    %1328 = vmatprep.subr.mxu0 %v226
    %1329 = vmatpush1.msra.mxu0 %v225
    %1330 = vmatprep.subr.mxu0 %v228
    %1331 = vmatpush1.msra.mxu0 %v227
    %1332 = vmatprep.subr.mxu0 %v230
    %1333 = vmatpush1.msra.mxu0 %v229
    %1334 = vmatprep.subr.mxu0 %v232
    %1335 = vmatpush1.msra.mxu0 %v231
    %1336 = vmatprep.subr.mxu0 %v234
    %1337 = vmatpush1.msra.mxu0 %v233
    %1338 = vmatprep.subr.mxu0 %v236
    %1339 = vmatpush1.msra.mxu0 %v235
    %1340 = vmatprep.subr.mxu0 %v238
    %1341 = vmatpush1.msra.mxu0 %v237
    %1342 = vmatprep.subr.mxu0 0.0
    %1343 = vmatpush1.msra.mxu0 0.0
    %1344 = vmatprep.subr.mxu0 0.0
    %1345 = vmatpush1.msra.mxu0 0.0
    %1346 = vmatprep.subr.mxu0 0.0
    %1347 = vmatpush1.msra.mxu0 0.0
    %1348 = vmatprep.subr.mxu0 0.0
    %1349 = vmatpush1.msra.mxu0 0.0
    %1350 = vmatprep.subr.mxu0 0.0
    %1351 = vmatpush1.msra.mxu0 0.0
    %1352 = vmatprep.subr.mxu0 0.0
    %1353 = vmatpush1.msra.mxu0 0.0
    %1354 = vmatprep.subr.mxu0 0.0
    %1355 = vmatpush1.msra.mxu0 0.0
    %1356 = vmatprep.subr.mxu0 0.0
    %1357 = vmatpush1.msra.mxu0 0.0
    %1358 = vmatprep.subr.mxu0 0.0
    %1359 = vmatpush1.msra.mxu0 0.0
    %1360 = vmatprep.subr.mxu0 0.0
    %1361 = vmatpush1.msra.mxu0 0.0
    %1362 = vmatprep.subr.mxu0 0.0
    %1363 = vmatpush1.msra.mxu0 0.0
    %1364 = vmatprep.subr.mxu0 0.0
    %1365 = vmatpush1.msra.mxu0 0.0
    %1366 = vmatprep.subr.mxu0 0.0
    %1367 = vmatpush1.msra.mxu0 0.0
    %1368 = vmatprep.subr.mxu0 0.0
    %1369 = vmatpush1.msra.mxu0 0.0
    %1370 = vmatprep.subr.mxu0 0.0
    %1371 = vmatpush1.msra.mxu0 0.0
    %1372 = vmatprep.subr.mxu0 0.0
    %1373 = vmatpush1.msra.mxu0 0.0
    %1374 = vmatprep.subr.mxu0 0.0
    %1375 = vmatpush1.msra.mxu0 0.0
    %1376 = vmatprep.subr.mxu0 0.0
    %1377 = vmatpush1.msra.mxu0 0.0
    %1378 = vmatprep.subr.mxu0 0.0
    %1379 = vmatpush1.msra.mxu0 0.0
    %1380 = vmatprep.subr.mxu0 0.0
    %1381 = vmatpush1.msra.mxu0 0.0
    %1382 = vmatprep.subr.mxu0 0.0
    %1383 = vmatpush1.msra.mxu0 0.0
    %1384 = vmatprep.subr.mxu0 0.0
    %1385 = vmatpush1.msra.mxu0 0.0
    %1386 = vmatprep.subr.mxu0 0.0
    %1387 = vmatpush1.msra.mxu0 0.0
    %1388 = vmatprep.subr.mxu0 0.0
    %1389 = vmatpush1.msra.mxu0 0.0
    %1390 = vmatprep.mubr.f32.mxu0 0.0
    %1391 = vmatmul.mubr.f32.gmra.mrb[0].mxu0 %v1324
    %v1392 = vpop.f32.mrb[0].mxu0
    %v1393 = vadd.f32 0.0, %v1392
    %v1394 = vpop.f32.mrb[0].mxu0
    %v1395 = vadd.f32 0.0, %v1394
    %1396 = vdwg.mxu0
    %1398 = vrot.lane.b32.xlu0 %v1320, 64
    %v1399 = vpop.permute.xlu0 %1398
    %v1400 = vsel %vm242, %v1399, 0
    %1402 = vmatprep.subr.mxu0 %v333
    %1403 = vmatpush1.msra.mxu0 %v332
    %1404 = vmatprep.subr.mxu0 %v335
    %1405 = vmatpush1.msra.mxu0 %v334
    %1406 = vmatprep.subr.mxu0 %v337
    %1407 = vmatpush1.msra.mxu0 %v336
    %1408 = vmatprep.subr.mxu0 %v339
    %1409 = vmatpush1.msra.mxu0 %v338
    %1410 = vmatprep.subr.mxu0 %v341
    %1411 = vmatpush1.msra.mxu0 %v340
    %1412 = vmatprep.subr.mxu0 %v343
    %1413 = vmatpush1.msra.mxu0 %v342
    %1414 = vmatprep.subr.mxu0 %v345
    %1415 = vmatpush1.msra.mxu0 %v344
    %1416 = vmatprep.subr.mxu0 %v347
    %1417 = vmatpush1.msra.mxu0 %v346
    %1418 = vmatprep.subr.mxu0 0.0
    %1419 = vmatpush1.msra.mxu0 0.0
    %1420 = vmatprep.subr.mxu0 0.0
    %1421 = vmatpush1.msra.mxu0 0.0
    %1422 = vmatprep.subr.mxu0 0.0
    %1423 = vmatpush1.msra.mxu0 0.0
    %1424 = vmatprep.subr.mxu0 0.0
    %1425 = vmatpush1.msra.mxu0 0.0
    %1426 = vmatprep.subr.mxu0 0.0
    %1427 = vmatpush1.msra.mxu0 0.0
    %1428 = vmatprep.subr.mxu0 0.0
    %1429 = vmatpush1.msra.mxu0 0.0
    %1430 = vmatprep.subr.mxu0 0.0
    %1431 = vmatpush1.msra.mxu0 0.0
    %1432 = vmatprep.subr.mxu0 0.0
    %1433 = vmatpush1.msra.mxu0 0.0
    %1434 = vmatprep.subr.mxu0 0.0
    %1435 = vmatpush1.msra.mxu0 0.0
    %1436 = vmatprep.subr.mxu0 0.0
    %1437 = vmatpush1.msra.mxu0 0.0
    %1438 = vmatprep.subr.mxu0 0.0
    %1439 = vmatpush1.msra.mxu0 0.0
    %1440 = vmatprep.subr.mxu0 0.0
    %1441 = vmatpush1.msra.mxu0 0.0
    %1442 = vmatprep.subr.mxu0 0.0
    %1443 = vmatpush1.msra.mxu0 0.0
    %1444 = vmatprep.subr.mxu0 0.0
    %1445 = vmatpush1.msra.mxu0 0.0
    %1446 = vmatprep.subr.mxu0 0.0
    %1447 = vmatpush1.msra.mxu0 0.0
    %1448 = vmatprep.subr.mxu0 0.0
    %1449 = vmatpush1.msra.mxu0 0.0
    %1450 = vmatprep.subr.mxu0 0.0
    %1451 = vmatpush1.msra.mxu0 0.0
    %1452 = vmatprep.subr.mxu0 0.0
    %1453 = vmatpush1.msra.mxu0 0.0
    %1454 = vmatprep.subr.mxu0 0.0
    %1455 = vmatpush1.msra.mxu0 0.0
    %1456 = vmatprep.subr.mxu0 0.0
    %1457 = vmatpush1.msra.mxu0 0.0
    %1458 = vmatprep.subr.mxu0 0.0
    %1459 = vmatpush1.msra.mxu0 0.0
    %1460 = vmatprep.subr.mxu0 0.0
    %1461 = vmatpush1.msra.mxu0 0.0
    %1462 = vmatprep.subr.mxu0 0.0
    %1463 = vmatpush1.msra.mxu0 0.0
    %1464 = vmatprep.subr.mxu0 0.0
    %1465 = vmatpush1.msra.mxu0 0.0
    %1466 = vmatprep.mubr.f32.mxu0 0.0
    %1467 = vmatmul.mubr.f32.gmra.mrb[0].mxu0 %v1400
    %v1468 = vpop.f32.mrb[0].mxu0
    %v1469 = vadd.f32 0.0, %v1468
    %v1470 = vpop.f32.mrb[0].mxu0
    %v1471 = vadd.f32 0.0, %v1470
    %1472 = vdwg.mxu0
    %s1473 = scalar_lea.vmem [#allocation2], 80
    %v1474 = vld [vmem:[%s1473] sm:$0xff]
    %v1475 = vld [vmem:[%s1473 + $0x8] sm:$0xff]
    %v1476 = vadd.f32 %v1474, %v1393
    %v1477 = vadd.f32 %v1475, %v1395
    %1478 = vmatprep.subr.mxu0 %v317
    %1479 = vmatpush1.msra.mxu0 %v316
    %1480 = vmatprep.subr.mxu0 %v319
    %1481 = vmatpush1.msra.mxu0 %v318
    %1482 = vmatprep.subr.mxu0 %v321
    %1483 = vmatpush1.msra.mxu0 %v320
    %1484 = vmatprep.subr.mxu0 %v323
    %1485 = vmatpush1.msra.mxu0 %v322
    %1486 = vmatprep.subr.mxu0 %v325
    %1487 = vmatpush1.msra.mxu0 %v324
    %1488 = vmatprep.subr.mxu0 %v327
    %1489 = vmatpush1.msra.mxu0 %v326
    %1490 = vmatprep.subr.mxu0 %v329
    %1491 = vmatpush1.msra.mxu0 %v328
    %1492 = vmatprep.subr.mxu0 %v331
    %1493 = vmatpush1.msra.mxu0 %v330
    %1494 = vmatprep.subr.mxu0 0.0
    %1495 = vmatpush1.msra.mxu0 0.0
    %1496 = vmatprep.subr.mxu0 0.0
    %1497 = vmatpush1.msra.mxu0 0.0
    %1498 = vmatprep.subr.mxu0 0.0
    %1499 = vmatpush1.msra.mxu0 0.0
    %1500 = vmatprep.subr.mxu0 0.0
    %1501 = vmatpush1.msra.mxu0 0.0
    %1502 = vmatprep.subr.mxu0 0.0
    %1503 = vmatpush1.msra.mxu0 0.0
    %1504 = vmatprep.subr.mxu0 0.0
    %1505 = vmatpush1.msra.mxu0 0.0
    %1506 = vmatprep.subr.mxu0 0.0
    %1507 = vmatpush1.msra.mxu0 0.0
    %1508 = vmatprep.subr.mxu0 0.0
    %1509 = vmatpush1.msra.mxu0 0.0
    %1510 = vmatprep.subr.mxu0 0.0
    %1511 = vmatpush1.msra.mxu0 0.0
    %1512 = vmatprep.subr.mxu0 0.0
    %1513 = vmatpush1.msra.mxu0 0.0
    %1514 = vmatprep.subr.mxu0 0.0
    %1515 = vmatpush1.msra.mxu0 0.0
    %1516 = vmatprep.subr.mxu0 0.0
    %1517 = vmatpush1.msra.mxu0 0.0
    %1518 = vmatprep.subr.mxu0 0.0
    %1519 = vmatpush1.msra.mxu0 0.0
    %1520 = vmatprep.subr.mxu0 0.0
    %1521 = vmatpush1.msra.mxu0 0.0
    %1522 = vmatprep.subr.mxu0 0.0
    %1523 = vmatpush1.msra.mxu0 0.0
    %1524 = vmatprep.subr.mxu0 0.0
    %1525 = vmatpush1.msra.mxu0 0.0
    %1526 = vmatprep.subr.mxu0 0.0
    %1527 = vmatpush1.msra.mxu0 0.0
    %1528 = vmatprep.subr.mxu0 0.0
    %1529 = vmatpush1.msra.mxu0 0.0
    %1530 = vmatprep.subr.mxu0 0.0
    %1531 = vmatpush1.msra.mxu0 0.0
    %1532 = vmatprep.subr.mxu0 0.0
    %1533 = vmatpush1.msra.mxu0 0.0
    %1534 = vmatprep.subr.mxu0 0.0
    %1535 = vmatpush1.msra.mxu0 0.0
    %1536 = vmatprep.subr.mxu0 0.0
    %1537 = vmatpush1.msra.mxu0 0.0
    %1538 = vmatprep.subr.mxu0 0.0
    %1539 = vmatpush1.msra.mxu0 0.0
    %1540 = vmatprep.subr.mxu0 0.0
    %1541 = vmatpush1.msra.mxu0 0.0
    %1542 = vmatprep.mubr.f32.mxu0 0.0
    %1543 = vmatmul.mubr.f32.gmra.mrb[0].mxu0 %v1324
    %v1544 = vpop.f32.mrb[0].mxu0
    %v1545 = vadd.f32 %v1469, %v1544
    %v1546 = vpop.f32.mrb[0].mxu0
    %v1547 = vadd.f32 %v1471, %v1546
    %1548 = vdwg.mxu0
    %v1549 = vadd.f32 %v1545, %v502
    %v1550 = vadd.f32 %v1547, %v506
    %v1551 = vtanh.pop %v1476
    %v1552 = vtanh.pop %v1477
    %v1553 = vadd.f32 %v1551, 1.0
    %v1554 = vmul.f32 %v1553, 0.5
    %v1555 = vmul.f32 %v1554, %v1301
    %v1556 = vmul.f32 %v1554, %v1552
    %1558 = vrot.lane.b32.xlu0 %v1556, 64
    %v1559 = vpop.permute.xlu0 %1558
    %v1561 = vadd.f32 %v1555, %v1559
    %v1562 = vadd.f32 %v1552, 1.0
    %v1563 = vmul.f32 %v1562, 0.5
    %v1564 = vtanh.pop %v1561
    %v1565 = vmul.f32 %v1563, %v1564
    %v1566 = vtanh.pop %v1549
    %v1567 = vtanh.pop %v1550
    %v1568 = vadd.f32 %v1566, 1.0
    %v1569 = vmul.f32 %v1568, 0.5
    %v1570 = vmul.f32 %v1569, %v1316
    %v1571 = vmul.f32 %v1569, %v1567
    %1573 = vrot.lane.b32.xlu0 %v1571, 64
    %v1574 = vpop.permute.xlu0 %1573
    %v1576 = vadd.f32 %v1570, %v1574
    %v1577 = vadd.f32 %v1567, 1.0
    %v1578 = vmul.f32 %v1577, 0.5
    %v1579 = vtanh.pop %v1576
    %v1580 = vmul.f32 %v1578, %v1579
    %1582 = vrot.lane.b32.xlu0 %v1565, 64
    %v1583 = vpop.permute.xlu0 %1582
    %v1584 = vsel %vm242, %v1583, 0
    %1586 = vmatprep.subr.mxu0 %v224
    %1587 = vmatpush1.msra.mxu0 %v223
    %1588 = vmatprep.subr.mxu0 %v226
    %1589 = vmatpush1.msra.mxu0 %v225
    %1590 = vmatprep.subr.mxu0 %v228
    %1591 = vmatpush1.msra.mxu0 %v227
    %1592 = vmatprep.subr.mxu0 %v230
    %1593 = vmatpush1.msra.mxu0 %v229
    %1594 = vmatprep.subr.mxu0 %v232
    %1595 = vmatpush1.msra.mxu0 %v231
    %1596 = vmatprep.subr.mxu0 %v234
    %1597 = vmatpush1.msra.mxu0 %v233
    %1598 = vmatprep.subr.mxu0 %v236
    %1599 = vmatpush1.msra.mxu0 %v235
    %1600 = vmatprep.subr.mxu0 %v238
    %1601 = vmatpush1.msra.mxu0 %v237
    %1602 = vmatprep.subr.mxu0 0.0
    %1603 = vmatpush1.msra.mxu0 0.0
    %1604 = vmatprep.subr.mxu0 0.0
    %1605 = vmatpush1.msra.mxu0 0.0
    %1606 = vmatprep.subr.mxu0 0.0
    %1607 = vmatpush1.msra.mxu0 0.0
    %1608 = vmatprep.subr.mxu0 0.0
    %1609 = vmatpush1.msra.mxu0 0.0
    %1610 = vmatprep.subr.mxu0 0.0
    %1611 = vmatpush1.msra.mxu0 0.0
    %1612 = vmatprep.subr.mxu0 0.0
    %1613 = vmatpush1.msra.mxu0 0.0
    %1614 = vmatprep.subr.mxu0 0.0
    %1615 = vmatpush1.msra.mxu0 0.0
    %1616 = vmatprep.subr.mxu0 0.0
    %1617 = vmatpush1.msra.mxu0 0.0
    %1618 = vmatprep.subr.mxu0 0.0
    %1619 = vmatpush1.msra.mxu0 0.0
    %1620 = vmatprep.subr.mxu0 0.0
    %1621 = vmatpush1.msra.mxu0 0.0
    %1622 = vmatprep.subr.mxu0 0.0
    %1623 = vmatpush1.msra.mxu0 0.0
    %1624 = vmatprep.subr.mxu0 0.0
    %1625 = vmatpush1.msra.mxu0 0.0
    %1626 = vmatprep.subr.mxu0 0.0
    %1627 = vmatpush1.msra.mxu0 0.0
    %1628 = vmatprep.subr.mxu0 0.0
    %1629 = vmatpush1.msra.mxu0 0.0
    %1630 = vmatprep.subr.mxu0 0.0
    %1631 = vmatpush1.msra.mxu0 0.0
    %1632 = vmatprep.subr.mxu0 0.0
    %1633 = vmatpush1.msra.mxu0 0.0
    %1634 = vmatprep.subr.mxu0 0.0
    %1635 = vmatpush1.msra.mxu0 0.0
    %1636 = vmatprep.subr.mxu0 0.0
    %1637 = vmatpush1.msra.mxu0 0.0
    %1638 = vmatprep.subr.mxu0 0.0
    %1639 = vmatpush1.msra.mxu0 0.0
    %1640 = vmatprep.subr.mxu0 0.0
    %1641 = vmatpush1.msra.mxu0 0.0
    %1642 = vmatprep.subr.mxu0 0.0
    %1643 = vmatpush1.msra.mxu0 0.0
    %1644 = vmatprep.subr.mxu0 0.0
    %1645 = vmatpush1.msra.mxu0 0.0
    %1646 = vmatprep.subr.mxu0 0.0
    %1647 = vmatpush1.msra.mxu0 0.0
    %1648 = vmatprep.subr.mxu0 0.0
    %1649 = vmatpush1.msra.mxu0 0.0
    %1650 = vmatprep.mubr.f32.mxu0 0.0
    %1651 = vmatmul.mubr.f32.gmra.mrb[0].mxu0 %v1584
    %v1652 = vpop.f32.mrb[0].mxu0
    %v1653 = vadd.f32 0.0, %v1652
    %v1654 = vpop.f32.mrb[0].mxu0
    %v1655 = vadd.f32 0.0, %v1654
    %1656 = vdwg.mxu0
    %1658 = vrot.lane.b32.xlu0 %v1580, 64
    %v1659 = vpop.permute.xlu0 %1658
    %v1660 = vsel %vm242, %v1659, 0
    %1662 = vmatprep.subr.mxu0 %v333
    %1663 = vmatpush1.msra.mxu0 %v332
    %1664 = vmatprep.subr.mxu0 %v335
    %1665 = vmatpush1.msra.mxu0 %v334
    %1666 = vmatprep.subr.mxu0 %v337
    %1667 = vmatpush1.msra.mxu0 %v336
    %1668 = vmatprep.subr.mxu0 %v339
    %1669 = vmatpush1.msra.mxu0 %v338
    %1670 = vmatprep.subr.mxu0 %v341
    %1671 = vmatpush1.msra.mxu0 %v340
    %1672 = vmatprep.subr.mxu0 %v343
    %1673 = vmatpush1.msra.mxu0 %v342
    %1674 = vmatprep.subr.mxu0 %v345
    %1675 = vmatpush1.msra.mxu0 %v344
    %1676 = vmatprep.subr.mxu0 %v347
    %1677 = vmatpush1.msra.mxu0 %v346
    %1678 = vmatprep.subr.mxu0 0.0
    %1679 = vmatpush1.msra.mxu0 0.0
    %1680 = vmatprep.subr.mxu0 0.0
    %1681 = vmatpush1.msra.mxu0 0.0
    %1682 = vmatprep.subr.mxu0 0.0
    %1683 = vmatpush1.msra.mxu0 0.0
    %1684 = vmatprep.subr.mxu0 0.0
    %1685 = vmatpush1.msra.mxu0 0.0
    %1686 = vmatprep.subr.mxu0 0.0
    %1687 = vmatpush1.msra.mxu0 0.0
    %1688 = vmatprep.subr.mxu0 0.0
    %1689 = vmatpush1.msra.mxu0 0.0
    %1690 = vmatprep.subr.mxu0 0.0
    %1691 = vmatpush1.msra.mxu0 0.0
    %1692 = vmatprep.subr.mxu0 0.0
    %1693 = vmatpush1.msra.mxu0 0.0
    %1694 = vmatprep.subr.mxu0 0.0
    %1695 = vmatpush1.msra.mxu0 0.0
    %1696 = vmatprep.subr.mxu0 0.0
    %1697 = vmatpush1.msra.mxu0 0.0
    %1698 = vmatprep.subr.mxu0 0.0
    %1699 = vmatpush1.msra.mxu0 0.0
    %1700 = vmatprep.subr.mxu0 0.0
    %1701 = vmatpush1.msra.mxu0 0.0
    %1702 = vmatprep.subr.mxu0 0.0
    %1703 = vmatpush1.msra.mxu0 0.0
    %1704 = vmatprep.subr.mxu0 0.0
    %1705 = vmatpush1.msra.mxu0 0.0
    %1706 = vmatprep.subr.mxu0 0.0
    %1707 = vmatpush1.msra.mxu0 0.0
    %1708 = vmatprep.subr.mxu0 0.0
    %1709 = vmatpush1.msra.mxu0 0.0
    %1710 = vmatprep.subr.mxu0 0.0
    %1711 = vmatpush1.msra.mxu0 0.0
    %1712 = vmatprep.subr.mxu0 0.0
    %1713 = vmatpush1.msra.mxu0 0.0
    %1714 = vmatprep.subr.mxu0 0.0
    %1715 = vmatpush1.msra.mxu0 0.0
    %1716 = vmatprep.subr.mxu0 0.0
    %1717 = vmatpush1.msra.mxu0 0.0
    %1718 = vmatprep.subr.mxu0 0.0
    %1719 = vmatpush1.msra.mxu0 0.0
    %1720 = vmatprep.subr.mxu0 0.0
    %1721 = vmatpush1.msra.mxu0 0.0
    %1722 = vmatprep.subr.mxu0 0.0
    %1723 = vmatpush1.msra.mxu0 0.0
    %1724 = vmatprep.subr.mxu0 0.0
    %1725 = vmatpush1.msra.mxu0 0.0
    %1726 = vmatprep.mubr.f32.mxu0 0.0
    %1727 = vmatmul.mubr.f32.gmra.mrb[0].mxu0 %v1660
    %v1728 = vpop.f32.mrb[0].mxu0
    %v1729 = vadd.f32 0.0, %v1728
    %v1730 = vpop.f32.mrb[0].mxu0
    %v1731 = vadd.f32 0.0, %v1730
    %1732 = vdwg.mxu0
    %s1733 = scalar_lea.vmem [#allocation2], 96
    %v1734 = vld [vmem:[%s1733] sm:$0xff]
    %v1735 = vld [vmem:[%s1733 + $0x8] sm:$0xff]
    %v1736 = vadd.f32 %v1734, %v1653
    %v1737 = vadd.f32 %v1735, %v1655
    %1738 = vmatprep.subr.mxu0 %v317
    %1739 = vmatpush1.msra.mxu0 %v316
    %1740 = vmatprep.subr.mxu0 %v319
    %1741 = vmatpush1.msra.mxu0 %v318
    %1742 = vmatprep.subr.mxu0 %v321
    %1743 = vmatpush1.msra.mxu0 %v320
    %1744 = vmatprep.subr.mxu0 %v323
    %1745 = vmatpush1.msra.mxu0 %v322
    %1746 = vmatprep.subr.mxu0 %v325
    %1747 = vmatpush1.msra.mxu0 %v324
    %1748 = vmatprep.subr.mxu0 %v327
    %1749 = vmatpush1.msra.mxu0 %v326
    %1750 = vmatprep.subr.mxu0 %v329
    %1751 = vmatpush1.msra.mxu0 %v328
    %1752 = vmatprep.subr.mxu0 %v331
    %1753 = vmatpush1.msra.mxu0 %v330
    %1754 = vmatprep.subr.mxu0 0.0
    %1755 = vmatpush1.msra.mxu0 0.0
    %1756 = vmatprep.subr.mxu0 0.0
    %1757 = vmatpush1.msra.mxu0 0.0
    %1758 = vmatprep.subr.mxu0 0.0
    %1759 = vmatpush1.msra.mxu0 0.0
    %1760 = vmatprep.subr.mxu0 0.0
    %1761 = vmatpush1.msra.mxu0 0.0
    %1762 = vmatprep.subr.mxu0 0.0
    %1763 = vmatpush1.msra.mxu0 0.0
    %1764 = vmatprep.subr.mxu0 0.0
    %1765 = vmatpush1.msra.mxu0 0.0
    %1766 = vmatprep.subr.mxu0 0.0
    %1767 = vmatpush1.msra.mxu0 0.0
    %1768 = vmatprep.subr.mxu0 0.0
    %1769 = vmatpush1.msra.mxu0 0.0
    %1770 = vmatprep.subr.mxu0 0.0
    %1771 = vmatpush1.msra.mxu0 0.0
    %1772 = vmatprep.subr.mxu0 0.0
    %1773 = vmatpush1.msra.mxu0 0.0
    %1774 = vmatprep.subr.mxu0 0.0
    %1775 = vmatpush1.msra.mxu0 0.0
    %1776 = vmatprep.subr.mxu0 0.0
    %1777 = vmatpush1.msra.mxu0 0.0
    %1778 = vmatprep.subr.mxu0 0.0
    %1779 = vmatpush1.msra.mxu0 0.0
    %1780 = vmatprep.subr.mxu0 0.0
    %1781 = vmatpush1.msra.mxu0 0.0
    %1782 = vmatprep.subr.mxu0 0.0
    %1783 = vmatpush1.msra.mxu0 0.0
    %1784 = vmatprep.subr.mxu0 0.0
    %1785 = vmatpush1.msra.mxu0 0.0
    %1786 = vmatprep.subr.mxu0 0.0
    %1787 = vmatpush1.msra.mxu0 0.0
    %1788 = vmatprep.subr.mxu0 0.0
    %1789 = vmatpush1.msra.mxu0 0.0
    %1790 = vmatprep.subr.mxu0 0.0
    %1791 = vmatpush1.msra.mxu0 0.0
    %1792 = vmatprep.subr.mxu0 0.0
    %1793 = vmatpush1.msra.mxu0 0.0
    %1794 = vmatprep.subr.mxu0 0.0
    %1795 = vmatpush1.msra.mxu0 0.0
    %1796 = vmatprep.subr.mxu0 0.0
    %1797 = vmatpush1.msra.mxu0 0.0
    %1798 = vmatprep.subr.mxu0 0.0
    %1799 = vmatpush1.msra.mxu0 0.0
    %1800 = vmatprep.subr.mxu0 0.0
    %1801 = vmatpush1.msra.mxu0 0.0
    %1802 = vmatprep.mubr.f32.mxu0 0.0
    %1803 = vmatmul.mubr.f32.gmra.mrb[0].mxu0 %v1584
    %v1804 = vpop.f32.mrb[0].mxu0
    %v1805 = vadd.f32 %v1729, %v1804
    %v1806 = vpop.f32.mrb[0].mxu0
    %v1807 = vadd.f32 %v1731, %v1806
    %1808 = vdwg.mxu0
    %v1809 = vadd.f32 %v1805, %v502
    %v1810 = vadd.f32 %v1807, %v506
    %v1811 = vtanh.pop %v1736
    %v1812 = vtanh.pop %v1737
    %v1813 = vadd.f32 %v1811, 1.0
    %v1814 = vmul.f32 %v1813, 0.5
    %v1815 = vmul.f32 %v1814, %v1561
    %v1816 = vmul.f32 %v1814, %v1812
    %1818 = vrot.lane.b32.xlu0 %v1816, 64
    %v1819 = vpop.permute.xlu0 %1818
    %v1821 = vadd.f32 %v1815, %v1819
    %v1822 = vadd.f32 %v1812, 1.0
    %v1823 = vmul.f32 %v1822, 0.5
    %v1824 = vtanh.pop %v1821
    %v1825 = vmul.f32 %v1823, %v1824
    %v1826 = vtanh.pop %v1809
    %v1827 = vtanh.pop %v1810
    %v1828 = vadd.f32 %v1826, 1.0
    %v1829 = vmul.f32 %v1828, 0.5
    %v1830 = vmul.f32 %v1829, %v1576
    %v1831 = vmul.f32 %v1829, %v1827
    %1833 = vrot.lane.b32.xlu0 %v1831, 64
    %v1834 = vpop.permute.xlu0 %1833
    %v1836 = vadd.f32 %v1830, %v1834
    %v1837 = vadd.f32 %v1827, 1.0
    %v1838 = vmul.f32 %v1837, 0.5
    %v1839 = vtanh.pop %v1836
    %v1840 = vmul.f32 %v1838, %v1839
    %1842 = vrot.lane.b32.xlu0 %v1825, 64
    %v1843 = vpop.permute.xlu0 %1842
    %v1844 = vsel %vm242, %v1843, 0
    %1846 = vmatprep.subr.mxu0 %v224
    %1847 = vmatpush1.msra.mxu0 %v223
    %1848 = vmatprep.subr.mxu0 %v226
    %1849 = vmatpush1.msra.mxu0 %v225
    %1850 = vmatprep.subr.mxu0 %v228
    %1851 = vmatpush1.msra.mxu0 %v227
    %1852 = vmatprep.subr.mxu0 %v230
    %1853 = vmatpush1.msra.mxu0 %v229
    %1854 = vmatprep.subr.mxu0 %v232
    %1855 = vmatpush1.msra.mxu0 %v231
    %1856 = vmatprep.subr.mxu0 %v234
    %1857 = vmatpush1.msra.mxu0 %v233
    %1858 = vmatprep.subr.mxu0 %v236
    %1859 = vmatpush1.msra.mxu0 %v235
    %1860 = vmatprep.subr.mxu0 %v238
    %1861 = vmatpush1.msra.mxu0 %v237
    %1862 = vmatprep.subr.mxu0 0.0
    %1863 = vmatpush1.msra.mxu0 0.0
    %1864 = vmatprep.subr.mxu0 0.0
    %1865 = vmatpush1.msra.mxu0 0.0
    %1866 = vmatprep.subr.mxu0 0.0
    %1867 = vmatpush1.msra.mxu0 0.0
    %1868 = vmatprep.subr.mxu0 0.0
    %1869 = vmatpush1.msra.mxu0 0.0
    %1870 = vmatprep.subr.mxu0 0.0
    %1871 = vmatpush1.msra.mxu0 0.0
    %1872 = vmatprep.subr.mxu0 0.0
    %1873 = vmatpush1.msra.mxu0 0.0
    %1874 = vmatprep.subr.mxu0 0.0
    %1875 = vmatpush1.msra.mxu0 0.0
    %1876 = vmatprep.subr.mxu0 0.0
    %1877 = vmatpush1.msra.mxu0 0.0
    %1878 = vmatprep.subr.mxu0 0.0
    %1879 = vmatpush1.msra.mxu0 0.0
    %1880 = vmatprep.subr.mxu0 0.0
    %1881 = vmatpush1.msra.mxu0 0.0
    %1882 = vmatprep.subr.mxu0 0.0
    %1883 = vmatpush1.msra.mxu0 0.0
    %1884 = vmatprep.subr.mxu0 0.0
    %1885 = vmatpush1.msra.mxu0 0.0
    %1886 = vmatprep.subr.mxu0 0.0
    %1887 = vmatpush1.msra.mxu0 0.0
    %1888 = vmatprep.subr.mxu0 0.0
    %1889 = vmatpush1.msra.mxu0 0.0
    %1890 = vmatprep.subr.mxu0 0.0
    %1891 = vmatpush1.msra.mxu0 0.0
    %1892 = vmatprep.subr.mxu0 0.0
    %1893 = vmatpush1.msra.mxu0 0.0
    %1894 = vmatprep.subr.mxu0 0.0
    %1895 = vmatpush1.msra.mxu0 0.0
    %1896 = vmatprep.subr.mxu0 0.0
    %1897 = vmatpush1.msra.mxu0 0.0
    %1898 = vmatprep.subr.mxu0 0.0
    %1899 = vmatpush1.msra.mxu0 0.0
    %1900 = vmatprep.subr.mxu0 0.0
    %1901 = vmatpush1.msra.mxu0 0.0
    %1902 = vmatprep.subr.mxu0 0.0
    %1903 = vmatpush1.msra.mxu0 0.0
    %1904 = vmatprep.subr.mxu0 0.0
    %1905 = vmatpush1.msra.mxu0 0.0
    %1906 = vmatprep.subr.mxu0 0.0
    %1907 = vmatpush1.msra.mxu0 0.0
    %1908 = vmatprep.subr.mxu0 0.0
    %1909 = vmatpush1.msra.mxu0 0.0
    %1910 = vmatprep.mubr.f32.mxu0 0.0
    %1911 = vmatmul.mubr.f32.gmra.mrb[0].mxu0 %v1844
    %v1912 = vpop.f32.mrb[0].mxu0
    %v1913 = vadd.f32 0.0, %v1912
    %v1914 = vpop.f32.mrb[0].mxu0
    %v1915 = vadd.f32 0.0, %v1914
    %1916 = vdwg.mxu0
    %1918 = vrot.lane.b32.xlu0 %v1840, 64
    %v1919 = vpop.permute.xlu0 %1918
    %v1920 = vsel %vm242, %v1919, 0
    %1922 = vmatprep.subr.mxu0 %v333
    %1923 = vmatpush1.msra.mxu0 %v332
    %1924 = vmatprep.subr.mxu0 %v335
    %1925 = vmatpush1.msra.mxu0 %v334
    %1926 = vmatprep.subr.mxu0 %v337
    %1927 = vmatpush1.msra.mxu0 %v336
    %1928 = vmatprep.subr.mxu0 %v339
    %1929 = vmatpush1.msra.mxu0 %v338
    %1930 = vmatprep.subr.mxu0 %v341
    %1931 = vmatpush1.msra.mxu0 %v340
    %1932 = vmatprep.subr.mxu0 %v343
    %1933 = vmatpush1.msra.mxu0 %v342
    %1934 = vmatprep.subr.mxu0 %v345
    %1935 = vmatpush1.msra.mxu0 %v344
    %1936 = vmatprep.subr.mxu0 %v347
    %1937 = vmatpush1.msra.mxu0 %v346
    %1938 = vmatprep.subr.mxu0 0.0
    %1939 = vmatpush1.msra.mxu0 0.0
    %1940 = vmatprep.subr.mxu0 0.0
    %1941 = vmatpush1.msra.mxu0 0.0
    %1942 = vmatprep.subr.mxu0 0.0
    %1943 = vmatpush1.msra.mxu0 0.0
    %1944 = vmatprep.subr.mxu0 0.0
    %1945 = vmatpush1.msra.mxu0 0.0
    %1946 = vmatprep.subr.mxu0 0.0
    %1947 = vmatpush1.msra.mxu0 0.0
    %1948 = vmatprep.subr.mxu0 0.0
    %1949 = vmatpush1.msra.mxu0 0.0
    %1950 = vmatprep.subr.mxu0 0.0
    %1951 = vmatpush1.msra.mxu0 0.0
    %1952 = vmatprep.subr.mxu0 0.0
    %1953 = vmatpush1.msra.mxu0 0.0
    %1954 = vmatprep.subr.mxu0 0.0
    %1955 = vmatpush1.msra.mxu0 0.0
    %1956 = vmatprep.subr.mxu0 0.0
    %1957 = vmatpush1.msra.mxu0 0.0
    %1958 = vmatprep.subr.mxu0 0.0
    %1959 = vmatpush1.msra.mxu0 0.0
    %1960 = vmatprep.subr.mxu0 0.0
    %1961 = vmatpush1.msra.mxu0 0.0
    %1962 = vmatprep.subr.mxu0 0.0
    %1963 = vmatpush1.msra.mxu0 0.0
    %1964 = vmatprep.subr.mxu0 0.0
    %1965 = vmatpush1.msra.mxu0 0.0
    %1966 = vmatprep.subr.mxu0 0.0
    %1967 = vmatpush1.msra.mxu0 0.0
    %1968 = vmatprep.subr.mxu0 0.0
    %1969 = vmatpush1.msra.mxu0 0.0
    %1970 = vmatprep.subr.mxu0 0.0
    %1971 = vmatpush1.msra.mxu0 0.0
    %1972 = vmatprep.subr.mxu0 0.0
    %1973 = vmatpush1.msra.mxu0 0.0
    %1974 = vmatprep.subr.mxu0 0.0
    %1975 = vmatpush1.msra.mxu0 0.0
    %1976 = vmatprep.subr.mxu0 0.0
    %1977 = vmatpush1.msra.mxu0 0.0
    %1978 = vmatprep.subr.mxu0 0.0
    %1979 = vmatpush1.msra.mxu0 0.0
    %1980 = vmatprep.subr.mxu0 0.0
    %1981 = vmatpush1.msra.mxu0 0.0
    %1982 = vmatprep.subr.mxu0 0.0
    %1983 = vmatpush1.msra.mxu0 0.0
    %1984 = vmatprep.subr.mxu0 0.0
    %1985 = vmatpush1.msra.mxu0 0.0
    %1986 = vmatprep.mubr.f32.mxu0 0.0
    %1987 = vmatmul.mubr.f32.gmra.mrb[0].mxu0 %v1920
    %v1988 = vpop.f32.mrb[0].mxu0
    %v1989 = vadd.f32 0.0, %v1988
    %v1990 = vpop.f32.mrb[0].mxu0
    %v1991 = vadd.f32 0.0, %v1990
    %1992 = vdwg.mxu0
    %s1993 = scalar_lea.vmem [#allocation2], 112
    %v1994 = vld [vmem:[%s1993] sm:$0xff]
    %v1995 = vld [vmem:[%s1993 + $0x8] sm:$0xff]
    %v1996 = vadd.f32 %v1994, %v1913
    %v1997 = vadd.f32 %v1995, %v1915
    %1998 = vmatprep.subr.mxu0 %v317
    %1999 = vmatpush1.msra.mxu0 %v316
    %2000 = vmatprep.subr.mxu0 %v319
    %2001 = vmatpush1.msra.mxu0 %v318
    %2002 = vmatprep.subr.mxu0 %v321
    %2003 = vmatpush1.msra.mxu0 %v320
    %2004 = vmatprep.subr.mxu0 %v323
    %2005 = vmatpush1.msra.mxu0 %v322
    %2006 = vmatprep.subr.mxu0 %v325
    %2007 = vmatpush1.msra.mxu0 %v324
    %2008 = vmatprep.subr.mxu0 %v327
    %2009 = vmatpush1.msra.mxu0 %v326
    %2010 = vmatprep.subr.mxu0 %v329
    %2011 = vmatpush1.msra.mxu0 %v328
    %2012 = vmatprep.subr.mxu0 %v331
    %2013 = vmatpush1.msra.mxu0 %v330
    %2014 = vmatprep.subr.mxu0 0.0
    %2015 = vmatpush1.msra.mxu0 0.0
    %2016 = vmatprep.subr.mxu0 0.0
    %2017 = vmatpush1.msra.mxu0 0.0
    %2018 = vmatprep.subr.mxu0 0.0
    %2019 = vmatpush1.msra.mxu0 0.0
    %2020 = vmatprep.subr.mxu0 0.0
    %2021 = vmatpush1.msra.mxu0 0.0
    %2022 = vmatprep.subr.mxu0 0.0
    %2023 = vmatpush1.msra.mxu0 0.0
    %2024 = vmatprep.subr.mxu0 0.0
    %2025 = vmatpush1.msra.mxu0 0.0
    %2026 = vmatprep.subr.mxu0 0.0
    %2027 = vmatpush1.msra.mxu0 0.0
    %2028 = vmatprep.subr.mxu0 0.0
    %2029 = vmatpush1.msra.mxu0 0.0
    %2030 = vmatprep.subr.mxu0 0.0
    %2031 = vmatpush1.msra.mxu0 0.0
    %2032 = vmatprep.subr.mxu0 0.0
    %2033 = vmatpush1.msra.mxu0 0.0
    %2034 = vmatprep.subr.mxu0 0.0
    %2035 = vmatpush1.msra.mxu0 0.0
    %2036 = vmatprep.subr.mxu0 0.0
    %2037 = vmatpush1.msra.mxu0 0.0
    %2038 = vmatprep.subr.mxu0 0.0
    %2039 = vmatpush1.msra.mxu0 0.0
    %2040 = vmatprep.subr.mxu0 0.0
    %2041 = vmatpush1.msra.mxu0 0.0
    %2042 = vmatprep.subr.mxu0 0.0
    %2043 = vmatpush1.msra.mxu0 0.0
    %2044 = vmatprep.subr.mxu0 0.0
    %2045 = vmatpush1.msra.mxu0 0.0
    %2046 = vmatprep.subr.mxu0 0.0
    %2047 = vmatpush1.msra.mxu0 0.0
    %2048 = vmatprep.subr.mxu0 0.0
    %2049 = vmatpush1.msra.mxu0 0.0
    %2050 = vmatprep.subr.mxu0 0.0
    %2051 = vmatpush1.msra.mxu0 0.0
    %2052 = vmatprep.subr.mxu0 0.0
    %2053 = vmatpush1.msra.mxu0 0.0
    %2054 = vmatprep.subr.mxu0 0.0
    %2055 = vmatpush1.msra.mxu0 0.0
    %2056 = vmatprep.subr.mxu0 0.0
    %2057 = vmatpush1.msra.mxu0 0.0
    %2058 = vmatprep.subr.mxu0 0.0
    %2059 = vmatpush1.msra.mxu0 0.0
    %2060 = vmatprep.subr.mxu0 0.0
    %2061 = vmatpush1.msra.mxu0 0.0
    %2062 = vmatprep.mubr.f32.mxu0 0.0
    %2063 = vmatmul.mubr.f32.gmra.mrb[0].mxu0 %v1844
    %v2064 = vpop.f32.mrb[0].mxu0
    %v2065 = vadd.f32 %v1989, %v2064
    %v2066 = vpop.f32.mrb[0].mxu0
    %v2067 = vadd.f32 %v1991, %v2066
    %2068 = vdwg.mxu0
    %v2069 = vadd.f32 %v2065, %v502
    %v2070 = vadd.f32 %v2067, %v506
    %v2071 = vtanh.pop %v1996
    %v2072 = vtanh.pop %v1997
    %v2073 = vadd.f32 %v2071, 1.0
    %v2074 = vmul.f32 %v2073, 0.5
    %v2075 = vmul.f32 %v2074, %v1821
    %v2076 = vmul.f32 %v2074, %v2072
    %2078 = vrot.lane.b32.xlu0 %v2076, 64
    %v2079 = vpop.permute.xlu0 %2078
    %v2081 = vadd.f32 %v2075, %v2079
    %v2082 = vadd.f32 %v2072, 1.0
    %v2083 = vmul.f32 %v2082, 0.5
    %v2084 = vtanh.pop %v2081
    %v2085 = vmul.f32 %v2083, %v2084
    %v2086 = vtanh.pop %v2069
    %v2087 = vtanh.pop %v2070
    %v2088 = vadd.f32 %v2086, 1.0
    %v2089 = vmul.f32 %v2088, 0.5
    %v2090 = vmul.f32 %v2089, %v1836
    %v2091 = vmul.f32 %v2089, %v2087
    %2093 = vrot.lane.b32.xlu0 %v2091, 64
    %v2094 = vpop.permute.xlu0 %2093
    %v2096 = vadd.f32 %v2090, %v2094
    %v2097 = vadd.f32 %v2087, 1.0
    %v2098 = vmul.f32 %v2097, 0.5
    %v2099 = vtanh.pop %v2096
    %v2100 = vmul.f32 %v2098, %v2099
    %2102 = vrot.lane.b32.xlu0 %v2100, 64
    %v2103 = vpop.permute.xlu0 %2102
    %v2104 = vsel %vm242, %v2103, 0
    %2106 = vmatprep.subr.mxu0 %v333
    %2107 = vmatpush1.msra.mxu0 %v332
    %2108 = vmatprep.subr.mxu0 %v335
    %2109 = vmatpush1.msra.mxu0 %v334
    %2110 = vmatprep.subr.mxu0 %v337
    %2111 = vmatpush1.msra.mxu0 %v336
    %2112 = vmatprep.subr.mxu0 %v339
    %2113 = vmatpush1.msra.mxu0 %v338
    %2114 = vmatprep.subr.mxu0 %v341
    %2115 = vmatpush1.msra.mxu0 %v340
    %2116 = vmatprep.subr.mxu0 %v343
    %2117 = vmatpush1.msra.mxu0 %v342
    %2118 = vmatprep.subr.mxu0 %v345
    %2119 = vmatpush1.msra.mxu0 %v344
    %2120 = vmatprep.subr.mxu0 %v347
    %2121 = vmatpush1.msra.mxu0 %v346
    %2122 = vmatprep.subr.mxu0 0.0
    %2123 = vmatpush1.msra.mxu0 0.0
    %2124 = vmatprep.subr.mxu0 0.0
    %2125 = vmatpush1.msra.mxu0 0.0
    %2126 = vmatprep.subr.mxu0 0.0
    %2127 = vmatpush1.msra.mxu0 0.0
    %2128 = vmatprep.subr.mxu0 0.0
    %2129 = vmatpush1.msra.mxu0 0.0
    %2130 = vmatprep.subr.mxu0 0.0
    %2131 = vmatpush1.msra.mxu0 0.0
    %2132 = vmatprep.subr.mxu0 0.0
    %2133 = vmatpush1.msra.mxu0 0.0
    %2134 = vmatprep.subr.mxu0 0.0
    %2135 = vmatpush1.msra.mxu0 0.0
    %2136 = vmatprep.subr.mxu0 0.0
    %2137 = vmatpush1.msra.mxu0 0.0
    %2138 = vmatprep.subr.mxu0 0.0
    %2139 = vmatpush1.msra.mxu0 0.0
    %2140 = vmatprep.subr.mxu0 0.0
    %2141 = vmatpush1.msra.mxu0 0.0
    %2142 = vmatprep.subr.mxu0 0.0
    %2143 = vmatpush1.msra.mxu0 0.0
    %2144 = vmatprep.subr.mxu0 0.0
    %2145 = vmatpush1.msra.mxu0 0.0
    %2146 = vmatprep.subr.mxu0 0.0
    %2147 = vmatpush1.msra.mxu0 0.0
    %2148 = vmatprep.subr.mxu0 0.0
    %2149 = vmatpush1.msra.mxu0 0.0
    %2150 = vmatprep.subr.mxu0 0.0
    %2151 = vmatpush1.msra.mxu0 0.0
    %2152 = vmatprep.subr.mxu0 0.0
    %2153 = vmatpush1.msra.mxu0 0.0
    %2154 = vmatprep.subr.mxu0 0.0
    %2155 = vmatpush1.msra.mxu0 0.0
    %2156 = vmatprep.subr.mxu0 0.0
    %2157 = vmatpush1.msra.mxu0 0.0
    %2158 = vmatprep.subr.mxu0 0.0
    %2159 = vmatpush1.msra.mxu0 0.0
    %2160 = vmatprep.subr.mxu0 0.0
    %2161 = vmatpush1.msra.mxu0 0.0
    %2162 = vmatprep.subr.mxu0 0.0
    %2163 = vmatpush1.msra.mxu0 0.0
    %2164 = vmatprep.subr.mxu0 0.0
    %2165 = vmatpush1.msra.mxu0 0.0
    %2166 = vmatprep.subr.mxu0 0.0
    %2167 = vmatpush1.msra.mxu0 0.0
    %2168 = vmatprep.subr.mxu0 0.0
    %2169 = vmatpush1.msra.mxu0 0.0
    %2170 = vmatprep.mubr.f32.mxu0 0.0
    %2171 = vmatmul.mubr.f32.gmra.mrb[0].mxu0 %v2104
    %v2172 = vpop.f32.mrb[0].mxu0
    %v2173 = vadd.f32 0.0, %v2172
    %v2174 = vpop.f32.mrb[0].mxu0
    %v2175 = vadd.f32 0.0, %v2174
    %2176 = vdwg.mxu0
    %2178 = vrot.lane.b32.xlu0 %v2085, 64
    %v2179 = vpop.permute.xlu0 %2178
    %v2180 = vsel %vm242, %v2179, 0
    %2182 = vmatprep.subr.mxu0 %v317
    %2183 = vmatpush1.msra.mxu0 %v316
    %2184 = vmatprep.subr.mxu0 %v319
    %2185 = vmatpush1.msra.mxu0 %v318
    %2186 = vmatprep.subr.mxu0 %v321
    %2187 = vmatpush1.msra.mxu0 %v320
    %2188 = vmatprep.subr.mxu0 %v323
    %2189 = vmatpush1.msra.mxu0 %v322
    %2190 = vmatprep.subr.mxu0 %v325
    %2191 = vmatpush1.msra.mxu0 %v324
    %2192 = vmatprep.subr.mxu0 %v327
    %2193 = vmatpush1.msra.mxu0 %v326
    %2194 = vmatprep.subr.mxu0 %v329
    %2195 = vmatpush1.msra.mxu0 %v328
    %2196 = vmatprep.subr.mxu0 %v331
    %2197 = vmatpush1.msra.mxu0 %v330
    %2198 = vmatprep.subr.mxu0 0.0
    %2199 = vmatpush1.msra.mxu0 0.0
    %2200 = vmatprep.subr.mxu0 0.0
    %2201 = vmatpush1.msra.mxu0 0.0
    %2202 = vmatprep.subr.mxu0 0.0
    %2203 = vmatpush1.msra.mxu0 0.0
    %2204 = vmatprep.subr.mxu0 0.0
    %2205 = vmatpush1.msra.mxu0 0.0
    %2206 = vmatprep.subr.mxu0 0.0
    %2207 = vmatpush1.msra.mxu0 0.0
    %2208 = vmatprep.subr.mxu0 0.0
    %2209 = vmatpush1.msra.mxu0 0.0
    %2210 = vmatprep.subr.mxu0 0.0
    %2211 = vmatpush1.msra.mxu0 0.0
    %2212 = vmatprep.subr.mxu0 0.0
    %2213 = vmatpush1.msra.mxu0 0.0
    %2214 = vmatprep.subr.mxu0 0.0
    %2215 = vmatpush1.msra.mxu0 0.0
    %2216 = vmatprep.subr.mxu0 0.0
    %2217 = vmatpush1.msra.mxu0 0.0
    %2218 = vmatprep.subr.mxu0 0.0
    %2219 = vmatpush1.msra.mxu0 0.0
    %2220 = vmatprep.subr.mxu0 0.0
    %2221 = vmatpush1.msra.mxu0 0.0
    %2222 = vmatprep.subr.mxu0 0.0
    %2223 = vmatpush1.msra.mxu0 0.0
    %2224 = vmatprep.subr.mxu0 0.0
    %2225 = vmatpush1.msra.mxu0 0.0
    %2226 = vmatprep.subr.mxu0 0.0
    %2227 = vmatpush1.msra.mxu0 0.0
    %2228 = vmatprep.subr.mxu0 0.0
    %2229 = vmatpush1.msra.mxu0 0.0
    %2230 = vmatprep.subr.mxu0 0.0
    %2231 = vmatpush1.msra.mxu0 0.0
    %2232 = vmatprep.subr.mxu0 0.0
    %2233 = vmatpush1.msra.mxu0 0.0
    %2234 = vmatprep.subr.mxu0 0.0
    %2235 = vmatpush1.msra.mxu0 0.0
    %2236 = vmatprep.subr.mxu0 0.0
    %2237 = vmatpush1.msra.mxu0 0.0
    %2238 = vmatprep.subr.mxu0 0.0
    %2239 = vmatpush1.msra.mxu0 0.0
    %2240 = vmatprep.subr.mxu0 0.0
    %2241 = vmatpush1.msra.mxu0 0.0
    %2242 = vmatprep.subr.mxu0 0.0
    %2243 = vmatpush1.msra.mxu0 0.0
    %2244 = vmatprep.subr.mxu0 0.0
    %2245 = vmatpush1.msra.mxu0 0.0
    %2246 = vmatprep.mubr.f32.mxu0 0.0
    %2247 = vmatmul.mubr.f32.gmra.mrb[0].mxu0 %v2180
    %v2248 = vpop.f32.mrb[0].mxu0
    %v2249 = vadd.f32 %v2173, %v2248
    %v2250 = vpop.f32.mrb[0].mxu0
    %v2251 = vadd.f32 %v2175, %v2250
    %2252 = vdwg.mxu0
    %v2253 = vadd.f32 %v2249, %v502
    %v2254 = vadd.f32 %v2251, %v506
    %v2255 = vtanh.pop %v2253
    %v2256 = vtanh.pop %v2254
    %v2257 = vadd.f32 %v2255, 1.0
    %v2258 = vmul.f32 %v2257, 0.5
    %v2259 = vmul.f32 %v2258, %v2096
    %v2260 = vmul.f32 %v2258, %v2256
    %2262 = vrot.lane.b32.xlu0 %v2260, 64
    %v2263 = vpop.permute.xlu0 %2262
    %v2265 = vadd.f32 %v2259, %v2263
    %v2266 = vadd.f32 %v2256, 1.0
    %v2267 = vmul.f32 %v2266, 0.5
    %v2268 = vtanh.pop %v2265
    %v2269 = vmul.f32 %v2267, %v2268
    %v2270 = vld [vmem:[#allocation8] sm:$0xff]
    %v2271 = vld [vmem:[#allocation8 + $0x8] sm:$0xff]
    %v2272 = vld [vmem:[#allocation8 + $0x10] sm:$0xff]
    %v2273 = vld [vmem:[#allocation8 + $0x18] sm:$0xff]
    %v2274 = vld [vmem:[#allocation8 + $0x20] sm:$0xff]
    %v2275 = vld [vmem:[#allocation8 + $0x28] sm:$0xff]
    %v2276 = vld [vmem:[#allocation8 + $0x30] sm:$0xff]
    %v2277 = vld [vmem:[#allocation8 + $0x38] sm:$0xff]
    %v2278 = vld [vmem:[%s8] sm:$0x1]
    %v2280 = vlaneseq
    %v2281 = vshrl.u32 %v2280, 7
    %v2282 = vsub.s32 0, %v2281
    %v2283 = vrot.slane %v2278, %v2282
    %2286 = vrot.lane.b32.xlu0 %v2269, 64
    %v2287 = vpop.permute.xlu0 %2286
    %v2288 = vsel %vm242, %v2287, 0
    %2290 = vmatprep.subr.mxu0 0.0
    %2291 = vmatpush1.msra.mxu0 %v2270
    %2292 = vmatprep.subr.mxu0 0.0
    %2293 = vmatpush1.msra.mxu0 %v2271
    %2294 = vmatprep.subr.mxu0 0.0
    %2295 = vmatpush1.msra.mxu0 %v2272
    %2296 = vmatprep.subr.mxu0 0.0
    %2297 = vmatpush1.msra.mxu0 %v2273
    %2298 = vmatprep.subr.mxu0 0.0
    %2299 = vmatpush1.msra.mxu0 %v2274
    %2300 = vmatprep.subr.mxu0 0.0
    %2301 = vmatpush1.msra.mxu0 %v2275
    %2302 = vmatprep.subr.mxu0 0.0
    %2303 = vmatpush1.msra.mxu0 %v2276
    %2304 = vmatprep.subr.mxu0 0.0
    %2305 = vmatpush1.msra.mxu0 %v2277
    %2306 = vmatprep.subr.mxu0 0.0
    %2307 = vmatpush1.msra.mxu0 0.0
    %2308 = vmatprep.subr.mxu0 0.0
    %2309 = vmatpush1.msra.mxu0 0.0
    %2310 = vmatprep.subr.mxu0 0.0
    %2311 = vmatpush1.msra.mxu0 0.0
    %2312 = vmatprep.subr.mxu0 0.0
    %2313 = vmatpush1.msra.mxu0 0.0
    %2314 = vmatprep.subr.mxu0 0.0
    %2315 = vmatpush1.msra.mxu0 0.0
    %2316 = vmatprep.subr.mxu0 0.0
    %2317 = vmatpush1.msra.mxu0 0.0
    %2318 = vmatprep.subr.mxu0 0.0
    %2319 = vmatpush1.msra.mxu0 0.0
    %2320 = vmatprep.subr.mxu0 0.0
    %2321 = vmatpush1.msra.mxu0 0.0
    %2322 = vmatprep.subr.mxu0 0.0
    %2323 = vmatpush1.msra.mxu0 0.0
    %2324 = vmatprep.subr.mxu0 0.0
    %2325 = vmatpush1.msra.mxu0 0.0
    %2326 = vmatprep.subr.mxu0 0.0
    %2327 = vmatpush1.msra.mxu0 0.0
    %2328 = vmatprep.subr.mxu0 0.0
    %2329 = vmatpush1.msra.mxu0 0.0
    %2330 = vmatprep.subr.mxu0 0.0
    %2331 = vmatpush1.msra.mxu0 0.0
    %2332 = vmatprep.subr.mxu0 0.0
    %2333 = vmatpush1.msra.mxu0 0.0
    %2334 = vmatprep.subr.mxu0 0.0
    %2335 = vmatpush1.msra.mxu0 0.0
    %2336 = vmatprep.subr.mxu0 0.0
    %2337 = vmatpush1.msra.mxu0 0.0
    %2338 = vmatprep.subr.mxu0 0.0
    %2339 = vmatpush1.msra.mxu0 0.0
    %2340 = vmatprep.subr.mxu0 0.0
    %2341 = vmatpush1.msra.mxu0 0.0
    %2342 = vmatprep.subr.mxu0 0.0
    %2343 = vmatpush1.msra.mxu0 0.0
    %2344 = vmatprep.subr.mxu0 0.0
    %2345 = vmatpush1.msra.mxu0 0.0
    %2346 = vmatprep.subr.mxu0 0.0
    %2347 = vmatpush1.msra.mxu0 0.0
    %2348 = vmatprep.subr.mxu0 0.0
    %2349 = vmatpush1.msra.mxu0 0.0
    %2350 = vmatprep.subr.mxu0 0.0
    %2351 = vmatpush1.msra.mxu0 0.0
    %2352 = vmatprep.subr.mxu0 0.0
    %2353 = vmatpush1.msra.mxu0 0.0
    %2354 = vmatprep.mubr.f32.mxu0 0.0
    %2355 = vmatmul.mubr.f32.gmra.mrb[0].mxu0 %v2288
    %v2356 = vpop.f32.mrb[0].mxu0
    %v2357 = vadd.f32 %v2283, %v2356
    %v2358 = vpop.f32.mrb[0].mxu0
    %2359 = vdwg.mxu0
    %2360 = vst [vmem:[%s9] sm:$0xff] %v2357
    // Predicated region
    $region54: #{lstm_forward.1} parent=1 // pred_check
      _
    $region55: #{lstm_forward.1} parent=1 // pred_check_branch
      %2362 = sbr.rel (0) target = $region57
    $region56: #{lstm_forward.1} parent=1 // pred_region
      _
    $region57: #{lstm_forward.1} parent=1 // pred_fallthru
      _
    // Predicated region
    $region58: #{lstm_forward.1} parent=1 // pred_check
      _
    $region59: #{lstm_forward.1} parent=1 // pred_check_branch
      %2364 = sbr.rel (0) target = $region61
    $region60: #{lstm_forward.1} parent=1 // pred_region
      _
    $region61: #{lstm_forward.1} parent=1 // pred_fallthru
      _
    %2365 = vsyncpa [#allocation4], 1
    %2366 = vsyncpa [#allocation6], 1
    %2367 = vsyncpa [#allocation9], 1

</llo_original>
